<compile_context>
chip_gen: v7x
topology: tpu7x:2x2x1
jax: 0.10.0
libtpu: 0.0.40
codegen_flags: <defaults>
</compile_context>

<pallas_src>
import functools

import jax
import jax.numpy as jnp
from jax import lax
from jax.experimental import pallas as pl
from jax.experimental.pallas import tpu as pltpu


# ---------------------------------------------------------------------------
# Fused Pallas kernel
# ---------------------------------------------------------------------------
def _upproj_fused_kernel(x_ref, w5_ref, b5_ref, w3_ref, b3_ref, o_ref, ppad_ref,
                         *, H, W, Cin, Cout, rpack):
    f32 = jnp.float32
    mm = ppad_ref.dtype          # matmul / scratch dtype (bf16 by default)

    # ---- stage 1: unpool + conv1 + sc_conv1 (BN scale pre-folded) ----------
    # One shared 3x3 im2col over the (wrapper-padded) input serves all four
    # output phases and both 5x5 convs; unused taps are zero rows of w5.
    x = x_ref[0]                                        # (H+2, W+2, Cin), mm dtype
    taps1 = [x[r:r + H, c:c + W, :] for r in range(3) for c in range(3)]
    patches1 = jnp.concatenate(taps1, axis=-1).reshape(H * W, 9 * Cin)
    y1 = jnp.dot(patches1, w5_ref[...], preferred_element_type=f32)
    y1 = y1 + b5_ref[...]                               # (H*W, 8*Cout); bn1|sc_bn1 bias

    # Re-zero only the 1-pixel halo border of the conv1-activation scratch
    # each step (interior is fully overwritten below).  This keeps the halo
    # invariant without a full-scratch zero fill and without relying on
    # program_id==0 (which would break if steps are sharded across cores).
    zrow = jnp.zeros((1, W + 2, Cout), mm)
    zcol = jnp.zeros((H, 1, Cout), mm)
    for plane in range(4):
        ppad_ref[plane, 0:1, :, :] = zrow
        ppad_ref[plane, H + 1:H + 2, :, :] = zrow
        ppad_ref[plane, 1:H + 1, 0:1, :] = zcol
        ppad_ref[plane, 1:H + 1, W + 1:W + 2, :] = zcol

    # Per phase block: first Cout channels -> conv1 path (ReLU) staged into the
    # halo-padded VMEM scratch (mm dtype) for conv2; next Cout -> shortcut.
    sc_parts = []
    for pa in range(2):
        for pb in range(2):
            base = (pa * 2 + pb) * 2 * Cout
            out1_ab = jnp.maximum(y1[:, base:base + Cout], 0.0)
            sc_parts.append(y1[:, base + Cout:base + 2 * Cout])
            ppad_ref[pa * 2 + pb, 1:H + 1, 1:W + 1, :] = (
                out1_ab.reshape(H, W, Cout).astype(mm))
    sc = jnp.concatenate(sc_parts, axis=-1)             # (H*W, 4*Cout), f32

    # ---- stage 2: conv2 (BN scale pre-folded) + shortcut add + ReLU --------
    # Shared phase-form im2col over the padded conv1 activations: 16
    # (row source phase, offset) x (col source phase, offset) windows cover
    # the 3x3 taps of every output phase (K = 16*Cout).
    combos = ((0, 1), (0, 2), (1, 0), (1, 1))           # (source phase, offset)
    taps2 = [ppad_ref[ra * 2 + cb, ro:ro + H, co:co + W, :]
             for ra, ro in combos for cb, co in combos]
    patches2 = jnp.concatenate(taps2, axis=-1).reshape(H * W, 16 * Cout)
    y2 = jnp.dot(patches2, w3_ref[...], preferred_element_type=f32)
    y2 = y2 + b3_ref[...]                               # bn2 bias

    out = jnp.maximum(y2 + sc, 0.0)                     # residual add + ReLU
    # Lane-packed store: four phases along lanes; for small Cout additional
    # pixel rows (rpack) are folded into lanes so the store is >=128-lane wide.
    o_ref[...] = out.reshape(1, (H * W) // rpack,
                             rpack * 4 * Cout).astype(o_ref.dtype)


# ---------------------------------------------------------------------------
# Weight packing (done once, in XLA, outside the kernel).  BN scales are
# folded into the weight columns here (the convs have no bias), so the kernel
# only adds the folded bias.
# ---------------------------------------------------------------------------
def _pack_stage1_weights(w1, wsc, s1, b1, ssc, bsc):
    """Pack conv1|sc_conv1 (5x5) + folded BN into one phase-decomposed matmul.

    Returns (W, bias): W has shape (9*Cin, 8*Cout) — rows index the shared 3x3
    im2col taps (r, c, cin) over the 1-padded input; columns index
    (phase a, phase b, [conv1 channels | sc channels]).  Taps a phase does not
    use get zero rows.  BN scale is multiplied into the columns.
    """
    KH, KW, Cin, Cout = w1.shape
    w15 = jnp.concatenate([w1, wsc], axis=-1)           # (5, 5, Cin, 2*Cout)
    s15 = jnp.concatenate([s1, ssc], axis=-1)           # (1, 2*Cout)
    b15 = jnp.concatenate([b1, bsc], axis=-1)
    w15 = w15 * s15.reshape(1, 1, 1, 2 * Cout)          # fold BN scale
    wblk = jnp.zeros((3, 3, Cin, 2, 2, 2 * Cout), w15.dtype)
    for a in range(2):
        for r in range(3):
            kh = 2 * r if a == 0 else 2 * r - 1         # tap row -> kernel row
            if not 0 <= kh < KH:
                continue
            for b in range(2):
                for c in range(3):
                    kw = 2 * c if b == 0 else 2 * c - 1
                    if not 0 <= kw < KW:
                        continue
                    wblk = wblk.at[r, c, :, a, b, :].set(w15[kh, kw])
    w5 = wblk.reshape(9 * Cin, 8 * Cout)
    return w5, jnp.tile(b15, (1, 4))


def _pack_stage2_weights(w2, s2, b2):
    """Pack conv2 (3x3) + folded BN into one phase-form matmul with
    K = 16*Cout: rows index (row source (phase, offset), col source
    (phase, offset), cin); columns index (output phase a, b, cout)."""
    _, _, Cmid, Cout = w2.shape
    w2s = w2 * s2.reshape(1, 1, 1, Cout)                # fold BN scale
    combos = ((0, 1), (0, 2), (1, 0), (1, 1))
    wblk = jnp.zeros((4, 4, Cmid, 2, 2, Cout), w2.dtype)
    for a in range(2):
        for dh in (-1, 0, 1):
            i = combos.index(((a + dh) % 2, (a + dh) // 2 + 1))
            for b in range(2):
                for dw in (-1, 0, 1):
                    j = combos.index(((b + dw) % 2, (b + dw) // 2 + 1))
                    wblk = wblk.at[i, j, :, a, b, :].set(w2s[dh + 1, dw + 1])
    w3 = wblk.reshape(16 * Cmid, 4 * Cout)
    return w3, jnp.tile(b2, (1, 4))


def _nbytes(a):
    return a.size * a.dtype.itemsize


# ---------------------------------------------------------------------------
# UpProj_Block forward
# ---------------------------------------------------------------------------
def upproj_forward(x_nhwc, p, *, matmul_dtype=jnp.bfloat16):
    """x_nhwc: (N, H, W, Cin).  Returns (N, 2H, 2W, Cout)."""
    N, H, W, Cin = x_nhwc.shape
    Cout = p["w1"].shape[-1]

    w5, b5 = _pack_stage1_weights(p["w1"], p["wsc"], p["s1"], p["b1"],
                                  p["ssc"], p["bsc"])
    w3, b3 = _pack_stage2_weights(p["w2"], p["s2"], p["b2"])
    w5 = w5.astype(matmul_dtype)
    w3 = w3.astype(matmul_dtype)

    # Pad (and cast) the input once in the wrapper: one cheap XLA pass over the
    # smallest tensor removes the in-kernel zero fill and the sublane-unaligned
    # halo staging store entirely.
    x_pad = jnp.pad(x_nhwc.astype(matmul_dtype), ((0, 0), (1, 1), (1, 1), (0, 0)))

    # Lane-dense output packing: if 4*Cout < 128, fold rpack consecutive pixel
    # rows into lanes so the kernel's output store is unmasked (>=128 lanes).
    four_cout = 4 * Cout
    if four_cout < 128 and 128 % four_cout == 0 and W % (128 // four_cout) == 0:
        rpack = 128 // four_cout
    else:
        rpack = 1

    kern = functools.partial(_upproj_fused_kernel, H=H, W=W, Cin=Cin, Cout=Cout,
                             rpack=rpack)

    flops = 2 * N * H * W * (9 * Cin * 8 * Cout + 16 * Cout * 4 * Cout)
    bytes_accessed = (_nbytes(x_pad) + _nbytes(w5) + _nbytes(w3)
                      + _nbytes(b5) + _nbytes(b3)
                      + N * H * W * 4 * Cout * x_nhwc.dtype.itemsize)

    out_flat = pl.pallas_call(
        kern,
        out_shape=jax.ShapeDtypeStruct((N, (H * W) // rpack, rpack * 4 * Cout),
                                       x_nhwc.dtype),
        grid_spec=pltpu.PrefetchScalarGridSpec(
            num_scalar_prefetch=0,
            grid=(N,),
            in_specs=[
                pl.BlockSpec((1, H + 2, W + 2, Cin), lambda n: (n, 0, 0, 0)),
                pl.BlockSpec((9 * Cin, 8 * Cout), lambda n: (0, 0)),
                pl.BlockSpec((1, 8 * Cout), lambda n: (0, 0)),
                pl.BlockSpec((16 * Cout, 4 * Cout), lambda n: (0, 0)),
                pl.BlockSpec((1, 4 * Cout), lambda n: (0, 0)),
            ],
            out_specs=pl.BlockSpec((1, (H * W) // rpack, rpack * 4 * Cout),
                                   lambda n: (n, 0, 0)),
            scratch_shapes=[
                # Padded conv1-activation phases, held in matmul dtype.
                pltpu.VMEM((4, H + 2, W + 2, Cout), matmul_dtype),
            ],
        ),
        compiler_params=pltpu.CompilerParams(
            dimension_semantics=("parallel",),
            vmem_limit_bytes=32 * 1024 * 1024,
        ),
        cost_estimate=pl.CostEstimate(flops=flops, transcendentals=0,
                                      bytes_accessed=bytes_accessed),
    )(x_pad, w5, b5, w3, b3)

    # De-interleave the packed pixels / output phases (pure layout plumbing):
    # (N, H*W/rpack, (rpack, a, b, c)) -> (N, 2H, 2W, Cout).
    out = out_flat.reshape(N, H, W // rpack, rpack, 2, 2, Cout)
    out = out.transpose(0, 1, 4, 2, 3, 5, 6).reshape(N, 2 * H, 2 * W, Cout)
    return out


# ---------------------------------------------------------------------------
# Parameters (deterministic, synthetic) + pure-JAX reference
# ---------------------------------------------------------------------------
def init_params(key, cin, cout, eps=1e-5):
    ks = jax.random.split(key, 15)

    def bn_fold(kg, kb, km, kv):
        gamma = 1.0 + 0.1 * jax.random.normal(kg, (cout,), jnp.float32)
        beta = 0.1 * jax.random.normal(kb, (cout,), jnp.float32)
        mean = 0.1 * jax.random.normal(km, (cout,), jnp.float32)
        var = 0.5 + jax.random.uniform(kv, (cout,), jnp.float32)
        scale = gamma / jnp.sqrt(var + eps)
        bias = beta - mean * scale
        return scale.reshape(1, cout), bias.reshape(1, cout)

    p = {}
    p["w1"] = 0.1 * jax.random.normal(ks[0], (5, 5, cin, cout), jnp.float32)
    p["w2"] = 0.1 * jax.random.normal(ks[1], (3, 3, cout, cout), jnp.float32)
    p["wsc"] = 0.1 * jax.random.normal(ks[2], (5, 5, cin, cout), jnp.float32)
    p["s1"], p["b1"] = bn_fold(ks[3], ks[4], ks[5], ks[6])
    p["s2"], p["b2"] = bn_fold(ks[7], ks[8], ks[9], ks[10])
    p["ssc"], p["bsc"] = bn_fold(ks[11], ks[12], ks[13], ks[14])
    return p


def _conv_ref(x, w):
    k0, k1 = w.shape[0] // 2, w.shape[1] // 2
    return lax.conv_general_dilated(
        x, w, window_strides=(1, 1),
        padding=((k0, k0), (k1, k1)),
        dimension_numbers=("NHWC", "HWIO", "NHWC"))


def upproj_reference(x, p):
    N, H, W, C = x.shape
    x_up = jnp.zeros((N, 2 * H, 2 * W, C), x.dtype).at[:, ::2, ::2, :].set(x)
    out = jnp.maximum(_conv_ref(x_up, p["w1"]) * p["s1"] + p["b1"], 0.0)
    out = _conv_ref(out, p["w2"]) * p["s2"] + p["b2"]
    sc = _conv_ref(x_up, p["wsc"]) * p["ssc"] + p["bsc"]
    return jnp.maximum(out + sc, 0.0)


# ---------------------------------------------------------------------------
if __name__ == "__main__":
    key = jax.random.PRNGKey(0)
    kx, kp = jax.random.split(key)

    # NHWC input; Cout=32 so 4*Cout=128 (lane-dense output store) and
    # 8*Cout=256 fills the 256-wide MXU of v6e/v7x.
    N, Cin, Cout, H, W = 2, 4, 32, 16, 16
    x = jax.random.normal(kx, (N, H, W, Cin), jnp.float32)    # (2, 16, 16, 4)
    params = init_params(kp, Cin, Cout)

    fwd = jax.jit(upproj_forward, static_argnames=("matmul_dtype",))

    ref = jax.block_until_ready(upproj_reference(x, params))

    # f32 matmul path: tight correctness check.
    out_f32 = jax.block_until_ready(fwd(x, params, matmul_dtype=jnp.float32))
    assert out_f32.shape == (N, 2 * H, 2 * W, Cout), out_f32.shape
    if not jnp.allclose(out_f32, ref, atol=1e-3, rtol=1e-3):
        raise AssertionError("Pallas kernel (f32 matmul) mismatches JAX reference")

    # Default path: bf16 MXU matmuls with f32 accumulation; looser tolerance.
    out = jax.block_until_ready(fwd(x, params))
    assert out.shape == (N, 2 * H, 2 * W, Cout), out.shape
    if not jnp.allclose(out, ref, atol=6e-2, rtol=6e-2):
        raise AssertionError("Pallas kernel (bf16 matmul) mismatches JAX reference")

    print("KERNEL_OK")
</pallas_src>

<mosaic_0001>
module attributes {stable_mosaic.version = 11 : i64} {
  func.func @_upproj_fused_kernel(%arg0: i32, %arg1: memref<1x18x18x4xf32, #tpu.memory_space<vmem>>, %arg2: memref<36x256xf32, #tpu.memory_space<vmem>>, %arg3: memref<1x256xf32, #tpu.memory_space<vmem>>, %arg4: memref<512x128xf32, #tpu.memory_space<vmem>>, %arg5: memref<1x128xf32, #tpu.memory_space<vmem>>, %arg6: memref<1x256x128xf32, #tpu.memory_space<vmem>>, %arg7: memref<4x18x18x32xf32, #tpu.memory_space<vmem>>) attributes {dimension_semantics = [#tpu.dimension_semantics<parallel>], iteration_bounds = array<i64: 2>, scalar_prefetch = 0 : i64, scratch_operands = 1 : i64, tpu.core_type = #tpu.core_type<tc>, window_params = [{transform_indices = @transform_0, window_bounds = array<i64: 1, 18, 18, 4>}, {pipeline_mode = #tpu.pipeline_mode<synchronous>, transform_indices = @transform_1, window_bounds = array<i64: 36, 256>}, {pipeline_mode = #tpu.pipeline_mode<synchronous>, transform_indices = @transform_2, window_bounds = array<i64: 1, 256>}, {pipeline_mode = #tpu.pipeline_mode<synchronous>, transform_indices = @transform_3, window_bounds = array<i64: 512, 128>}, {pipeline_mode = #tpu.pipeline_mode<synchronous>, transform_indices = @transform_4, window_bounds = array<i64: 1, 128>}, {transform_indices = @transform_5, window_bounds = array<i64: 1, 256, 128>}]} {
    %c0 = arith.constant 0 : index
    %c0_0 = arith.constant 0 : index
    %c0_1 = arith.constant 0 : index
    %c0_2 = arith.constant 0 : index
    %0 = vector.load %arg1[%c0, %c0_0, %c0_1, %c0_2] : memref<1x18x18x4xf32, #tpu.memory_space<vmem>>, vector<1x18x18x4xf32>
    %1 = vector.shape_cast %0 : vector<1x18x18x4xf32> to vector<18x18x4xf32>
    %2 = vector.extract_strided_slice %1 {offsets = [0, 0, 0], sizes = [16, 16, 4], strides = [1, 1, 1]} : vector<18x18x4xf32> to vector<16x16x4xf32>
    %3 = vector.extract_strided_slice %1 {offsets = [0, 1, 0], sizes = [16, 16, 4], strides = [1, 1, 1]} : vector<18x18x4xf32> to vector<16x16x4xf32>
    %4 = vector.extract_strided_slice %1 {offsets = [0, 2, 0], sizes = [16, 16, 4], strides = [1, 1, 1]} : vector<18x18x4xf32> to vector<16x16x4xf32>
    %5 = vector.extract_strided_slice %1 {offsets = [1, 0, 0], sizes = [16, 16, 4], strides = [1, 1, 1]} : vector<18x18x4xf32> to vector<16x16x4xf32>
    %6 = vector.extract_strided_slice %1 {offsets = [1, 1, 0], sizes = [16, 16, 4], strides = [1, 1, 1]} : vector<18x18x4xf32> to vector<16x16x4xf32>
    %7 = vector.extract_strided_slice %1 {offsets = [1, 2, 0], sizes = [16, 16, 4], strides = [1, 1, 1]} : vector<18x18x4xf32> to vector<16x16x4xf32>
    %8 = vector.extract_strided_slice %1 {offsets = [2, 0, 0], sizes = [16, 16, 4], strides = [1, 1, 1]} : vector<18x18x4xf32> to vector<16x16x4xf32>
    %9 = vector.extract_strided_slice %1 {offsets = [2, 1, 0], sizes = [16, 16, 4], strides = [1, 1, 1]} : vector<18x18x4xf32> to vector<16x16x4xf32>
    %10 = vector.extract_strided_slice %1 {offsets = [2, 2, 0], sizes = [16, 16, 4], strides = [1, 1, 1]} : vector<18x18x4xf32> to vector<16x16x4xf32>
    %11 = tpu.concatenate %2, %3, %4, %5, %6, %7, %8, %9, %10 in 2 : vector<16x16x4xf32>, vector<16x16x4xf32>, vector<16x16x4xf32>, vector<16x16x4xf32>, vector<16x16x4xf32>, vector<16x16x4xf32>, vector<16x16x4xf32>, vector<16x16x4xf32>, vector<16x16x4xf32> -> vector<16x16x36xf32>
    %12 = vector.shape_cast %11 : vector<16x16x36xf32> to vector<256x36xf32>
    %c0_3 = arith.constant 0 : index
    %c0_4 = arith.constant 0 : index
    %13 = vector.load %arg2[%c0_3, %c0_4] : memref<36x256xf32, #tpu.memory_space<vmem>>, vector<36x256xf32>
    %cst = arith.constant dense<0.000000e+00> : vector<256x256xf32>
    %14 = tpu.matmul %12, %13, %cst {dimension_numbers = #tpu.dot_dimension_numbers<[1], [0], [0], [1], [0, 0, 1, 1], [], []>} : vector<256x36xf32>, vector<36x256xf32>, vector<256x256xf32> -> vector<256x256xf32>
    %c0_5 = arith.constant 0 : index
    %c0_6 = arith.constant 0 : index
    %15 = vector.load %arg3[%c0_5, %c0_6] : memref<1x256xf32, #tpu.memory_space<vmem>>, vector<1x256xf32>
    %16 = vector.broadcast %15 : vector<1x256xf32> to vector<256x256xf32>
    %17 = arith.addf %14, %16 : vector<256x256xf32>
    %cst_7 = arith.constant 0.000000e+00 : f32
    %18 = vector.broadcast %cst_7 : f32 to vector<1x18x32xf32>
    %cst_8 = arith.constant 0.000000e+00 : f32
    %19 = vector.broadcast %cst_8 : f32 to vector<16x1x32xf32>
    %c0_9 = arith.constant 0 : index
    %c0_10 = arith.constant 0 : index
    %c0_11 = arith.constant 0 : index
    %c0_12 = arith.constant 0 : index
    %20 = vector.load %arg7[%c0_9, %c0_10, %c0_11, %c0_12] : memref<4x18x18x32xf32, #tpu.memory_space<vmem>>, vector<1x1x18x32xf32>
    %21 = vector.shape_cast %20 : vector<1x1x18x32xf32> to vector<1x18x32xf32>
    %22 = vector.shape_cast %18 : vector<1x18x32xf32> to vector<1x1x18x32xf32>
    tpu.vector_store %arg7[%c0_9, %c0_10, %c0_11, %c0_12], %22 {strides = array<i32>} : memref<4x18x18x32xf32, #tpu.memory_space<vmem>>, vector<1x1x18x32xf32>,
    %c0_13 = arith.constant 0 : index
    %c17 = arith.constant 17 : index
    %c0_14 = arith.constant 0 : index
    %c0_15 = arith.constant 0 : index
    %23 = vector.load %arg7[%c0_13, %c17, %c0_14, %c0_15] : memref<4x18x18x32xf32, #tpu.memory_space<vmem>>, vector<1x1x18x32xf32>
    %24 = vector.shape_cast %23 : vector<1x1x18x32xf32> to vector<1x18x32xf32>
    %25 = vector.shape_cast %18 : vector<1x18x32xf32> to vector<1x1x18x32xf32>
    tpu.vector_store %arg7[%c0_13, %c17, %c0_14, %c0_15], %25 {strides = array<i32>} : memref<4x18x18x32xf32, #tpu.memory_space<vmem>>, vector<1x1x18x32xf32>,
    %c0_16 = arith.constant 0 : index
    %c1 = arith.constant 1 : index
    %c0_17 = arith.constant 0 : index
    %c0_18 = arith.constant 0 : index
    %26 = vector.load %arg7[%c0_16, %c1, %c0_17, %c0_18] : memref<4x18x18x32xf32, #tpu.memory_space<vmem>>, vector<1x16x1x32xf32>
    %27 = vector.shape_cast %26 : vector<1x16x1x32xf32> to vector<16x1x32xf32>
    %28 = vector.shape_cast %19 : vector<16x1x32xf32> to vector<1x16x1x32xf32>
    tpu.vector_store %arg7[%c0_16, %c1, %c0_17, %c0_18], %28 {strides = array<i32>} : memref<4x18x18x32xf32, #tpu.memory_space<vmem>>, vector<1x16x1x32xf32>,
    %c0_19 = arith.constant 0 : index
    %c1_20 = arith.constant 1 : index
    %c17_21 = arith.constant 17 : index
    %c0_22 = arith.constant 0 : index
    %29 = vector.load %arg7[%c0_19, %c1_20, %c17_21, %c0_22] : memref<4x18x18x32xf32, #tpu.memory_space<vmem>>, vector<1x16x1x32xf32>
    %30 = vector.shape_cast %29 : vector<1x16x1x32xf32> to vector<16x1x32xf32>
    %31 = vector.shape_cast %19 : vector<16x1x32xf32> to vector<1x16x1x32xf32>
    tpu.vector_store %arg7[%c0_19, %c1_20, %c17_21, %c0_22], %31 {strides = array<i32>} : memref<4x18x18x32xf32, #tpu.memory_space<vmem>>, vector<1x16x1x32xf32>,
    %c1_23 = arith.constant 1 : index
    %c0_24 = arith.constant 0 : index
    %c0_25 = arith.constant 0 : index
    %c0_26 = arith.constant 0 : index
    %32 = vector.load %arg7[%c1_23, %c0_24, %c0_25, %c0_26] : memref<4x18x18x32xf32, #tpu.memory_space<vmem>>, vector<1x1x18x32xf32>
    %33 = vector.shape_cast %32 : vector<1x1x18x32xf32> to vector<1x18x32xf32>
    %34 = vector.shape_cast %18 : vector<1x18x32xf32> to vector<1x1x18x32xf32>
    tpu.vector_store %arg7[%c1_23, %c0_24, %c0_25, %c0_26], %34 {strides = array<i32>} : memref<4x18x18x32xf32, #tpu.memory_space<vmem>>, vector<1x1x18x32xf32>,
    %c1_27 = arith.constant 1 : index
    %c17_28 = arith.constant 17 : index
    %c0_29 = arith.constant 0 : index
    %c0_30 = arith.constant 0 : index
    %35 = vector.load %arg7[%c1_27, %c17_28, %c0_29, %c0_30] : memref<4x18x18x32xf32, #tpu.memory_space<vmem>>, vector<1x1x18x32xf32>
    %36 = vector.shape_cast %35 : vector<1x1x18x32xf32> to vector<1x18x32xf32>
    %37 = vector.shape_cast %18 : vector<1x18x32xf32> to vector<1x1x18x32xf32>
    tpu.vector_store %arg7[%c1_27, %c17_28, %c0_29, %c0_30], %37 {strides = array<i32>} : memref<4x18x18x32xf32, #tpu.memory_space<vmem>>, vector<1x1x18x32xf32>,
    %c1_31 = arith.constant 1 : index
    %c1_32 = arith.constant 1 : index
    %c0_33 = arith.constant 0 : index
    %c0_34 = arith.constant 0 : index
    %38 = vector.load %arg7[%c1_31, %c1_32, %c0_33, %c0_34] : memref<4x18x18x32xf32, #tpu.memory_space<vmem>>, vector<1x16x1x32xf32>
    %39 = vector.shape_cast %38 : vector<1x16x1x32xf32> to vector<16x1x32xf32>
    %40 = vector.shape_cast %19 : vector<16x1x32xf32> to vector<1x16x1x32xf32>
    tpu.vector_store %arg7[%c1_31, %c1_32, %c0_33, %c0_34], %40 {strides = array<i32>} : memref<4x18x18x32xf32, #tpu.memory_space<vmem>>, vector<1x16x1x32xf32>,
    %c1_35 = arith.constant 1 : index
    %c1_36 = arith.constant 1 : index
    %c17_37 = arith.constant 17 : index
    %c0_38 = arith.constant 0 : index
    %41 = vector.load %arg7[%c1_35, %c1_36, %c17_37, %c0_38] : memref<4x18x18x32xf32, #tpu.memory_space<vmem>>, vector<1x16x1x32xf32>
    %42 = vector.shape_cast %41 : vector<1x16x1x32xf32> to vector<16x1x32xf32>
    %43 = vector.shape_cast %19 : vector<16x1x32xf32> to vector<1x16x1x32xf32>
    tpu.vector_store %arg7[%c1_35, %c1_36, %c17_37, %c0_38], %43 {strides = array<i32>} : memref<4x18x18x32xf32, #tpu.memory_space<vmem>>, vector<1x16x1x32xf32>,
    %c2 = arith.constant 2 : index
    %c0_39 = arith.constant 0 : index
    %c0_40 = arith.constant 0 : index
    %c0_41 = arith.constant 0 : index
    %44 = vector.load %arg7[%c2, %c0_39, %c0_40, %c0_41] : memref<4x18x18x32xf32, #tpu.memory_space<vmem>>, vector<1x1x18x32xf32>
    %45 = vector.shape_cast %44 : vector<1x1x18x32xf32> to vector<1x18x32xf32>
    %46 = vector.shape_cast %18 : vector<1x18x32xf32> to vector<1x1x18x32xf32>
    tpu.vector_store %arg7[%c2, %c0_39, %c0_40, %c0_41], %46 {strides = array<i32>} : memref<4x18x18x32xf32, #tpu.memory_space<vmem>>, vector<1x1x18x32xf32>,
    %c2_42 = arith.constant 2 : index
    %c17_43 = arith.constant 17 : index
    %c0_44 = arith.constant 0 : index
    %c0_45 = arith.constant 0 : index
    %47 = vector.load %arg7[%c2_42, %c17_43, %c0_44, %c0_45] : memref<4x18x18x32xf32, #tpu.memory_space<vmem>>, vector<1x1x18x32xf32>
    %48 = vector.shape_cast %47 : vector<1x1x18x32xf32> to vector<1x18x32xf32>
    %49 = vector.shape_cast %18 : vector<1x18x32xf32> to vector<1x1x18x32xf32>
    tpu.vector_store %arg7[%c2_42, %c17_43, %c0_44, %c0_45], %49 {strides = array<i32>} : memref<4x18x18x32xf32, #tpu.memory_space<vmem>>, vector<1x1x18x32xf32>,
    %c2_46 = arith.constant 2 : index
    %c1_47 = arith.constant 1 : index
    %c0_48 = arith.constant 0 : index
    %c0_49 = arith.constant 0 : index
    %50 = vector.load %arg7[%c2_46, %c1_47, %c0_48, %c0_49] : memref<4x18x18x32xf32, #tpu.memory_space<vmem>>, vector<1x16x1x32xf32>
    %51 = vector.shape_cast %50 : vector<1x16x1x32xf32> to vector<16x1x32xf32>
    %52 = vector.shape_cast %19 : vector<16x1x32xf32> to vector<1x16x1x32xf32>
    tpu.vector_store %arg7[%c2_46, %c1_47, %c0_48, %c0_49], %52 {strides = array<i32>} : memref<4x18x18x32xf32, #tpu.memory_space<vmem>>, vector<1x16x1x32xf32>,
    %c2_50 = arith.constant 2 : index
    %c1_51 = arith.constant 1 : index
    %c17_52 = arith.constant 17 : index
    %c0_53 = arith.constant 0 : index
    %53 = vector.load %arg7[%c2_50, %c1_51, %c17_52, %c0_53] : memref<4x18x18x32xf32, #tpu.memory_space<vmem>>, vector<1x16x1x32xf32>
    %54 = vector.shape_cast %53 : vector<1x16x1x32xf32> to vector<16x1x32xf32>
    %55 = vector.shape_cast %19 : vector<16x1x32xf32> to vector<1x16x1x32xf32>
    tpu.vector_store %arg7[%c2_50, %c1_51, %c17_52, %c0_53], %55 {strides = array<i32>} : memref<4x18x18x32xf32, #tpu.memory_space<vmem>>, vector<1x16x1x32xf32>,
    %c3 = arith.constant 3 : index
    %c0_54 = arith.constant 0 : index
    %c0_55 = arith.constant 0 : index
    %c0_56 = arith.constant 0 : index
    %56 = vector.load %arg7[%c3, %c0_54, %c0_55, %c0_56] : memref<4x18x18x32xf32, #tpu.memory_space<vmem>>, vector<1x1x18x32xf32>
    %57 = vector.shape_cast %56 : vector<1x1x18x32xf32> to vector<1x18x32xf32>
    %58 = vector.shape_cast %18 : vector<1x18x32xf32> to vector<1x1x18x32xf32>
    tpu.vector_store %arg7[%c3, %c0_54, %c0_55, %c0_56], %58 {strides = array<i32>} : memref<4x18x18x32xf32, #tpu.memory_space<vmem>>, vector<1x1x18x32xf32>,
    %c3_57 = arith.constant 3 : index
    %c17_58 = arith.constant 17 : index
    %c0_59 = arith.constant 0 : index
    %c0_60 = arith.constant 0 : index
    %59 = vector.load %arg7[%c3_57, %c17_58, %c0_59, %c0_60] : memref<4x18x18x32xf32, #tpu.memory_space<vmem>>, vector<1x1x18x32xf32>
    %60 = vector.shape_cast %59 : vector<1x1x18x32xf32> to vector<1x18x32xf32>
    %61 = vector.shape_cast %18 : vector<1x18x32xf32> to vector<1x1x18x32xf32>
    tpu.vector_store %arg7[%c3_57, %c17_58, %c0_59, %c0_60], %61 {strides = array<i32>} : memref<4x18x18x32xf32, #tpu.memory_space<vmem>>, vector<1x1x18x32xf32>,
    %c3_61 = arith.constant 3 : index
    %c1_62 = arith.constant 1 : index
    %c0_63 = arith.constant 0 : index
    %c0_64 = arith.constant 0 : index
    %62 = vector.load %arg7[%c3_61, %c1_62, %c0_63, %c0_64] : memref<4x18x18x32xf32, #tpu.memory_space<vmem>>, vector<1x16x1x32xf32>
    %63 = vector.shape_cast %62 : vector<1x16x1x32xf32> to vector<16x1x32xf32>
    %64 = vector.shape_cast %19 : vector<16x1x32xf32> to vector<1x16x1x32xf32>
    tpu.vector_store %arg7[%c3_61, %c1_62, %c0_63, %c0_64], %64 {strides = array<i32>} : memref<4x18x18x32xf32, #tpu.memory_space<vmem>>, vector<1x16x1x32xf32>,
    %c3_65 = arith.constant 3 : index
    %c1_66 = arith.constant 1 : index
    %c17_67 = arith.constant 17 : index
    %c0_68 = arith.constant 0 : index
    %65 = vector.load %arg7[%c3_65, %c1_66, %c17_67, %c0_68] : memref<4x18x18x32xf32, #tpu.memory_space<vmem>>, vector<1x16x1x32xf32>
    %66 = vector.shape_cast %65 : vector<1x16x1x32xf32> to vector<16x1x32xf32>
    %67 = vector.shape_cast %19 : vector<16x1x32xf32> to vector<1x16x1x32xf32>
    tpu.vector_store %arg7[%c3_65, %c1_66, %c17_67, %c0_68], %67 {strides = array<i32>} : memref<4x18x18x32xf32, #tpu.memory_space<vmem>>, vector<1x16x1x32xf32>,
    %68 = vector.extract_strided_slice %17 {offsets = [0, 0], sizes = [256, 32], strides = [1, 1]} : vector<256x256xf32> to vector<256x32xf32>
    %cst_69 = arith.constant 0.000000e+00 : f32
    %69 = vector.broadcast %cst_69 : f32 to vector<256x32xf32>
    %70 = arith.maximumf %68, %69 : vector<256x32xf32>
    %71 = vector.extract_strided_slice %17 {offsets = [0, 32], sizes = [256, 32], strides = [1, 1]} : vector<256x256xf32> to vector<256x32xf32>
    %72 = vector.shape_cast %70 : vector<256x32xf32> to vector<16x16x32xf32>
    %c0_70 = arith.constant 0 : index
    %c1_71 = arith.constant 1 : index
    %c1_72 = arith.constant 1 : index
    %c0_73 = arith.constant 0 : index
    %73 = vector.load %arg7[%c0_70, %c1_71, %c1_72, %c0_73] : memref<4x18x18x32xf32, #tpu.memory_space<vmem>>, vector<1x16x16x32xf32>
    %74 = vector.shape_cast %73 : vector<1x16x16x32xf32> to vector<16x16x32xf32>
    %75 = vector.shape_cast %72 : vector<16x16x32xf32> to vector<1x16x16x32xf32>
    tpu.vector_store %arg7[%c0_70, %c1_71, %c1_72, %c0_73], %75 {strides = array<i32>} : memref<4x18x18x32xf32, #tpu.memory_space<vmem>>, vector<1x16x16x32xf32>,
    %76 = vector.extract_strided_slice %17 {offsets = [0, 64], sizes = [256, 32], strides = [1, 1]} : vector<256x256xf32> to vector<256x32xf32>
    %cst_74 = arith.constant 0.000000e+00 : f32
    %77 = vector.broadcast %cst_74 : f32 to vector<256x32xf32>
    %78 = arith.maximumf %76, %77 : vector<256x32xf32>
    %79 = vector.extract_strided_slice %17 {offsets = [0, 96], sizes = [256, 32], strides = [1, 1]} : vector<256x256xf32> to vector<256x32xf32>
    %80 = vector.shape_cast %78 : vector<256x32xf32> to vector<16x16x32xf32>
    %c1_75 = arith.constant 1 : index
    %c1_76 = arith.constant 1 : index
    %c1_77 = arith.constant 1 : index
    %c0_78 = arith.constant 0 : index
    %81 = vector.load %arg7[%c1_75, %c1_76, %c1_77, %c0_78] : memref<4x18x18x32xf32, #tpu.memory_space<vmem>>, vector<1x16x16x32xf32>
    %82 = vector.shape_cast %81 : vector<1x16x16x32xf32> to vector<16x16x32xf32>
    %83 = vector.shape_cast %80 : vector<16x16x32xf32> to vector<1x16x16x32xf32>
    tpu.vector_store %arg7[%c1_75, %c1_76, %c1_77, %c0_78], %83 {strides = array<i32>} : memref<4x18x18x32xf32, #tpu.memory_space<vmem>>, vector<1x16x16x32xf32>,
    %84 = vector.extract_strided_slice %17 {offsets = [0, 128], sizes = [256, 32], strides = [1, 1]} : vector<256x256xf32> to vector<256x32xf32>
    %cst_79 = arith.constant 0.000000e+00 : f32
    %85 = vector.broadcast %cst_79 : f32 to vector<256x32xf32>
    %86 = arith.maximumf %84, %85 : vector<256x32xf32>
    %87 = vector.extract_strided_slice %17 {offsets = [0, 160], sizes = [256, 32], strides = [1, 1]} : vector<256x256xf32> to vector<256x32xf32>
    %88 = vector.shape_cast %86 : vector<256x32xf32> to vector<16x16x32xf32>
    %c2_80 = arith.constant 2 : index
    %c1_81 = arith.constant 1 : index
    %c1_82 = arith.constant 1 : index
    %c0_83 = arith.constant 0 : index
    %89 = vector.load %arg7[%c2_80, %c1_81, %c1_82, %c0_83] : memref<4x18x18x32xf32, #tpu.memory_space<vmem>>, vector<1x16x16x32xf32>
    %90 = vector.shape_cast %89 : vector<1x16x16x32xf32> to vector<16x16x32xf32>
    %91 = vector.shape_cast %88 : vector<16x16x32xf32> to vector<1x16x16x32xf32>
    tpu.vector_store %arg7[%c2_80, %c1_81, %c1_82, %c0_83], %91 {strides = array<i32>} : memref<4x18x18x32xf32, #tpu.memory_space<vmem>>, vector<1x16x16x32xf32>,
    %92 = vector.extract_strided_slice %17 {offsets = [0, 192], sizes = [256, 32], strides = [1, 1]} : vector<256x256xf32> to vector<256x32xf32>
    %cst_84 = arith.constant 0.000000e+00 : f32
    %93 = vector.broadcast %cst_84 : f32 to vector<256x32xf32>
    %94 = arith.maximumf %92, %93 : vector<256x32xf32>
    %95 = vector.extract_strided_slice %17 {offsets = [0, 224], sizes = [256, 32], strides = [1, 1]} : vector<256x256xf32> to vector<256x32xf32>
    %96 = vector.shape_cast %94 : vector<256x32xf32> to vector<16x16x32xf32>
    %c3_85 = arith.constant 3 : index
    %c1_86 = arith.constant 1 : index
    %c1_87 = arith.constant 1 : index
    %c0_88 = arith.constant 0 : index
    %97 = vector.load %arg7[%c3_85, %c1_86, %c1_87, %c0_88] : memref<4x18x18x32xf32, #tpu.memory_space<vmem>>, vector<1x16x16x32xf32>
    %98 = vector.shape_cast %97 : vector<1x16x16x32xf32> to vector<16x16x32xf32>
    %99 = vector.shape_cast %96 : vector<16x16x32xf32> to vector<1x16x16x32xf32>
    tpu.vector_store %arg7[%c3_85, %c1_86, %c1_87, %c0_88], %99 {strides = array<i32>} : memref<4x18x18x32xf32, #tpu.memory_space<vmem>>, vector<1x16x16x32xf32>,
    %100 = tpu.concatenate %71, %79, %87, %95 in 1 : vector<256x32xf32>, vector<256x32xf32>, vector<256x32xf32>, vector<256x32xf32> -> vector<256x128xf32>
    %c0_89 = arith.constant 0 : index
    %c1_90 = arith.constant 1 : index
    %c1_91 = arith.constant 1 : index
    %c0_92 = arith.constant 0 : index
    %101 = vector.load %arg7[%c0_89, %c1_90, %c1_91, %c0_92] : memref<4x18x18x32xf32, #tpu.memory_space<vmem>>, vector<1x16x16x32xf32>
    %102 = vector.shape_cast %101 : vector<1x16x16x32xf32> to vector<16x16x32xf32>
    %c0_93 = arith.constant 0 : index
    %c1_94 = arith.constant 1 : index
    %c2_95 = arith.constant 2 : index
    %c0_96 = arith.constant 0 : index
    %103 = vector.load %arg7[%c0_93, %c1_94, %c2_95, %c0_96] : memref<4x18x18x32xf32, #tpu.memory_space<vmem>>, vector<1x16x16x32xf32>
    %104 = vector.shape_cast %103 : vector<1x16x16x32xf32> to vector<16x16x32xf32>
    %c1_97 = arith.constant 1 : index
    %c1_98 = arith.constant 1 : index
    %c0_99 = arith.constant 0 : index
    %c0_100 = arith.constant 0 : index
    %105 = vector.load %arg7[%c1_97, %c1_98, %c0_99, %c0_100] : memref<4x18x18x32xf32, #tpu.memory_space<vmem>>, vector<1x16x16x32xf32>
    %106 = vector.shape_cast %105 : vector<1x16x16x32xf32> to vector<16x16x32xf32>
    %c1_101 = arith.constant 1 : index
    %c1_102 = arith.constant 1 : index
    %c1_103 = arith.constant 1 : index
    %c0_104 = arith.constant 0 : index
    %107 = vector.load %arg7[%c1_101, %c1_102, %c1_103, %c0_104] : memref<4x18x18x32xf32, #tpu.memory_space<vmem>>, vector<1x16x16x32xf32>
    %108 = vector.shape_cast %107 : vector<1x16x16x32xf32> to vector<16x16x32xf32>
    %c0_105 = arith.constant 0 : index
    %c2_106 = arith.constant 2 : index
    %c1_107 = arith.constant 1 : index
    %c0_108 = arith.constant 0 : index
    %109 = vector.load %arg7[%c0_105, %c2_106, %c1_107, %c0_108] : memref<4x18x18x32xf32, #tpu.memory_space<vmem>>, vector<1x16x16x32xf32>
    %110 = vector.shape_cast %109 : vector<1x16x16x32xf32> to vector<16x16x32xf32>
    %c0_109 = arith.constant 0 : index
    %c2_110 = arith.constant 2 : index
    %c2_111 = arith.constant 2 : index
    %c0_112 = arith.constant 0 : index
    %111 = vector.load %arg7[%c0_109, %c2_110, %c2_111, %c0_112] : memref<4x18x18x32xf32, #tpu.memory_space<vmem>>, vector<1x16x16x32xf32>
    %112 = vector.shape_cast %111 : vector<1x16x16x32xf32> to vector<16x16x32xf32>
    %c1_113 = arith.constant 1 : index
    %c2_114 = arith.constant 2 : index
    %c0_115 = arith.constant 0 : index
    %c0_116 = arith.constant 0 : index
    %113 = vector.load %arg7[%c1_113, %c2_114, %c0_115, %c0_116] : memref<4x18x18x32xf32, #tpu.memory_space<vmem>>, vector<1x16x16x32xf32>
    %114 = vector.shape_cast %113 : vector<1x16x16x32xf32> to vector<16x16x32xf32>
    %c1_117 = arith.constant 1 : index
    %c2_118 = arith.constant 2 : index
    %c1_119 = arith.constant 1 : index
    %c0_120 = arith.constant 0 : index
    %115 = vector.load %arg7[%c1_117, %c2_118, %c1_119, %c0_120] : memref<4x18x18x32xf32, #tpu.memory_space<vmem>>, vector<1x16x16x32xf32>
    %116 = vector.shape_cast %115 : vector<1x16x16x32xf32> to vector<16x16x32xf32>
    %c2_121 = arith.constant 2 : index
    %c0_122 = arith.constant 0 : index
    %c1_123 = arith.constant 1 : index
    %c0_124 = arith.constant 0 : index
    %117 = vector.load %arg7[%c2_121, %c0_122, %c1_123, %c0_124] : memref<4x18x18x32xf32, #tpu.memory_space<vmem>>, vector<1x16x16x32xf32>
    %118 = vector.shape_cast %117 : vector<1x16x16x32xf32> to vector<16x16x32xf32>
    %c2_125 = arith.constant 2 : index
    %c0_126 = arith.constant 0 : index
    %c2_127 = arith.constant 2 : index
    %c0_128 = arith.constant 0 : index
    %119 = vector.load %arg7[%c2_125, %c0_126, %c2_127, %c0_128] : memref<4x18x18x32xf32, #tpu.memory_space<vmem>>, vector<1x16x16x32xf32>
    %120 = vector.shape_cast %119 : vector<1x16x16x32xf32> to vector<16x16x32xf32>
    %c3_129 = arith.constant 3 : index
    %c0_130 = arith.constant 0 : index
    %c0_131 = arith.constant 0 : index
    %c0_132 = arith.constant 0 : index
    %121 = vector.load %arg7[%c3_129, %c0_130, %c0_131, %c0_132] : memref<4x18x18x32xf32, #tpu.memory_space<vmem>>, vector<1x16x16x32xf32>
    %122 = vector.shape_cast %121 : vector<1x16x16x32xf32> to vector<16x16x32xf32>
    %c3_133 = arith.constant 3 : index
    %c0_134 = arith.constant 0 : index
    %c1_135 = arith.constant 1 : index
    %c0_136 = arith.constant 0 : index
    %123 = vector.load %arg7[%c3_133, %c0_134, %c1_135, %c0_136] : memref<4x18x18x32xf32, #tpu.memory_space<vmem>>, vector<1x16x16x32xf32>
    %124 = vector.shape_cast %123 : vector<1x16x16x32xf32> to vector<16x16x32xf32>
    %c2_137 = arith.constant 2 : index
    %c1_138 = arith.constant 1 : index
    %c1_139 = arith.constant 1 : index
    %c0_140 = arith.constant 0 : index
    %125 = vector.load %arg7[%c2_137, %c1_138, %c1_139, %c0_140] : memref<4x18x18x32xf32, #tpu.memory_space<vmem>>, vector<1x16x16x32xf32>
    %126 = vector.shape_cast %125 : vector<1x16x16x32xf32> to vector<16x16x32xf32>
    %c2_141 = arith.constant 2 : index
    %c1_142 = arith.constant 1 : index
    %c2_143 = arith.constant 2 : index
    %c0_144 = arith.constant 0 : index
    %127 = vector.load %arg7[%c2_141, %c1_142, %c2_143, %c0_144] : memref<4x18x18x32xf32, #tpu.memory_space<vmem>>, vector<1x16x16x32xf32>
    %128 = vector.shape_cast %127 : vector<1x16x16x32xf32> to vector<16x16x32xf32>
    %c3_145 = arith.constant 3 : index
    %c1_146 = arith.constant 1 : index
    %c0_147 = arith.constant 0 : index
    %c0_148 = arith.constant 0 : index
    %129 = vector.load %arg7[%c3_145, %c1_146, %c0_147, %c0_148] : memref<4x18x18x32xf32, #tpu.memory_space<vmem>>, vector<1x16x16x32xf32>
    %130 = vector.shape_cast %129 : vector<1x16x16x32xf32> to vector<16x16x32xf32>
    %c3_149 = arith.constant 3 : index
    %c1_150 = arith.constant 1 : index
    %c1_151 = arith.constant 1 : index
    %c0_152 = arith.constant 0 : index
    %131 = vector.load %arg7[%c3_149, %c1_150, %c1_151, %c0_152] : memref<4x18x18x32xf32, #tpu.memory_space<vmem>>, vector<1x16x16x32xf32>
    %132 = vector.shape_cast %131 : vector<1x16x16x32xf32> to vector<16x16x32xf32>
    %133 = tpu.concatenate %102, %104, %106, %108, %110, %112, %114, %116, %118, %120, %122, %124, %126, %128, %130, %132 in 2 : vector<16x16x32xf32>, vector<16x16x32xf32>, vector<16x16x32xf32>, vector<16x16x32xf32>, vector<16x16x32xf32>, vector<16x16x32xf32>, vector<16x16x32xf32>, vector<16x16x32xf32>, vector<16x16x32xf32>, vector<16x16x32xf32>, vector<16x16x32xf32>, vector<16x16x32xf32>, vector<16x16x32xf32>, vector<16x16x32xf32>, vector<16x16x32xf32>, vector<16x16x32xf32> -> vector<16x16x512xf32>
    %134 = vector.shape_cast %133 : vector<16x16x512xf32> to vector<256x512xf32>
    %c0_153 = arith.constant 0 : index
    %c0_154 = arith.constant 0 : index
    %135 = vector.load %arg4[%c0_153, %c0_154] : memref<512x128xf32, #tpu.memory_space<vmem>>, vector<512x128xf32>
    %cst_155 = arith.constant dense<0.000000e+00> : vector<256x128xf32>
    %136 = tpu.matmul %134, %135, %cst_155 {dimension_numbers = #tpu.dot_dimension_numbers<[1], [0], [0], [1], [0, 0, 1, 1], [], []>} : vector<256x512xf32>, vector<512x128xf32>, vector<256x128xf32> -> vector<256x128xf32>
    %c0_156 = arith.constant 0 : index
    %c0_157 = arith.constant 0 : index
    %137 = vector.load %arg5[%c0_156, %c0_157] : memref<1x128xf32, #tpu.memory_space<vmem>>, vector<1x128xf32>
    %138 = vector.broadcast %137 : vector<1x128xf32> to vector<256x128xf32>
    %139 = arith.addf %136, %138 : vector<256x128xf32>
    %140 = arith.addf %139, %100 : vector<256x128xf32>
    %cst_158 = arith.constant 0.000000e+00 : f32
    %141 = vector.broadcast %cst_158 : f32 to vector<256x128xf32>
    %142 = arith.maximumf %140, %141 : vector<256x128xf32>
    %143 = vector.shape_cast %142 : vector<256x128xf32> to vector<1x256x128xf32>
    %c0_159 = arith.constant 0 : index
    %c0_160 = arith.constant 0 : index
    %c0_161 = arith.constant 0 : index
    %144 = vector.load %arg6[%c0_159, %c0_160, %c0_161] : memref<1x256x128xf32, #tpu.memory_space<vmem>>, vector<1x256x128xf32>
    tpu.vector_store %arg6[%c0_159, %c0_160, %c0_161], %143 {strides = array<i32>} : memref<1x256x128xf32, #tpu.memory_space<vmem>>, vector<1x256x128xf32>,
    return
  }
  func.func @transform_0(%arg0: i32) -> (i32, i32, i32, i32) {
    %c0_i32 = arith.constant 0 : i32
    %c0_i32_0 = arith.constant 0 : i32
    %c0_i32_1 = arith.constant 0 : i32
    %c0_i32_2 = arith.constant 0 : i32
    return %arg0, %c0_i32, %c0_i32_0, %c0_i32_1 : i32, i32, i32, i32
  }
  func.func @transform_1(%arg0: i32) -> (i32, i32) {
    %c0_i32 = arith.constant 0 : i32
    %c0_i32_0 = arith.constant 0 : i32
    %c0_i32_1 = arith.constant 0 : i32
    return %c0_i32, %c0_i32_0 : i32, i32
  }
  func.func @transform_2(%arg0: i32) -> (i32, i32) {
    %c0_i32 = arith.constant 0 : i32
    %c0_i32_0 = arith.constant 0 : i32
    %c0_i32_1 = arith.constant 0 : i32
    return %c0_i32, %c0_i32_0 : i32, i32
  }
  func.func @transform_3(%arg0: i32) -> (i32, i32) {
    %c0_i32 = arith.constant 0 : i32
    %c0_i32_0 = arith.constant 0 : i32
    %c0_i32_1 = arith.constant 0 : i32
    return %c0_i32, %c0_i32_0 : i32, i32
  }
  func.func @transform_4(%arg0: i32) -> (i32, i32) {
    %c0_i32 = arith.constant 0 : i32
    %c0_i32_0 = arith.constant 0 : i32
    %c0_i32_1 = arith.constant 0 : i32
    return %c0_i32, %c0_i32_0 : i32, i32
  }
  func.func @transform_5(%arg0: i32) -> (i32, i32, i32) {
    %c0_i32 = arith.constant 0 : i32
    %c0_i32_0 = arith.constant 0 : i32
    %c0_i32_1 = arith.constant 0 : i32
    return %arg0, %c0_i32, %c0_i32_0 : i32, i32, i32
  }
}

</mosaic_0001>

<llo_original>
// kernel: upproj_forward.1
$region0: #{upproj_forward.1}
  #allocation0 [shape = 'u32[]', space=smem, size = 0x4, offset = 0x4, fixed_abs, tag = 'smem constant byte address 0x4 - core index']
  #allocation1 [shape = 'u32[144,128]{1,0:T(1,128)}', space=vmem, size = 0x12000, scoped, tag = 'internal scratch']
  #allocation2 [shape = 'f32[4,18,18,32]{3,2,1,0:T(8,128)}', space=vmem, size = 0xd8000, scoped, tag = 'scratch operand']
  %s0 = inlined_call_operand.vmem [shape: f32[2,18,18,4], index: 0, kind: input, shape index: {}]
  %s1 = inlined_call_operand.vmem [shape: f32[36,256], index: 1, kind: input, shape index: {}]
  %s2 = inlined_call_operand.vmem [shape: f32[1,256], index: 2, kind: input, shape index: {}]
  %s3 = inlined_call_operand.vmem [shape: f32[512,128], index: 3, kind: input, shape index: {}]
  %s4 = inlined_call_operand.vmem [shape: f32[1,128], index: 4, kind: input, shape index: {}]
  %s5 = inlined_call_operand.vmem [shape: f32[2,256,128], index: 5, kind: output, shape index: {}]
  %s6 = sld [smem:[#allocation0]]
  $region53: #{upproj_forward.1} parent=0
    _
  %s8 = ssub.s32 1, %s6
  %s9 = scalar_select 0, %s8, %s6
  loop: start=0, step=1, limit=4
  $region2: #{upproj_forward.1} parent=0 // loop_pre_header
    _
  $region3: #{upproj_forward.1} parent=0 // loop_header
    %s11 = sphi 0, %s15
    %p12 = scmp.ge.s32.totalorder %s11, 4
    %s21 = sphi 0, %s23
    %s24 = sphi 0, %s21
    %s25 = sphi 0, %s24
    %s41 = sphi 0, %s25
    %s45 = sphi 0, %s45
    %s47 = sphi 0, %s45
    %s48 = sphi 0, %s47
    %s62 = sphi 0, %s48
    %s66 = sphi 0, %s66
    %s68 = sphi 0, %s66
    %s69 = sphi 0, %s68
    %s83 = sphi 0, %s69
    %s87 = sphi 0, %s87
    %s89 = sphi 0, %s87
    %s90 = sphi 0, %s89
    %s104 = sphi 0, %s90
    %s108 = sphi 0, %s108
    %s110 = sphi 0, %s108
    %s111 = sphi 0, %s110
    %s125 = sphi 0, %s111
    %s131 = sphi 0, %s133
    %s134 = sphi 0, %s131
    %s135 = sphi 0, %s134
    %s151 = sphi 0, %s135
  $region4: #{upproj_forward.1} parent=0 // loop_header_branch
    %14 = sbr.rel (%p12) target = $region8
  $region5: #{upproj_forward.1} parent=0 // loop_body
    %s16 = ssub.s32 %s11, 1
    %s17 = ssub.s32 %s11, 2
    %s18 = sadd.s32 %s11, 1
    %s19 = ssub.s32 %s11, %s18
    %p20 = scmp.eq.s32.totalorder %s19, 0
    %s22 = sadd.s32 %s21, 1
    %s23 = scalar_select %p20, %s21, %s22
    %p26 = pneg %p20
    %p27 = scmp.eq.s32.totalorder %s11, 1
    %p28 = por %p26, %p27
    %p29 = scmp.ne.s32.totalorder %s21, %s24
    %p30 = scmp.eq.s32.totalorder %s11, 0
    %p31 = por %p29, %p30
    %p32 = scmp.ne.s32.totalorder %s21, %s24
    %p33 = scmp.eq.s32.totalorder %s16, 1
    %p34 = por %p32, %p33
    %p35 = scmp.ne.s32.totalorder %s24, %s25
    %p36 = scmp.eq.s32.totalorder %s16, 0
    %p37 = por %p35, %p36
    %p38 = scmp.ne.s32.totalorder %s24, %s25
    %p39 = scmp.eq.s32.totalorder %s17, 1
    %p40 = por %p38, %p39
    %p42 = scmp.ne.s32.totalorder %s25, %s41
    %p43 = scmp.eq.s32.totalorder %s17, 0
    %p44 = por %p42, %p43
    %s46 = sadd.s32 %s45, 1
    %p49 = scmp.eq.s32.totalorder %s11, 1
    %p50 = scmp.ne.s32.totalorder %s45, %s47
    %p51 = scmp.eq.s32.totalorder %s11, 0
    %p52 = por %p50, %p51
    %p53 = scmp.ne.s32.totalorder %s45, %s47
    %p54 = scmp.eq.s32.totalorder %s16, 1
    %p55 = por %p53, %p54
    %p56 = scmp.ne.s32.totalorder %s47, %s48
    %p57 = scmp.eq.s32.totalorder %s16, 0
    %p58 = por %p56, %p57
    %p59 = scmp.ne.s32.totalorder %s47, %s48
    %p60 = scmp.eq.s32.totalorder %s17, 1
    %p61 = por %p59, %p60
    %p63 = scmp.ne.s32.totalorder %s48, %s62
    %p64 = scmp.eq.s32.totalorder %s17, 0
    %p65 = por %p63, %p64
    %s67 = sadd.s32 %s66, 1
    %p70 = scmp.eq.s32.totalorder %s11, 1
    %p71 = scmp.ne.s32.totalorder %s66, %s68
    %p72 = scmp.eq.s32.totalorder %s11, 0
    %p73 = por %p71, %p72
    %p74 = scmp.ne.s32.totalorder %s66, %s68
    %p75 = scmp.eq.s32.totalorder %s16, 1
    %p76 = por %p74, %p75
    %p77 = scmp.ne.s32.totalorder %s68, %s69
    %p78 = scmp.eq.s32.totalorder %s16, 0
    %p79 = por %p77, %p78
    %p80 = scmp.ne.s32.totalorder %s68, %s69
    %p81 = scmp.eq.s32.totalorder %s17, 1
    %p82 = por %p80, %p81
    %p84 = scmp.ne.s32.totalorder %s69, %s83
    %p85 = scmp.eq.s32.totalorder %s17, 0
    %p86 = por %p84, %p85
    %s88 = sadd.s32 %s87, 1
    %p91 = scmp.eq.s32.totalorder %s11, 1
    %p92 = scmp.ne.s32.totalorder %s87, %s89
    %p93 = scmp.eq.s32.totalorder %s11, 0
    %p94 = por %p92, %p93
    %p95 = scmp.ne.s32.totalorder %s87, %s89
    %p96 = scmp.eq.s32.totalorder %s16, 1
    %p97 = por %p95, %p96
    %p98 = scmp.ne.s32.totalorder %s89, %s90
    %p99 = scmp.eq.s32.totalorder %s16, 0
    %p100 = por %p98, %p99
    %p101 = scmp.ne.s32.totalorder %s89, %s90
    %p102 = scmp.eq.s32.totalorder %s17, 1
    %p103 = por %p101, %p102
    %p105 = scmp.ne.s32.totalorder %s90, %s104
    %p106 = scmp.eq.s32.totalorder %s17, 0
    %p107 = por %p105, %p106
    %s109 = sadd.s32 %s108, 1
    %p112 = scmp.eq.s32.totalorder %s11, 1
    %p113 = scmp.ne.s32.totalorder %s108, %s110
    %p114 = scmp.eq.s32.totalorder %s11, 0
    %p115 = por %p113, %p114
    %p116 = scmp.ne.s32.totalorder %s108, %s110
    %p117 = scmp.eq.s32.totalorder %s16, 1
    %p118 = por %p116, %p117
    %p119 = scmp.ne.s32.totalorder %s110, %s111
    %p120 = scmp.eq.s32.totalorder %s16, 0
    %p121 = por %p119, %p120
    %p122 = scmp.ne.s32.totalorder %s110, %s111
    %p123 = scmp.eq.s32.totalorder %s17, 1
    %p124 = por %p122, %p123
    %p126 = scmp.ne.s32.totalorder %s111, %s125
    %p127 = scmp.eq.s32.totalorder %s17, 0
    %p128 = por %p126, %p127
    %s129 = ssub.s32 %s11, %s18
    %p130 = scmp.eq.s32.totalorder %s129, 0
    %s132 = sadd.s32 %s131, 1
    %s133 = scalar_select %p130, %s131, %s132
    %p136 = pneg %p130
    %p137 = scmp.eq.s32.totalorder %s11, 1
    %p138 = por %p136, %p137
    %p139 = scmp.ne.s32.totalorder %s131, %s134
    %p140 = scmp.eq.s32.totalorder %s11, 0
    %p141 = por %p139, %p140
    %p142 = scmp.ne.s32.totalorder %s131, %s134
    %p143 = scmp.eq.s32.totalorder %s16, 1
    %p144 = por %p142, %p143
    %p145 = scmp.ne.s32.totalorder %s134, %s135
    %p146 = scmp.eq.s32.totalorder %s16, 0
    %p147 = por %p145, %p146
    %p148 = scmp.ne.s32.totalorder %s134, %s135
    %p149 = scmp.eq.s32.totalorder %s17, 1
    %p150 = por %p148, %p149
    %p152 = scmp.ne.s32.totalorder %s135, %s151
    %p153 = scmp.eq.s32.totalorder %s17, 0
    %p154 = por %p152, %p153
    %p155 = scmp.le.s32.totalorder 1, %s11
    %p156 = scmp.lt.s32.totalorder %s11, 3
    %p157 = pnand %p155, %p156
    %p158 = pneg %p157
    // Predicated region
    $region9: #{upproj_forward.1} parent=5 // pred_check
      _
    $region10: #{upproj_forward.1} parent=5 // pred_check_branch
      %160 = sbr.rel (%p157) target = $region12
    $region11: #{upproj_forward.1} parent=5 // pred_region
      %s161 = ssub.s32 %s11, 1
      // Predicated region
      $region13: #{upproj_forward.1} parent=11 // pred_check
        %p162 = pneg %p58
      $region14: #{upproj_forward.1} parent=11 // pred_check_branch
        %164 = sbr.rel (%p162) target = $region16
      $region15: #{upproj_forward.1} parent=11 // pred_region
        _
      $region16: #{upproj_forward.1} parent=11 // pred_fallthru
        _
      // Predicated region
      $region17: #{upproj_forward.1} parent=11 // pred_check
        %p165 = pneg %p79
      $region18: #{upproj_forward.1} parent=11 // pred_check_branch
        %167 = sbr.rel (%p165) target = $region20
      $region19: #{upproj_forward.1} parent=11 // pred_region
        _
      $region20: #{upproj_forward.1} parent=11 // pred_fallthru
        _
      // Predicated region
      $region21: #{upproj_forward.1} parent=11 // pred_check
        %p168 = pneg %p100
      $region22: #{upproj_forward.1} parent=11 // pred_check_branch
        %170 = sbr.rel (%p168) target = $region24
      $region23: #{upproj_forward.1} parent=11 // pred_region
        _
      $region24: #{upproj_forward.1} parent=11 // pred_fallthru
        _
      // Predicated region
      $region25: #{upproj_forward.1} parent=11 // pred_check
        %p171 = pneg %p121
      $region26: #{upproj_forward.1} parent=11 // pred_check_branch
        %173 = sbr.rel (%p171) target = $region28
      $region27: #{upproj_forward.1} parent=11 // pred_region
        _
      $region28: #{upproj_forward.1} parent=11 // pred_fallthru
        _
    $region12: #{upproj_forward.1} parent=5 // pred_fallthru
      _
    %p174 = scmp.lt.s32.totalorder %s11, 2
    // Predicated region
    $region29: #{upproj_forward.1} parent=5 // pred_check
      %p175 = pneg %p174
    $region30: #{upproj_forward.1} parent=5 // pred_check_branch
      %177 = sbr.rel (%p175) target = $region32
    $region31: #{upproj_forward.1} parent=5 // pred_region
      // Predicated region
      $region33: #{upproj_forward.1} parent=31 // pred_check
        %p178 = pneg %p31
      $region34: #{upproj_forward.1} parent=31 // pred_check_branch
        %180 = sbr.rel (%p178) target = $region36
      $region35: #{upproj_forward.1} parent=31 // pred_region
        %p181 = scmp.lt.s32.totalorder %s11, 1
        %s182 = scalar_select %p181, %s11, 1
        %s183 = smul.addr %s182, 54
        %s184 = smul.addr %s183, 8
        %s185 = scalar_lea.vmem %s0, %s184
      $region36: #{upproj_forward.1} parent=31 // pred_fallthru
        _
    $region32: #{upproj_forward.1} parent=5 // pred_fallthru
      _
    %p186 = scmp.le.s32.totalorder 1, %s11
    %p187 = scmp.lt.s32.totalorder %s11, 3
    %p188 = pnand %p186, %p187
    %p189 = pneg %p188
    // Predicated region
    $region37: #{upproj_forward.1} parent=5 // pred_check
      _
    $region38: #{upproj_forward.1} parent=5 // pred_check_branch
      %191 = sbr.rel (%p188) target = $region40
    $region39: #{upproj_forward.1} parent=5 // pred_region
      %s192 = ssub.s32 %s11, 1
      %p193 = scmp.lt.s32.totalorder %s16, 1
      %s194 = scalar_select %p193, %s16, 1
      %s195 = smul.addr %s194, 54
      %s196 = smul.addr %s195, 8
      %s197 = scalar_lea.vmem %s0, %s196
      %p198 = pneg %p37
      %p199 = pneg %p34
      %p200 = pneg %p58
      %p201 = pneg %p55
      %p202 = pneg %p79
      %p203 = pneg %p76
      %p204 = pneg %p100
      %p205 = pneg %p97
      %p206 = pneg %p121
      %p207 = pneg %p118
      %p208 = pneg %p147
      %p209 = pneg %p144
      %p210 = scmp.lt.s32.totalorder %s16, 1
      %s211 = scalar_select %p210, %s16, 1
      %s212 = smul.addr %s211, 32
      %s213 = smul.addr %s212, 8
      %s214 = scalar_lea.vmem %s5, %s213
      %p215 = scmp.lt.s32.totalorder %s16, 1
      %s216 = scalar_select %p215, %s16, 1
      %s217 = smul.addr %s216, 54
      %s218 = smul.addr %s217, 8
      %s219 = scalar_lea.vmem %s0, %s218
      %p220 = scmp.lt.s32.totalorder %s16, 1
      %s221 = scalar_select %p220, %s16, 1
      %s222 = smul.addr %s221, 32
      %s223 = smul.addr %s222, 8
      %s224 = scalar_lea.vmem %s5, %s223
      %v225 = vld [vmem:[%s219] sm:$0xff]
      %v226 = vld [vmem:[%s219 + $0x8] sm:$0xff]
      %v227 = vld [vmem:[%s219 + $0x10] sm:$0x3]
      %v228 = vld [vmem:[%s219 + $0x18] sm:$0xff]
      %v229 = vld [vmem:[%s219 + $0x20] sm:$0xff]
      %v230 = vld [vmem:[%s219 + $0x28] sm:$0x3]
      %v231 = vld [vmem:[%s219 + $0x30] sm:$0xff]
      %v232 = vld [vmem:[%s219 + $0x38] sm:$0xff]
      %v233 = vld [vmem:[%s219 + $0x40] sm:$0x3]
      %v234 = vld [vmem:[%s219 + $0x48] sm:$0xff]
      %v235 = vld [vmem:[%s219 + $0x50] sm:$0xff]
      %v236 = vld [vmem:[%s219 + $0x58] sm:$0x3]
      %v237 = vld [vmem:[%s219 + $0x60] sm:$0xff]
      %v238 = vld [vmem:[%s219 + $0x68] sm:$0xff]
      %v239 = vld [vmem:[%s219 + $0x70] sm:$0x3]
      %v240 = vld [vmem:[%s219 + $0x78] sm:$0xff]
      %v241 = vld [vmem:[%s219 + $0x80] sm:$0xff]
      %v242 = vld [vmem:[%s219 + $0x88] sm:$0x3]
      %v243 = vld [vmem:[%s219 + $0x90] sm:$0xff]
      %v244 = vld [vmem:[%s219 + $0x98] sm:$0xff]
      %v245 = vld [vmem:[%s219 + $0xa0] sm:$0x3]
      %v246 = vld [vmem:[%s219 + $0xa8] sm:$0xff]
      %v247 = vld [vmem:[%s219 + $0xb0] sm:$0xff]
      %v248 = vld [vmem:[%s219 + $0xb8] sm:$0x3]
      %v249 = vld [vmem:[%s219 + $0xc0] sm:$0xff]
      %v250 = vld [vmem:[%s219 + $0xc8] sm:$0xff]
      %v251 = vld [vmem:[%s219 + $0xd0] sm:$0x3]
      %v252 = vld [vmem:[%s219 + $0xd8] sm:$0xff]
      %v253 = vld [vmem:[%s219 + $0xe0] sm:$0xff]
      %v254 = vld [vmem:[%s219 + $0xe8] sm:$0x3]
      %v255 = vld [vmem:[%s219 + $0xf0] sm:$0xff]
      %v256 = vld [vmem:[%s219 + $0xf8] sm:$0xff]
      %v257 = vld [vmem:[%s219 + $0x100] sm:$0x3]
      %v258 = vld [vmem:[%s219 + $0x108] sm:$0xff]
      %v259 = vld [vmem:[%s219 + $0x110] sm:$0xff]
      %v260 = vld [vmem:[%s219 + $0x118] sm:$0x3]
      %v261 = vld [vmem:[%s219 + $0x120] sm:$0xff]
      %v262 = vld [vmem:[%s219 + $0x128] sm:$0xff]
      %v263 = vld [vmem:[%s219 + $0x130] sm:$0x3]
      %v264 = vld [vmem:[%s219 + $0x138] sm:$0xff]
      %v265 = vld [vmem:[%s219 + $0x140] sm:$0xff]
      %v266 = vld [vmem:[%s219 + $0x148] sm:$0x3]
      %v267 = vld [vmem:[%s219 + $0x150] sm:$0xff]
      %v268 = vld [vmem:[%s219 + $0x158] sm:$0xff]
      %v269 = vld [vmem:[%s219 + $0x160] sm:$0x3]
      %v270 = vld [vmem:[%s219 + $0x168] sm:$0xff]
      %v271 = vld [vmem:[%s219 + $0x170] sm:$0xff]
      %v272 = vld [vmem:[%s219 + $0x178] sm:$0x3]
      %v273 = vld [vmem:[%s219 + $0x180] sm:$0xff]
      %v274 = vld [vmem:[%s219 + $0x188] sm:$0xff]
      %v275 = vld [vmem:[%s219 + $0x190] sm:$0x3]
      %v276 = vld [vmem:[%s219 + $0x198] sm:$0xff]
      %v277 = vld [vmem:[%s219 + $0x1a0] sm:$0xff]
      %v278 = vld [vmem:[%s219 + $0x1a8] sm:$0x3]
      %vm327 = vcmask 1046528
      %v328 = vrot.slane %v225, 1
      %v329 = vrot.slane %v226, 1
      %v330 = vsel %vm327, %v328, %v329
      %v331 = vrot.slane %v227, 1
      %v332 = vsel %vm327, %v329, %v331
      %v333 = vrot.slane %v228, 1
      %v334 = vrot.slane %v229, 1
      %v335 = vsel %vm327, %v333, %v334
      %v336 = vrot.slane %v230, 1
      %v337 = vsel %vm327, %v334, %v336
      %v338 = vrot.slane %v231, 1
      %v339 = vrot.slane %v232, 1
      %v340 = vsel %vm327, %v338, %v339
      %v341 = vrot.slane %v233, 1
      %v342 = vsel %vm327, %v339, %v341
      %v343 = vrot.slane %v234, 1
      %v344 = vrot.slane %v235, 1
      %v345 = vsel %vm327, %v343, %v344
      %v346 = vrot.slane %v236, 1
      %v347 = vsel %vm327, %v344, %v346
      %v348 = vrot.slane %v237, 1
      %v349 = vrot.slane %v238, 1
      %v350 = vsel %vm327, %v348, %v349
      %v351 = vrot.slane %v239, 1
      %v352 = vsel %vm327, %v349, %v351
      %v353 = vrot.slane %v240, 1
      %v354 = vrot.slane %v241, 1
      %v355 = vsel %vm327, %v353, %v354
      %v356 = vrot.slane %v242, 1
      %v357 = vsel %vm327, %v354, %v356
      %v358 = vrot.slane %v243, 1
      %v359 = vrot.slane %v244, 1
      %v360 = vsel %vm327, %v358, %v359
      %v361 = vrot.slane %v245, 1
      %v362 = vsel %vm327, %v359, %v361
      %v363 = vrot.slane %v246, 1
      %v364 = vrot.slane %v247, 1
      %v365 = vsel %vm327, %v363, %v364
      %v366 = vrot.slane %v248, 1
      %v367 = vsel %vm327, %v364, %v366
      %v368 = vrot.slane %v249, 1
      %v369 = vrot.slane %v250, 1
      %v370 = vsel %vm327, %v368, %v369
      %v371 = vrot.slane %v251, 1
      %v372 = vsel %vm327, %v369, %v371
      %v373 = vrot.slane %v252, 1
      %v374 = vrot.slane %v253, 1
      %v375 = vsel %vm327, %v373, %v374
      %v376 = vrot.slane %v254, 1
      %v377 = vsel %vm327, %v374, %v376
      %v378 = vrot.slane %v255, 1
      %v379 = vrot.slane %v256, 1
      %v380 = vsel %vm327, %v378, %v379
      %v381 = vrot.slane %v257, 1
      %v382 = vsel %vm327, %v379, %v381
      %v383 = vrot.slane %v258, 1
      %v384 = vrot.slane %v259, 1
      %v385 = vsel %vm327, %v383, %v384
      %v386 = vrot.slane %v260, 1
      %v387 = vsel %vm327, %v384, %v386
      %v388 = vrot.slane %v261, 1
      %v389 = vrot.slane %v262, 1
      %v390 = vsel %vm327, %v388, %v389
      %v391 = vrot.slane %v263, 1
      %v392 = vsel %vm327, %v389, %v391
      %v393 = vrot.slane %v264, 1
      %v394 = vrot.slane %v265, 1
      %v395 = vsel %vm327, %v393, %v394
      %v396 = vrot.slane %v266, 1
      %v397 = vsel %vm327, %v394, %v396
      %v398 = vrot.slane %v267, 1
      %v399 = vrot.slane %v268, 1
      %v400 = vsel %vm327, %v398, %v399
      %v401 = vrot.slane %v269, 1
      %v402 = vsel %vm327, %v399, %v401
      %v403 = vrot.slane %v270, 1
      %v404 = vrot.slane %v271, 1
      %v405 = vsel %vm327, %v403, %v404
      %v406 = vrot.slane %v272, 1
      %v407 = vsel %vm327, %v404, %v406
      %408 = vrot.lane.b32.xlu0 %v330, 4
      %v409 = vpop.permute.xlu0 %408
      %410 = vrot.lane.b32.xlu0 %v332, 4
      %v411 = vpop.permute.xlu0 %410
      %412 = vrot.lane.b32.xlu0 %v335, 4
      %v413 = vpop.permute.xlu0 %412
      %414 = vrot.lane.b32.xlu0 %v337, 4
      %v415 = vpop.permute.xlu0 %414
      %416 = vrot.lane.b32.xlu0 %v340, 4
      %v417 = vpop.permute.xlu0 %416
      %418 = vrot.lane.b32.xlu0 %v342, 4
      %v419 = vpop.permute.xlu0 %418
      %420 = vrot.lane.b32.xlu0 %v345, 4
      %v421 = vpop.permute.xlu0 %420
      %422 = vrot.lane.b32.xlu0 %v347, 4
      %v423 = vpop.permute.xlu0 %422
      %424 = vrot.lane.b32.xlu0 %v350, 4
      %v425 = vpop.permute.xlu0 %424
      %426 = vrot.lane.b32.xlu0 %v352, 4
      %v427 = vpop.permute.xlu0 %426
      %428 = vrot.lane.b32.xlu0 %v355, 4
      %v429 = vpop.permute.xlu0 %428
      %430 = vrot.lane.b32.xlu0 %v357, 4
      %v431 = vpop.permute.xlu0 %430
      %432 = vrot.lane.b32.xlu0 %v360, 4
      %v433 = vpop.permute.xlu0 %432
      %434 = vrot.lane.b32.xlu0 %v362, 4
      %v435 = vpop.permute.xlu0 %434
      %436 = vrot.lane.b32.xlu0 %v365, 4
      %v437 = vpop.permute.xlu0 %436
      %438 = vrot.lane.b32.xlu0 %v367, 4
      %v439 = vpop.permute.xlu0 %438
      %440 = vrot.lane.b32.xlu0 %v370, 4
      %v441 = vpop.permute.xlu0 %440
      %442 = vrot.lane.b32.xlu0 %v372, 4
      %v443 = vpop.permute.xlu0 %442
      %444 = vrot.lane.b32.xlu0 %v375, 4
      %v445 = vpop.permute.xlu0 %444
      %446 = vrot.lane.b32.xlu0 %v377, 4
      %v447 = vpop.permute.xlu0 %446
      %448 = vrot.lane.b32.xlu0 %v380, 4
      %v449 = vpop.permute.xlu0 %448
      %450 = vrot.lane.b32.xlu0 %v382, 4
      %v451 = vpop.permute.xlu0 %450
      %452 = vrot.lane.b32.xlu0 %v385, 4
      %v453 = vpop.permute.xlu0 %452
      %454 = vrot.lane.b32.xlu0 %v387, 4
      %v455 = vpop.permute.xlu0 %454
      %456 = vrot.lane.b32.xlu0 %v390, 4
      %v457 = vpop.permute.xlu0 %456
      %458 = vrot.lane.b32.xlu0 %v392, 4
      %v459 = vpop.permute.xlu0 %458
      %460 = vrot.lane.b32.xlu0 %v395, 4
      %v461 = vpop.permute.xlu0 %460
      %462 = vrot.lane.b32.xlu0 %v397, 4
      %v463 = vpop.permute.xlu0 %462
      %464 = vrot.lane.b32.xlu0 %v400, 4
      %v465 = vpop.permute.xlu0 %464
      %466 = vrot.lane.b32.xlu0 %v402, 4
      %v467 = vpop.permute.xlu0 %466
      %468 = vrot.lane.b32.xlu0 %v405, 4
      %v469 = vpop.permute.xlu0 %468
      %470 = vrot.lane.b32.xlu0 %v407, 4
      %v471 = vpop.permute.xlu0 %470
      %vm504 = vcmask 1045504
      %v505 = vrot.slane %v225, 2
      %v506 = vrot.slane %v226, 2
      %v507 = vsel %vm504, %v505, %v506
      %v508 = vrot.slane %v227, 2
      %v509 = vsel %vm504, %v506, %v508
      %v510 = vrot.slane %v228, 2
      %v511 = vrot.slane %v229, 2
      %v512 = vsel %vm504, %v510, %v511
      %v513 = vrot.slane %v230, 2
      %v514 = vsel %vm504, %v511, %v513
      %v515 = vrot.slane %v231, 2
      %v516 = vrot.slane %v232, 2
      %v517 = vsel %vm504, %v515, %v516
      %v518 = vrot.slane %v233, 2
      %v519 = vsel %vm504, %v516, %v518
      %v520 = vrot.slane %v234, 2
      %v521 = vrot.slane %v235, 2
      %v522 = vsel %vm504, %v520, %v521
      %v523 = vrot.slane %v236, 2
      %v524 = vsel %vm504, %v521, %v523
      %v525 = vrot.slane %v237, 2
      %v526 = vrot.slane %v238, 2
      %v527 = vsel %vm504, %v525, %v526
      %v528 = vrot.slane %v239, 2
      %v529 = vsel %vm504, %v526, %v528
      %v530 = vrot.slane %v240, 2
      %v531 = vrot.slane %v241, 2
      %v532 = vsel %vm504, %v530, %v531
      %v533 = vrot.slane %v242, 2
      %v534 = vsel %vm504, %v531, %v533
      %v535 = vrot.slane %v243, 2
      %v536 = vrot.slane %v244, 2
      %v537 = vsel %vm504, %v535, %v536
      %v538 = vrot.slane %v245, 2
      %v539 = vsel %vm504, %v536, %v538
      %v540 = vrot.slane %v246, 2
      %v541 = vrot.slane %v247, 2
      %v542 = vsel %vm504, %v540, %v541
      %v543 = vrot.slane %v248, 2
      %v544 = vsel %vm504, %v541, %v543
      %v545 = vrot.slane %v249, 2
      %v546 = vrot.slane %v250, 2
      %v547 = vsel %vm504, %v545, %v546
      %v548 = vrot.slane %v251, 2
      %v549 = vsel %vm504, %v546, %v548
      %v550 = vrot.slane %v252, 2
      %v551 = vrot.slane %v253, 2
      %v552 = vsel %vm504, %v550, %v551
      %v553 = vrot.slane %v254, 2
      %v554 = vsel %vm504, %v551, %v553
      %v555 = vrot.slane %v255, 2
      %v556 = vrot.slane %v256, 2
      %v557 = vsel %vm504, %v555, %v556
      %v558 = vrot.slane %v257, 2
      %v559 = vsel %vm504, %v556, %v558
      %v560 = vrot.slane %v258, 2
      %v561 = vrot.slane %v259, 2
      %v562 = vsel %vm504, %v560, %v561
      %v563 = vrot.slane %v260, 2
      %v564 = vsel %vm504, %v561, %v563
      %v565 = vrot.slane %v261, 2
      %v566 = vrot.slane %v262, 2
      %v567 = vsel %vm504, %v565, %v566
      %v568 = vrot.slane %v263, 2
      %v569 = vsel %vm504, %v566, %v568
      %v570 = vrot.slane %v264, 2
      %v571 = vrot.slane %v265, 2
      %v572 = vsel %vm504, %v570, %v571
      %v573 = vrot.slane %v266, 2
      %v574 = vsel %vm504, %v571, %v573
      %v575 = vrot.slane %v267, 2
      %v576 = vrot.slane %v268, 2
      %v577 = vsel %vm504, %v575, %v576
      %v578 = vrot.slane %v269, 2
      %v579 = vsel %vm504, %v576, %v578
      %v580 = vrot.slane %v270, 2
      %v581 = vrot.slane %v271, 2
      %v582 = vsel %vm504, %v580, %v581
      %v583 = vrot.slane %v272, 2
      %v584 = vsel %vm504, %v581, %v583
      %585 = vrot.lane.b32.xlu0 %v507, 8
      %v586 = vpop.permute.xlu0 %585
      %587 = vrot.lane.b32.xlu0 %v509, 8
      %v588 = vpop.permute.xlu0 %587
      %589 = vrot.lane.b32.xlu0 %v512, 8
      %v590 = vpop.permute.xlu0 %589
      %591 = vrot.lane.b32.xlu0 %v514, 8
      %v592 = vpop.permute.xlu0 %591
      %593 = vrot.lane.b32.xlu0 %v517, 8
      %v594 = vpop.permute.xlu0 %593
      %595 = vrot.lane.b32.xlu0 %v519, 8
      %v596 = vpop.permute.xlu0 %595
      %597 = vrot.lane.b32.xlu0 %v522, 8
      %v598 = vpop.permute.xlu0 %597
      %599 = vrot.lane.b32.xlu0 %v524, 8
      %v600 = vpop.permute.xlu0 %599
      %601 = vrot.lane.b32.xlu0 %v527, 8
      %v602 = vpop.permute.xlu0 %601
      %603 = vrot.lane.b32.xlu0 %v529, 8
      %v604 = vpop.permute.xlu0 %603
      %605 = vrot.lane.b32.xlu0 %v532, 8
      %v606 = vpop.permute.xlu0 %605
      %607 = vrot.lane.b32.xlu0 %v534, 8
      %v608 = vpop.permute.xlu0 %607
      %609 = vrot.lane.b32.xlu0 %v537, 8
      %v610 = vpop.permute.xlu0 %609
      %611 = vrot.lane.b32.xlu0 %v539, 8
      %v612 = vpop.permute.xlu0 %611
      %613 = vrot.lane.b32.xlu0 %v542, 8
      %v614 = vpop.permute.xlu0 %613
      %615 = vrot.lane.b32.xlu0 %v544, 8
      %v616 = vpop.permute.xlu0 %615
      %617 = vrot.lane.b32.xlu0 %v547, 8
      %v618 = vpop.permute.xlu0 %617
      %619 = vrot.lane.b32.xlu0 %v549, 8
      %v620 = vpop.permute.xlu0 %619
      %621 = vrot.lane.b32.xlu0 %v552, 8
      %v622 = vpop.permute.xlu0 %621
      %623 = vrot.lane.b32.xlu0 %v554, 8
      %v624 = vpop.permute.xlu0 %623
      %625 = vrot.lane.b32.xlu0 %v557, 8
      %v626 = vpop.permute.xlu0 %625
      %627 = vrot.lane.b32.xlu0 %v559, 8
      %v628 = vpop.permute.xlu0 %627
      %629 = vrot.lane.b32.xlu0 %v562, 8
      %v630 = vpop.permute.xlu0 %629
      %631 = vrot.lane.b32.xlu0 %v564, 8
      %v632 = vpop.permute.xlu0 %631
      %633 = vrot.lane.b32.xlu0 %v567, 8
      %v634 = vpop.permute.xlu0 %633
      %635 = vrot.lane.b32.xlu0 %v569, 8
      %v636 = vpop.permute.xlu0 %635
      %637 = vrot.lane.b32.xlu0 %v572, 8
      %v638 = vpop.permute.xlu0 %637
      %639 = vrot.lane.b32.xlu0 %v574, 8
      %v640 = vpop.permute.xlu0 %639
      %641 = vrot.lane.b32.xlu0 %v577, 8
      %v642 = vpop.permute.xlu0 %641
      %643 = vrot.lane.b32.xlu0 %v579, 8
      %v644 = vpop.permute.xlu0 %643
      %645 = vrot.lane.b32.xlu0 %v582, 8
      %v646 = vpop.permute.xlu0 %645
      %647 = vrot.lane.b32.xlu0 %v584, 8
      %v648 = vpop.permute.xlu0 %647
      %683 = vrot.lane.b32.xlu0 %v228, 12
      %v684 = vpop.permute.xlu0 %683
      %685 = vrot.lane.b32.xlu0 %v229, 12
      %v686 = vpop.permute.xlu0 %685
      %687 = vrot.lane.b32.xlu0 %v231, 12
      %v688 = vpop.permute.xlu0 %687
      %689 = vrot.lane.b32.xlu0 %v232, 12
      %v690 = vpop.permute.xlu0 %689
      %691 = vrot.lane.b32.xlu0 %v234, 12
      %v692 = vpop.permute.xlu0 %691
      %693 = vrot.lane.b32.xlu0 %v235, 12
      %v694 = vpop.permute.xlu0 %693
      %695 = vrot.lane.b32.xlu0 %v237, 12
      %v696 = vpop.permute.xlu0 %695
      %697 = vrot.lane.b32.xlu0 %v238, 12
      %v698 = vpop.permute.xlu0 %697
      %699 = vrot.lane.b32.xlu0 %v240, 12
      %v700 = vpop.permute.xlu0 %699
      %701 = vrot.lane.b32.xlu0 %v241, 12
      %v702 = vpop.permute.xlu0 %701
      %703 = vrot.lane.b32.xlu0 %v243, 12
      %v704 = vpop.permute.xlu0 %703
      %705 = vrot.lane.b32.xlu0 %v244, 12
      %v706 = vpop.permute.xlu0 %705
      %707 = vrot.lane.b32.xlu0 %v246, 12
      %v708 = vpop.permute.xlu0 %707
      %709 = vrot.lane.b32.xlu0 %v247, 12
      %v710 = vpop.permute.xlu0 %709
      %711 = vrot.lane.b32.xlu0 %v249, 12
      %v712 = vpop.permute.xlu0 %711
      %713 = vrot.lane.b32.xlu0 %v250, 12
      %v714 = vpop.permute.xlu0 %713
      %715 = vrot.lane.b32.xlu0 %v252, 12
      %v716 = vpop.permute.xlu0 %715
      %717 = vrot.lane.b32.xlu0 %v253, 12
      %v718 = vpop.permute.xlu0 %717
      %719 = vrot.lane.b32.xlu0 %v255, 12
      %v720 = vpop.permute.xlu0 %719
      %721 = vrot.lane.b32.xlu0 %v256, 12
      %v722 = vpop.permute.xlu0 %721
      %723 = vrot.lane.b32.xlu0 %v258, 12
      %v724 = vpop.permute.xlu0 %723
      %725 = vrot.lane.b32.xlu0 %v259, 12
      %v726 = vpop.permute.xlu0 %725
      %727 = vrot.lane.b32.xlu0 %v261, 12
      %v728 = vpop.permute.xlu0 %727
      %729 = vrot.lane.b32.xlu0 %v262, 12
      %v730 = vpop.permute.xlu0 %729
      %731 = vrot.lane.b32.xlu0 %v264, 12
      %v732 = vpop.permute.xlu0 %731
      %733 = vrot.lane.b32.xlu0 %v265, 12
      %v734 = vpop.permute.xlu0 %733
      %735 = vrot.lane.b32.xlu0 %v267, 12
      %v736 = vpop.permute.xlu0 %735
      %737 = vrot.lane.b32.xlu0 %v268, 12
      %v738 = vpop.permute.xlu0 %737
      %739 = vrot.lane.b32.xlu0 %v270, 12
      %v740 = vpop.permute.xlu0 %739
      %741 = vrot.lane.b32.xlu0 %v271, 12
      %v742 = vpop.permute.xlu0 %741
      %743 = vrot.lane.b32.xlu0 %v273, 12
      %v744 = vpop.permute.xlu0 %743
      %745 = vrot.lane.b32.xlu0 %v274, 12
      %v746 = vpop.permute.xlu0 %745
      %v780 = vrot.slane %v273, 1
      %v781 = vrot.slane %v274, 1
      %v782 = vsel %vm327, %v780, %v781
      %v783 = vrot.slane %v275, 1
      %v784 = vsel %vm327, %v781, %v783
      %785 = vrot.lane.b32.xlu0 %v335, 16
      %v786 = vpop.permute.xlu0 %785
      %787 = vrot.lane.b32.xlu0 %v337, 16
      %v788 = vpop.permute.xlu0 %787
      %789 = vrot.lane.b32.xlu0 %v340, 16
      %v790 = vpop.permute.xlu0 %789
      %791 = vrot.lane.b32.xlu0 %v342, 16
      %v792 = vpop.permute.xlu0 %791
      %793 = vrot.lane.b32.xlu0 %v345, 16
      %v794 = vpop.permute.xlu0 %793
      %795 = vrot.lane.b32.xlu0 %v347, 16
      %v796 = vpop.permute.xlu0 %795
      %797 = vrot.lane.b32.xlu0 %v350, 16
      %v798 = vpop.permute.xlu0 %797
      %799 = vrot.lane.b32.xlu0 %v352, 16
      %v800 = vpop.permute.xlu0 %799
      %801 = vrot.lane.b32.xlu0 %v355, 16
      %v802 = vpop.permute.xlu0 %801
      %803 = vrot.lane.b32.xlu0 %v357, 16
      %v804 = vpop.permute.xlu0 %803
      %805 = vrot.lane.b32.xlu0 %v360, 16
      %v806 = vpop.permute.xlu0 %805
      %807 = vrot.lane.b32.xlu0 %v362, 16
      %v808 = vpop.permute.xlu0 %807
      %809 = vrot.lane.b32.xlu0 %v365, 16
      %v810 = vpop.permute.xlu0 %809
      %811 = vrot.lane.b32.xlu0 %v367, 16
      %v812 = vpop.permute.xlu0 %811
      %813 = vrot.lane.b32.xlu0 %v370, 16
      %v814 = vpop.permute.xlu0 %813
      %815 = vrot.lane.b32.xlu0 %v372, 16
      %v816 = vpop.permute.xlu0 %815
      %817 = vrot.lane.b32.xlu0 %v375, 16
      %v818 = vpop.permute.xlu0 %817
      %819 = vrot.lane.b32.xlu0 %v377, 16
      %v820 = vpop.permute.xlu0 %819
      %821 = vrot.lane.b32.xlu0 %v380, 16
      %v822 = vpop.permute.xlu0 %821
      %823 = vrot.lane.b32.xlu0 %v382, 16
      %v824 = vpop.permute.xlu0 %823
      %825 = vrot.lane.b32.xlu0 %v385, 16
      %v826 = vpop.permute.xlu0 %825
      %827 = vrot.lane.b32.xlu0 %v387, 16
      %v828 = vpop.permute.xlu0 %827
      %829 = vrot.lane.b32.xlu0 %v390, 16
      %v830 = vpop.permute.xlu0 %829
      %831 = vrot.lane.b32.xlu0 %v392, 16
      %v832 = vpop.permute.xlu0 %831
      %833 = vrot.lane.b32.xlu0 %v395, 16
      %v834 = vpop.permute.xlu0 %833
      %835 = vrot.lane.b32.xlu0 %v397, 16
      %v836 = vpop.permute.xlu0 %835
      %837 = vrot.lane.b32.xlu0 %v400, 16
      %v838 = vpop.permute.xlu0 %837
      %839 = vrot.lane.b32.xlu0 %v402, 16
      %v840 = vpop.permute.xlu0 %839
      %841 = vrot.lane.b32.xlu0 %v405, 16
      %v842 = vpop.permute.xlu0 %841
      %843 = vrot.lane.b32.xlu0 %v407, 16
      %v844 = vpop.permute.xlu0 %843
      %845 = vrot.lane.b32.xlu0 %v782, 16
      %v846 = vpop.permute.xlu0 %845
      %847 = vrot.lane.b32.xlu0 %v784, 16
      %v848 = vpop.permute.xlu0 %847
      %v881 = vrot.slane %v273, 2
      %v882 = vrot.slane %v274, 2
      %v883 = vsel %vm504, %v881, %v882
      %v884 = vrot.slane %v275, 2
      %v885 = vsel %vm504, %v882, %v884
      %886 = vrot.lane.b32.xlu0 %v512, 20
      %v887 = vpop.permute.xlu0 %886
      %888 = vrot.lane.b32.xlu0 %v514, 20
      %v889 = vpop.permute.xlu0 %888
      %890 = vrot.lane.b32.xlu0 %v517, 20
      %v891 = vpop.permute.xlu0 %890
      %892 = vrot.lane.b32.xlu0 %v519, 20
      %v893 = vpop.permute.xlu0 %892
      %894 = vrot.lane.b32.xlu0 %v522, 20
      %v895 = vpop.permute.xlu0 %894
      %896 = vrot.lane.b32.xlu0 %v524, 20
      %v897 = vpop.permute.xlu0 %896
      %898 = vrot.lane.b32.xlu0 %v527, 20
      %v899 = vpop.permute.xlu0 %898
      %900 = vrot.lane.b32.xlu0 %v529, 20
      %v901 = vpop.permute.xlu0 %900
      %902 = vrot.lane.b32.xlu0 %v532, 20
      %v903 = vpop.permute.xlu0 %902
      %904 = vrot.lane.b32.xlu0 %v534, 20
      %v905 = vpop.permute.xlu0 %904
      %906 = vrot.lane.b32.xlu0 %v537, 20
      %v907 = vpop.permute.xlu0 %906
      %908 = vrot.lane.b32.xlu0 %v539, 20
      %v909 = vpop.permute.xlu0 %908
      %910 = vrot.lane.b32.xlu0 %v542, 20
      %v911 = vpop.permute.xlu0 %910
      %912 = vrot.lane.b32.xlu0 %v544, 20
      %v913 = vpop.permute.xlu0 %912
      %914 = vrot.lane.b32.xlu0 %v547, 20
      %v915 = vpop.permute.xlu0 %914
      %916 = vrot.lane.b32.xlu0 %v549, 20
      %v917 = vpop.permute.xlu0 %916
      %918 = vrot.lane.b32.xlu0 %v552, 20
      %v919 = vpop.permute.xlu0 %918
      %920 = vrot.lane.b32.xlu0 %v554, 20
      %v921 = vpop.permute.xlu0 %920
      %922 = vrot.lane.b32.xlu0 %v557, 20
      %v923 = vpop.permute.xlu0 %922
      %924 = vrot.lane.b32.xlu0 %v559, 20
      %v925 = vpop.permute.xlu0 %924
      %926 = vrot.lane.b32.xlu0 %v562, 20
      %v927 = vpop.permute.xlu0 %926
      %928 = vrot.lane.b32.xlu0 %v564, 20
      %v929 = vpop.permute.xlu0 %928
      %930 = vrot.lane.b32.xlu0 %v567, 20
      %v931 = vpop.permute.xlu0 %930
      %932 = vrot.lane.b32.xlu0 %v569, 20
      %v933 = vpop.permute.xlu0 %932
      %934 = vrot.lane.b32.xlu0 %v572, 20
      %v935 = vpop.permute.xlu0 %934
      %936 = vrot.lane.b32.xlu0 %v574, 20
      %v937 = vpop.permute.xlu0 %936
      %938 = vrot.lane.b32.xlu0 %v577, 20
      %v939 = vpop.permute.xlu0 %938
      %940 = vrot.lane.b32.xlu0 %v579, 20
      %v941 = vpop.permute.xlu0 %940
      %942 = vrot.lane.b32.xlu0 %v582, 20
      %v943 = vpop.permute.xlu0 %942
      %944 = vrot.lane.b32.xlu0 %v584, 20
      %v945 = vpop.permute.xlu0 %944
      %946 = vrot.lane.b32.xlu0 %v883, 20
      %v947 = vpop.permute.xlu0 %946
      %948 = vrot.lane.b32.xlu0 %v885, 20
      %v949 = vpop.permute.xlu0 %948
      %984 = vrot.lane.b32.xlu0 %v231, 24
      %v985 = vpop.permute.xlu0 %984
      %986 = vrot.lane.b32.xlu0 %v232, 24
      %v987 = vpop.permute.xlu0 %986
      %988 = vrot.lane.b32.xlu0 %v234, 24
      %v989 = vpop.permute.xlu0 %988
      %990 = vrot.lane.b32.xlu0 %v235, 24
      %v991 = vpop.permute.xlu0 %990
      %992 = vrot.lane.b32.xlu0 %v237, 24
      %v993 = vpop.permute.xlu0 %992
      %994 = vrot.lane.b32.xlu0 %v238, 24
      %v995 = vpop.permute.xlu0 %994
      %996 = vrot.lane.b32.xlu0 %v240, 24
      %v997 = vpop.permute.xlu0 %996
      %998 = vrot.lane.b32.xlu0 %v241, 24
      %v999 = vpop.permute.xlu0 %998
      %1000 = vrot.lane.b32.xlu0 %v243, 24
      %v1001 = vpop.permute.xlu0 %1000
      %1002 = vrot.lane.b32.xlu0 %v244, 24
      %v1003 = vpop.permute.xlu0 %1002
      %1004 = vrot.lane.b32.xlu0 %v246, 24
      %v1005 = vpop.permute.xlu0 %1004
      %1006 = vrot.lane.b32.xlu0 %v247, 24
      %v1007 = vpop.permute.xlu0 %1006
      %1008 = vrot.lane.b32.xlu0 %v249, 24
      %v1009 = vpop.permute.xlu0 %1008
      %1010 = vrot.lane.b32.xlu0 %v250, 24
      %v1011 = vpop.permute.xlu0 %1010
      %1012 = vrot.lane.b32.xlu0 %v252, 24
      %v1013 = vpop.permute.xlu0 %1012
      %1014 = vrot.lane.b32.xlu0 %v253, 24
      %v1015 = vpop.permute.xlu0 %1014
      %1016 = vrot.lane.b32.xlu0 %v255, 24
      %v1017 = vpop.permute.xlu0 %1016
      %1018 = vrot.lane.b32.xlu0 %v256, 24
      %v1019 = vpop.permute.xlu0 %1018
      %1020 = vrot.lane.b32.xlu0 %v258, 24
      %v1021 = vpop.permute.xlu0 %1020
      %1022 = vrot.lane.b32.xlu0 %v259, 24
      %v1023 = vpop.permute.xlu0 %1022
      %1024 = vrot.lane.b32.xlu0 %v261, 24
      %v1025 = vpop.permute.xlu0 %1024
      %1026 = vrot.lane.b32.xlu0 %v262, 24
      %v1027 = vpop.permute.xlu0 %1026
      %1028 = vrot.lane.b32.xlu0 %v264, 24
      %v1029 = vpop.permute.xlu0 %1028
      %1030 = vrot.lane.b32.xlu0 %v265, 24
      %v1031 = vpop.permute.xlu0 %1030
      %1032 = vrot.lane.b32.xlu0 %v267, 24
      %v1033 = vpop.permute.xlu0 %1032
      %1034 = vrot.lane.b32.xlu0 %v268, 24
      %v1035 = vpop.permute.xlu0 %1034
      %1036 = vrot.lane.b32.xlu0 %v270, 24
      %v1037 = vpop.permute.xlu0 %1036
      %1038 = vrot.lane.b32.xlu0 %v271, 24
      %v1039 = vpop.permute.xlu0 %1038
      %1040 = vrot.lane.b32.xlu0 %v273, 24
      %v1041 = vpop.permute.xlu0 %1040
      %1042 = vrot.lane.b32.xlu0 %v274, 24
      %v1043 = vpop.permute.xlu0 %1042
      %1044 = vrot.lane.b32.xlu0 %v276, 24
      %v1045 = vpop.permute.xlu0 %1044
      %1046 = vrot.lane.b32.xlu0 %v277, 24
      %v1047 = vpop.permute.xlu0 %1046
      %v1081 = vrot.slane %v276, 1
      %v1082 = vrot.slane %v277, 1
      %v1083 = vsel %vm327, %v1081, %v1082
      %v1084 = vrot.slane %v278, 1
      %v1085 = vsel %vm327, %v1082, %v1084
      %1086 = vrot.lane.b32.xlu0 %v340, 28
      %v1087 = vpop.permute.xlu0 %1086
      %1088 = vrot.lane.b32.xlu0 %v342, 28
      %v1089 = vpop.permute.xlu0 %1088
      %1090 = vrot.lane.b32.xlu0 %v345, 28
      %v1091 = vpop.permute.xlu0 %1090
      %1092 = vrot.lane.b32.xlu0 %v347, 28
      %v1093 = vpop.permute.xlu0 %1092
      %1094 = vrot.lane.b32.xlu0 %v350, 28
      %v1095 = vpop.permute.xlu0 %1094
      %1096 = vrot.lane.b32.xlu0 %v352, 28
      %v1097 = vpop.permute.xlu0 %1096
      %1098 = vrot.lane.b32.xlu0 %v355, 28
      %v1099 = vpop.permute.xlu0 %1098
      %1100 = vrot.lane.b32.xlu0 %v357, 28
      %v1101 = vpop.permute.xlu0 %1100
      %1102 = vrot.lane.b32.xlu0 %v360, 28
      %v1103 = vpop.permute.xlu0 %1102
      %1104 = vrot.lane.b32.xlu0 %v362, 28
      %v1105 = vpop.permute.xlu0 %1104
      %1106 = vrot.lane.b32.xlu0 %v365, 28
      %v1107 = vpop.permute.xlu0 %1106
      %1108 = vrot.lane.b32.xlu0 %v367, 28
      %v1109 = vpop.permute.xlu0 %1108
      %1110 = vrot.lane.b32.xlu0 %v370, 28
      %v1111 = vpop.permute.xlu0 %1110
      %1112 = vrot.lane.b32.xlu0 %v372, 28
      %v1113 = vpop.permute.xlu0 %1112
      %1114 = vrot.lane.b32.xlu0 %v375, 28
      %v1115 = vpop.permute.xlu0 %1114
      %1116 = vrot.lane.b32.xlu0 %v377, 28
      %v1117 = vpop.permute.xlu0 %1116
      %1118 = vrot.lane.b32.xlu0 %v380, 28
      %v1119 = vpop.permute.xlu0 %1118
      %1120 = vrot.lane.b32.xlu0 %v382, 28
      %v1121 = vpop.permute.xlu0 %1120
      %1122 = vrot.lane.b32.xlu0 %v385, 28
      %v1123 = vpop.permute.xlu0 %1122
      %1124 = vrot.lane.b32.xlu0 %v387, 28
      %v1125 = vpop.permute.xlu0 %1124
      %1126 = vrot.lane.b32.xlu0 %v390, 28
      %v1127 = vpop.permute.xlu0 %1126
      %1128 = vrot.lane.b32.xlu0 %v392, 28
      %v1129 = vpop.permute.xlu0 %1128
      %1130 = vrot.lane.b32.xlu0 %v395, 28
      %v1131 = vpop.permute.xlu0 %1130
      %1132 = vrot.lane.b32.xlu0 %v397, 28
      %v1133 = vpop.permute.xlu0 %1132
      %1134 = vrot.lane.b32.xlu0 %v400, 28
      %v1135 = vpop.permute.xlu0 %1134
      %1136 = vrot.lane.b32.xlu0 %v402, 28
      %v1137 = vpop.permute.xlu0 %1136
      %1138 = vrot.lane.b32.xlu0 %v405, 28
      %v1139 = vpop.permute.xlu0 %1138
      %1140 = vrot.lane.b32.xlu0 %v407, 28
      %v1141 = vpop.permute.xlu0 %1140
      %1142 = vrot.lane.b32.xlu0 %v782, 28
      %v1143 = vpop.permute.xlu0 %1142
      %1144 = vrot.lane.b32.xlu0 %v784, 28
      %v1145 = vpop.permute.xlu0 %1144
      %1146 = vrot.lane.b32.xlu0 %v1083, 28
      %v1147 = vpop.permute.xlu0 %1146
      %1148 = vrot.lane.b32.xlu0 %v1085, 28
      %v1149 = vpop.permute.xlu0 %1148
      %v1182 = vrot.slane %v276, 2
      %v1183 = vrot.slane %v277, 2
      %v1184 = vsel %vm504, %v1182, %v1183
      %v1185 = vrot.slane %v278, 2
      %v1186 = vsel %vm504, %v1183, %v1185
      %1187 = vrot.lane.b32.xlu0 %v517, 32
      %v1188 = vpop.permute.xlu0 %1187
      %1189 = vrot.lane.b32.xlu0 %v519, 32
      %v1190 = vpop.permute.xlu0 %1189
      %1191 = vrot.lane.b32.xlu0 %v522, 32
      %v1192 = vpop.permute.xlu0 %1191
      %1193 = vrot.lane.b32.xlu0 %v524, 32
      %v1194 = vpop.permute.xlu0 %1193
      %1195 = vrot.lane.b32.xlu0 %v527, 32
      %v1196 = vpop.permute.xlu0 %1195
      %1197 = vrot.lane.b32.xlu0 %v529, 32
      %v1198 = vpop.permute.xlu0 %1197
      %1199 = vrot.lane.b32.xlu0 %v532, 32
      %v1200 = vpop.permute.xlu0 %1199
      %1201 = vrot.lane.b32.xlu0 %v534, 32
      %v1202 = vpop.permute.xlu0 %1201
      %1203 = vrot.lane.b32.xlu0 %v537, 32
      %v1204 = vpop.permute.xlu0 %1203
      %1205 = vrot.lane.b32.xlu0 %v539, 32
      %v1206 = vpop.permute.xlu0 %1205
      %1207 = vrot.lane.b32.xlu0 %v542, 32
      %v1208 = vpop.permute.xlu0 %1207
      %1209 = vrot.lane.b32.xlu0 %v544, 32
      %v1210 = vpop.permute.xlu0 %1209
      %1211 = vrot.lane.b32.xlu0 %v547, 32
      %v1212 = vpop.permute.xlu0 %1211
      %1213 = vrot.lane.b32.xlu0 %v549, 32
      %v1214 = vpop.permute.xlu0 %1213
      %1215 = vrot.lane.b32.xlu0 %v552, 32
      %v1216 = vpop.permute.xlu0 %1215
      %1217 = vrot.lane.b32.xlu0 %v554, 32
      %v1218 = vpop.permute.xlu0 %1217
      %1219 = vrot.lane.b32.xlu0 %v557, 32
      %v1220 = vpop.permute.xlu0 %1219
      %1221 = vrot.lane.b32.xlu0 %v559, 32
      %v1222 = vpop.permute.xlu0 %1221
      %1223 = vrot.lane.b32.xlu0 %v562, 32
      %v1224 = vpop.permute.xlu0 %1223
      %1225 = vrot.lane.b32.xlu0 %v564, 32
      %v1226 = vpop.permute.xlu0 %1225
      %1227 = vrot.lane.b32.xlu0 %v567, 32
      %v1228 = vpop.permute.xlu0 %1227
      %1229 = vrot.lane.b32.xlu0 %v569, 32
      %v1230 = vpop.permute.xlu0 %1229
      %1231 = vrot.lane.b32.xlu0 %v572, 32
      %v1232 = vpop.permute.xlu0 %1231
      %1233 = vrot.lane.b32.xlu0 %v574, 32
      %v1234 = vpop.permute.xlu0 %1233
      %1235 = vrot.lane.b32.xlu0 %v577, 32
      %v1236 = vpop.permute.xlu0 %1235
      %1237 = vrot.lane.b32.xlu0 %v579, 32
      %v1238 = vpop.permute.xlu0 %1237
      %1239 = vrot.lane.b32.xlu0 %v582, 32
      %v1240 = vpop.permute.xlu0 %1239
      %1241 = vrot.lane.b32.xlu0 %v584, 32
      %v1242 = vpop.permute.xlu0 %1241
      %1243 = vrot.lane.b32.xlu0 %v883, 32
      %v1244 = vpop.permute.xlu0 %1243
      %1245 = vrot.lane.b32.xlu0 %v885, 32
      %v1246 = vpop.permute.xlu0 %1245
      %1247 = vrot.lane.b32.xlu0 %v1184, 32
      %v1248 = vpop.permute.xlu0 %1247
      %1249 = vrot.lane.b32.xlu0 %v1186, 32
      %v1250 = vpop.permute.xlu0 %1249
      %vm1283 = vcmask 31744
      %v1284 = vsel %vm1283, %v225, %v409
      %v1285 = vsel %vm1283, %v226, %v411
      %v1286 = vsel %vm1283, %v228, %v413
      %v1287 = vsel %vm1283, %v229, %v415
      %v1288 = vsel %vm1283, %v231, %v417
      %v1289 = vsel %vm1283, %v232, %v419
      %v1290 = vsel %vm1283, %v234, %v421
      %v1291 = vsel %vm1283, %v235, %v423
      %v1292 = vsel %vm1283, %v237, %v425
      %v1293 = vsel %vm1283, %v238, %v427
      %v1294 = vsel %vm1283, %v240, %v429
      %v1295 = vsel %vm1283, %v241, %v431
      %v1296 = vsel %vm1283, %v243, %v433
      %v1297 = vsel %vm1283, %v244, %v435
      %v1298 = vsel %vm1283, %v246, %v437
      %v1299 = vsel %vm1283, %v247, %v439
      %v1300 = vsel %vm1283, %v249, %v441
      %v1301 = vsel %vm1283, %v250, %v443
      %v1302 = vsel %vm1283, %v252, %v445
      %v1303 = vsel %vm1283, %v253, %v447
      %v1304 = vsel %vm1283, %v255, %v449
      %v1305 = vsel %vm1283, %v256, %v451
      %v1306 = vsel %vm1283, %v258, %v453
      %v1307 = vsel %vm1283, %v259, %v455
      %v1308 = vsel %vm1283, %v261, %v457
      %v1309 = vsel %vm1283, %v262, %v459
      %v1310 = vsel %vm1283, %v264, %v461
      %v1311 = vsel %vm1283, %v265, %v463
      %v1312 = vsel %vm1283, %v267, %v465
      %v1313 = vsel %vm1283, %v268, %v467
      %v1314 = vsel %vm1283, %v270, %v469
      %v1315 = vsel %vm1283, %v271, %v471
      %vm1316 = vcmask 64512
      %v1317 = vsel %vm1316, %v1284, %v586
      %v1318 = vsel %vm1316, %v1285, %v588
      %v1319 = vsel %vm1316, %v1286, %v590
      %v1320 = vsel %vm1316, %v1287, %v592
      %v1321 = vsel %vm1316, %v1288, %v594
      %v1322 = vsel %vm1316, %v1289, %v596
      %v1323 = vsel %vm1316, %v1290, %v598
      %v1324 = vsel %vm1316, %v1291, %v600
      %v1325 = vsel %vm1316, %v1292, %v602
      %v1326 = vsel %vm1316, %v1293, %v604
      %v1327 = vsel %vm1316, %v1294, %v606
      %v1328 = vsel %vm1316, %v1295, %v608
      %v1329 = vsel %vm1316, %v1296, %v610
      %v1330 = vsel %vm1316, %v1297, %v612
      %v1331 = vsel %vm1316, %v1298, %v614
      %v1332 = vsel %vm1316, %v1299, %v616
      %v1333 = vsel %vm1316, %v1300, %v618
      %v1334 = vsel %vm1316, %v1301, %v620
      %v1335 = vsel %vm1316, %v1302, %v622
      %v1336 = vsel %vm1316, %v1303, %v624
      %v1337 = vsel %vm1316, %v1304, %v626
      %v1338 = vsel %vm1316, %v1305, %v628
      %v1339 = vsel %vm1316, %v1306, %v630
      %v1340 = vsel %vm1316, %v1307, %v632
      %v1341 = vsel %vm1316, %v1308, %v634
      %v1342 = vsel %vm1316, %v1309, %v636
      %v1343 = vsel %vm1316, %v1310, %v638
      %v1344 = vsel %vm1316, %v1311, %v640
      %v1345 = vsel %vm1316, %v1312, %v642
      %v1346 = vsel %vm1316, %v1313, %v644
      %v1347 = vsel %vm1316, %v1314, %v646
      %v1348 = vsel %vm1316, %v1315, %v648
      %vm1349 = vcmask 97280
      %v1350 = vsel %vm1349, %v1317, %v684
      %v1351 = vsel %vm1349, %v1318, %v686
      %v1352 = vsel %vm1349, %v1319, %v688
      %v1353 = vsel %vm1349, %v1320, %v690
      %v1354 = vsel %vm1349, %v1321, %v692
      %v1355 = vsel %vm1349, %v1322, %v694
      %v1356 = vsel %vm1349, %v1323, %v696
      %v1357 = vsel %vm1349, %v1324, %v698
      %v1358 = vsel %vm1349, %v1325, %v700
      %v1359 = vsel %vm1349, %v1326, %v702
      %v1360 = vsel %vm1349, %v1327, %v704
      %v1361 = vsel %vm1349, %v1328, %v706
      %v1362 = vsel %vm1349, %v1329, %v708
      %v1363 = vsel %vm1349, %v1330, %v710
      %v1364 = vsel %vm1349, %v1331, %v712
      %v1365 = vsel %vm1349, %v1332, %v714
      %v1366 = vsel %vm1349, %v1333, %v716
      %v1367 = vsel %vm1349, %v1334, %v718
      %v1368 = vsel %vm1349, %v1335, %v720
      %v1369 = vsel %vm1349, %v1336, %v722
      %v1370 = vsel %vm1349, %v1337, %v724
      %v1371 = vsel %vm1349, %v1338, %v726
      %v1372 = vsel %vm1349, %v1339, %v728
      %v1373 = vsel %vm1349, %v1340, %v730
      %v1374 = vsel %vm1349, %v1341, %v732
      %v1375 = vsel %vm1349, %v1342, %v734
      %v1376 = vsel %vm1349, %v1343, %v736
      %v1377 = vsel %vm1349, %v1344, %v738
      %v1378 = vsel %vm1349, %v1345, %v740
      %v1379 = vsel %vm1349, %v1346, %v742
      %v1380 = vsel %vm1349, %v1347, %v744
      %v1381 = vsel %vm1349, %v1348, %v746
      %vm1382 = vcmask 130048
      %v1383 = vsel %vm1382, %v1350, %v786
      %v1384 = vsel %vm1382, %v1351, %v788
      %v1385 = vsel %vm1382, %v1352, %v790
      %v1386 = vsel %vm1382, %v1353, %v792
      %v1387 = vsel %vm1382, %v1354, %v794
      %v1388 = vsel %vm1382, %v1355, %v796
      %v1389 = vsel %vm1382, %v1356, %v798
      %v1390 = vsel %vm1382, %v1357, %v800
      %v1391 = vsel %vm1382, %v1358, %v802
      %v1392 = vsel %vm1382, %v1359, %v804
      %v1393 = vsel %vm1382, %v1360, %v806
      %v1394 = vsel %vm1382, %v1361, %v808
      %v1395 = vsel %vm1382, %v1362, %v810
      %v1396 = vsel %vm1382, %v1363, %v812
      %v1397 = vsel %vm1382, %v1364, %v814
      %v1398 = vsel %vm1382, %v1365, %v816
      %v1399 = vsel %vm1382, %v1366, %v818
      %v1400 = vsel %vm1382, %v1367, %v820
      %v1401 = vsel %vm1382, %v1368, %v822
      %v1402 = vsel %vm1382, %v1369, %v824
      %v1403 = vsel %vm1382, %v1370, %v826
      %v1404 = vsel %vm1382, %v1371, %v828
      %v1405 = vsel %vm1382, %v1372, %v830
      %v1406 = vsel %vm1382, %v1373, %v832
      %v1407 = vsel %vm1382, %v1374, %v834
      %v1408 = vsel %vm1382, %v1375, %v836
      %v1409 = vsel %vm1382, %v1376, %v838
      %v1410 = vsel %vm1382, %v1377, %v840
      %v1411 = vsel %vm1382, %v1378, %v842
      %v1412 = vsel %vm1382, %v1379, %v844
      %v1413 = vsel %vm1382, %v1380, %v846
      %v1414 = vsel %vm1382, %v1381, %v848
      %vm1415 = vcmask 162816
      %v1416 = vsel %vm1415, %v1383, %v887
      %v1417 = vsel %vm1415, %v1384, %v889
      %v1418 = vsel %vm1415, %v1385, %v891
      %v1419 = vsel %vm1415, %v1386, %v893
      %v1420 = vsel %vm1415, %v1387, %v895
      %v1421 = vsel %vm1415, %v1388, %v897
      %v1422 = vsel %vm1415, %v1389, %v899
      %v1423 = vsel %vm1415, %v1390, %v901
      %v1424 = vsel %vm1415, %v1391, %v903
      %v1425 = vsel %vm1415, %v1392, %v905
      %v1426 = vsel %vm1415, %v1393, %v907
      %v1427 = vsel %vm1415, %v1394, %v909
      %v1428 = vsel %vm1415, %v1395, %v911
      %v1429 = vsel %vm1415, %v1396, %v913
      %v1430 = vsel %vm1415, %v1397, %v915
      %v1431 = vsel %vm1415, %v1398, %v917
      %v1432 = vsel %vm1415, %v1399, %v919
      %v1433 = vsel %vm1415, %v1400, %v921
      %v1434 = vsel %vm1415, %v1401, %v923
      %v1435 = vsel %vm1415, %v1402, %v925
      %v1436 = vsel %vm1415, %v1403, %v927
      %v1437 = vsel %vm1415, %v1404, %v929
      %v1438 = vsel %vm1415, %v1405, %v931
      %v1439 = vsel %vm1415, %v1406, %v933
      %v1440 = vsel %vm1415, %v1407, %v935
      %v1441 = vsel %vm1415, %v1408, %v937
      %v1442 = vsel %vm1415, %v1409, %v939
      %v1443 = vsel %vm1415, %v1410, %v941
      %v1444 = vsel %vm1415, %v1411, %v943
      %v1445 = vsel %vm1415, %v1412, %v945
      %v1446 = vsel %vm1415, %v1413, %v947
      %v1447 = vsel %vm1415, %v1414, %v949
      %vm1448 = vcmask 195584
      %v1449 = vsel %vm1448, %v1416, %v985
      %v1450 = vsel %vm1448, %v1417, %v987
      %v1451 = vsel %vm1448, %v1418, %v989
      %v1452 = vsel %vm1448, %v1419, %v991
      %v1453 = vsel %vm1448, %v1420, %v993
      %v1454 = vsel %vm1448, %v1421, %v995
      %v1455 = vsel %vm1448, %v1422, %v997
      %v1456 = vsel %vm1448, %v1423, %v999
      %v1457 = vsel %vm1448, %v1424, %v1001
      %v1458 = vsel %vm1448, %v1425, %v1003
      %v1459 = vsel %vm1448, %v1426, %v1005
      %v1460 = vsel %vm1448, %v1427, %v1007
      %v1461 = vsel %vm1448, %v1428, %v1009
      %v1462 = vsel %vm1448, %v1429, %v1011
      %v1463 = vsel %vm1448, %v1430, %v1013
      %v1464 = vsel %vm1448, %v1431, %v1015
      %v1465 = vsel %vm1448, %v1432, %v1017
      %v1466 = vsel %vm1448, %v1433, %v1019
      %v1467 = vsel %vm1448, %v1434, %v1021
      %v1468 = vsel %vm1448, %v1435, %v1023
      %v1469 = vsel %vm1448, %v1436, %v1025
      %v1470 = vsel %vm1448, %v1437, %v1027
      %v1471 = vsel %vm1448, %v1438, %v1029
      %v1472 = vsel %vm1448, %v1439, %v1031
      %v1473 = vsel %vm1448, %v1440, %v1033
      %v1474 = vsel %vm1448, %v1441, %v1035
      %v1475 = vsel %vm1448, %v1442, %v1037
      %v1476 = vsel %vm1448, %v1443, %v1039
      %v1477 = vsel %vm1448, %v1444, %v1041
      %v1478 = vsel %vm1448, %v1445, %v1043
      %v1479 = vsel %vm1448, %v1446, %v1045
      %v1480 = vsel %vm1448, %v1447, %v1047
      %vm1481 = vcmask 228352
      %v1482 = vsel %vm1481, %v1449, %v1087
      %v1483 = vsel %vm1481, %v1450, %v1089
      %v1484 = vsel %vm1481, %v1451, %v1091
      %v1485 = vsel %vm1481, %v1452, %v1093
      %v1486 = vsel %vm1481, %v1453, %v1095
      %v1487 = vsel %vm1481, %v1454, %v1097
      %v1488 = vsel %vm1481, %v1455, %v1099
      %v1489 = vsel %vm1481, %v1456, %v1101
      %v1490 = vsel %vm1481, %v1457, %v1103
      %v1491 = vsel %vm1481, %v1458, %v1105
      %v1492 = vsel %vm1481, %v1459, %v1107
      %v1493 = vsel %vm1481, %v1460, %v1109
      %v1494 = vsel %vm1481, %v1461, %v1111
      %v1495 = vsel %vm1481, %v1462, %v1113
      %v1496 = vsel %vm1481, %v1463, %v1115
      %v1497 = vsel %vm1481, %v1464, %v1117
      %v1498 = vsel %vm1481, %v1465, %v1119
      %v1499 = vsel %vm1481, %v1466, %v1121
      %v1500 = vsel %vm1481, %v1467, %v1123
      %v1501 = vsel %vm1481, %v1468, %v1125
      %v1502 = vsel %vm1481, %v1469, %v1127
      %v1503 = vsel %vm1481, %v1470, %v1129
      %v1504 = vsel %vm1481, %v1471, %v1131
      %v1505 = vsel %vm1481, %v1472, %v1133
      %v1506 = vsel %vm1481, %v1473, %v1135
      %v1507 = vsel %vm1481, %v1474, %v1137
      %v1508 = vsel %vm1481, %v1475, %v1139
      %v1509 = vsel %vm1481, %v1476, %v1141
      %v1510 = vsel %vm1481, %v1477, %v1143
      %v1511 = vsel %vm1481, %v1478, %v1145
      %v1512 = vsel %vm1481, %v1479, %v1147
      %v1513 = vsel %vm1481, %v1480, %v1149
      %vm1514 = vcmask 261120
      %v1515 = vsel %vm1514, %v1482, %v1188
      %v1516 = vsel %vm1514, %v1483, %v1190
      %v1517 = vsel %vm1514, %v1484, %v1192
      %v1518 = vsel %vm1514, %v1485, %v1194
      %v1519 = vsel %vm1514, %v1486, %v1196
      %v1520 = vsel %vm1514, %v1487, %v1198
      %v1521 = vsel %vm1514, %v1488, %v1200
      %v1522 = vsel %vm1514, %v1489, %v1202
      %v1523 = vsel %vm1514, %v1490, %v1204
      %v1524 = vsel %vm1514, %v1491, %v1206
      %v1525 = vsel %vm1514, %v1492, %v1208
      %v1526 = vsel %vm1514, %v1493, %v1210
      %v1527 = vsel %vm1514, %v1494, %v1212
      %v1528 = vsel %vm1514, %v1495, %v1214
      %v1529 = vsel %vm1514, %v1496, %v1216
      %v1530 = vsel %vm1514, %v1497, %v1218
      %v1531 = vsel %vm1514, %v1498, %v1220
      %v1532 = vsel %vm1514, %v1499, %v1222
      %v1533 = vsel %vm1514, %v1500, %v1224
      %v1534 = vsel %vm1514, %v1501, %v1226
      %v1535 = vsel %vm1514, %v1502, %v1228
      %v1536 = vsel %vm1514, %v1503, %v1230
      %v1537 = vsel %vm1514, %v1504, %v1232
      %v1538 = vsel %vm1514, %v1505, %v1234
      %v1539 = vsel %vm1514, %v1506, %v1236
      %v1540 = vsel %vm1514, %v1507, %v1238
      %v1541 = vsel %vm1514, %v1508, %v1240
      %v1542 = vsel %vm1514, %v1509, %v1242
      %v1543 = vsel %vm1514, %v1510, %v1244
      %v1544 = vsel %vm1514, %v1511, %v1246
      %v1545 = vsel %vm1514, %v1512, %v1248
      %v1546 = vsel %vm1514, %v1513, %v1250
      %v1547 = vld [vmem:[%s1] sm:$0xff]
      %v1548 = vld [vmem:[%s1 + $0x8] sm:$0xff]
      %v1549 = vld [vmem:[%s1 + $0x10] sm:$0xff]
      %v1550 = vld [vmem:[%s1 + $0x18] sm:$0xff]
      %v1551 = vld [vmem:[%s1 + $0x20] sm:$0xff]
      %v1552 = vld [vmem:[%s1 + $0x28] sm:$0xff]
      %v1553 = vld [vmem:[%s1 + $0x30] sm:$0xff]
      %v1554 = vld [vmem:[%s1 + $0x38] sm:$0xff]
      %v1555 = vld [vmem:[%s1 + $0x40] sm:$0xf]
      %v1556 = vld [vmem:[%s1 + $0x48] sm:$0xf]
      %v1557 = vld [vmem:[%s2] sm:$0x3]
      %v1559 = vlaneseq
      %v1560 = vshrl.u32 %v1559, 7
      %v1561 = vsub.s32 0, %v1560
      %v1562 = vrot.slane %v1557, %v1561
      %v1563 = vlaneseq
      %v1564 = vshrl.u32 %v1563, 7
      %v1565 = vsub.s32 1, %v1564
      %v1566 = vrot.slane %v1557, %v1565
      %vm1569 = vcmask 293888
      %v1571 = vsel %vm1569, %v1515, 0
      %v1574 = vsel %vm1569, %v1516, 0
      %v1577 = vsel %vm1569, %v1517, 0
      %v1580 = vsel %vm1569, %v1518, 0
      %v1583 = vsel %vm1569, %v1519, 0
      %v1586 = vsel %vm1569, %v1520, 0
      %v1589 = vsel %vm1569, %v1521, 0
      %v1592 = vsel %vm1569, %v1522, 0
      %v1595 = vsel %vm1569, %v1523, 0
      %v1598 = vsel %vm1569, %v1524, 0
      %v1601 = vsel %vm1569, %v1525, 0
      %v1604 = vsel %vm1569, %v1526, 0
      %v1607 = vsel %vm1569, %v1527, 0
      %v1610 = vsel %vm1569, %v1528, 0
      %v1613 = vsel %vm1569, %v1529, 0
      %v1616 = vsel %vm1569, %v1530, 0
      %v1619 = vsel %vm1569, %v1531, 0
      %v1622 = vsel %vm1569, %v1532, 0
      %v1625 = vsel %vm1569, %v1533, 0
      %v1628 = vsel %vm1569, %v1534, 0
      %v1631 = vsel %vm1569, %v1535, 0
      %v1634 = vsel %vm1569, %v1536, 0
      %v1637 = vsel %vm1569, %v1537, 0
      %v1640 = vsel %vm1569, %v1538, 0
      %v1643 = vsel %vm1569, %v1539, 0
      %v1646 = vsel %vm1569, %v1540, 0
      %v1649 = vsel %vm1569, %v1541, 0
      %v1652 = vsel %vm1569, %v1542, 0
      %v1655 = vsel %vm1569, %v1543, 0
      %v1658 = vsel %vm1569, %v1544, 0
      %v1661 = vsel %vm1569, %v1545, 0
      %v1664 = vsel %vm1569, %v1546, 0
      %vm1666 = vcmask 1043456
      %v1668 = vsel %vm1666, %v1555, 0
      %v1671 = vsel %vm1666, %v1556, 0
      %1673 = vmatprep.subr.mxu0 %v1548
      %1674 = vmatpush1.msra.mxu0 %v1547
      %1675 = vmatprep.subr.mxu0 %v1550
      %1676 = vmatpush1.msra.mxu0 %v1549
      %1677 = vmatprep.subr.mxu0 %v1552
      %1678 = vmatpush1.msra.mxu0 %v1551
      %1679 = vmatprep.subr.mxu0 %v1554
      %1680 = vmatpush1.msra.mxu0 %v1553
      %1681 = vmatprep.subr.mxu0 %v1671
      %1682 = vmatpush1.msra.mxu0 %v1668
      %1683 = vmatprep.subr.mxu0 0.0
      %1684 = vmatpush1.msra.mxu0 0.0
      %1685 = vmatprep.subr.mxu0 0.0
      %1686 = vmatpush1.msra.mxu0 0.0
      %1687 = vmatprep.subr.mxu0 0.0
      %1688 = vmatpush1.msra.mxu0 0.0
      %1689 = vmatprep.subr.mxu0 0.0
      %1690 = vmatpush1.msra.mxu0 0.0
      %1691 = vmatprep.subr.mxu0 0.0
      %1692 = vmatpush1.msra.mxu0 0.0
      %1693 = vmatprep.subr.mxu0 0.0
      %1694 = vmatpush1.msra.mxu0 0.0
      %1695 = vmatprep.subr.mxu0 0.0
      %1696 = vmatpush1.msra.mxu0 0.0
      %1697 = vmatprep.subr.mxu0 0.0
      %1698 = vmatpush1.msra.mxu0 0.0
      %1699 = vmatprep.subr.mxu0 0.0
      %1700 = vmatpush1.msra.mxu0 0.0
      %1701 = vmatprep.subr.mxu0 0.0
      %1702 = vmatpush1.msra.mxu0 0.0
      %1703 = vmatprep.subr.mxu0 0.0
      %1704 = vmatpush1.msra.mxu0 0.0
      %1705 = vmatprep.subr.mxu0 0.0
      %1706 = vmatpush1.msra.mxu0 0.0
      %1707 = vmatprep.subr.mxu0 0.0
      %1708 = vmatpush1.msra.mxu0 0.0
      %1709 = vmatprep.subr.mxu0 0.0
      %1710 = vmatpush1.msra.mxu0 0.0
      %1711 = vmatprep.subr.mxu0 0.0
      %1712 = vmatpush1.msra.mxu0 0.0
      %1713 = vmatprep.subr.mxu0 0.0
      %1714 = vmatpush1.msra.mxu0 0.0
      %1715 = vmatprep.subr.mxu0 0.0
      %1716 = vmatpush1.msra.mxu0 0.0
      %1717 = vmatprep.subr.mxu0 0.0
      %1718 = vmatpush1.msra.mxu0 0.0
      %1719 = vmatprep.subr.mxu0 0.0
      %1720 = vmatpush1.msra.mxu0 0.0
      %1721 = vmatprep.subr.mxu0 0.0
      %1722 = vmatpush1.msra.mxu0 0.0
      %1723 = vmatprep.subr.mxu0 0.0
      %1724 = vmatpush1.msra.mxu0 0.0
      %1725 = vmatprep.subr.mxu0 0.0
      %1726 = vmatpush1.msra.mxu0 0.0
      %1727 = vmatprep.subr.mxu0 0.0
      %1728 = vmatpush1.msra.mxu0 0.0
      %1729 = vmatprep.subr.mxu0 0.0
      %1730 = vmatpush1.msra.mxu0 0.0
      %1731 = vmatprep.subr.mxu0 0.0
      %1732 = vmatpush1.msra.mxu0 0.0
      %1733 = vmatprep.subr.mxu0 0.0
      %1734 = vmatpush1.msra.mxu0 0.0
      %1735 = vmatprep.subr.mxu0 0.0
      %1736 = vmatpush1.msra.mxu0 0.0
      %1737 = vmatprep.mubr.f32.mxu0 0.0
      %1738 = vmatmul.mubr.f32.gmra.mrb[0].mxu0 %v1571
      %v1739 = vpop.f32.mrb[0].mxu0
      %v1740 = vadd.f32 %v1562, %v1739
      %v1741 = vpop.f32.mrb[0].mxu0
      %v1742 = vadd.f32 %v1566, %v1741
      %1743 = vmatprep.mubr.f32.mxu0 0.0
      %1744 = vmatmul.mubr.f32.gmra.mrb[0].mxu0 %v1574
      %v1745 = vpop.f32.mrb[0].mxu0
      %v1746 = vadd.f32 %v1562, %v1745
      %v1747 = vpop.f32.mrb[0].mxu0
      %v1748 = vadd.f32 %v1566, %v1747
      %1749 = vmatprep.mubr.f32.mxu0 0.0
      %1750 = vmatmul.mubr.f32.gmra.mrb[0].mxu0 %v1577
      %v1751 = vpop.f32.mrb[0].mxu0
      %v1752 = vadd.f32 %v1562, %v1751
      %v1753 = vpop.f32.mrb[0].mxu0
      %v1754 = vadd.f32 %v1566, %v1753
      %1755 = vmatprep.mubr.f32.mxu0 0.0
      %1756 = vmatmul.mubr.f32.gmra.mrb[0].mxu0 %v1580
      %v1757 = vpop.f32.mrb[0].mxu0
      %v1758 = vadd.f32 %v1562, %v1757
      %v1759 = vpop.f32.mrb[0].mxu0
      %v1760 = vadd.f32 %v1566, %v1759
      %1761 = vmatprep.mubr.f32.mxu0 0.0
      %1762 = vmatmul.mubr.f32.gmra.mrb[0].mxu0 %v1583
      %v1763 = vpop.f32.mrb[0].mxu0
      %v1764 = vadd.f32 %v1562, %v1763
      %v1765 = vpop.f32.mrb[0].mxu0
      %v1766 = vadd.f32 %v1566, %v1765
      %1767 = vmatprep.mubr.f32.mxu0 0.0
      %1768 = vmatmul.mubr.f32.gmra.mrb[0].mxu0 %v1586
      %v1769 = vpop.f32.mrb[0].mxu0
      %v1770 = vadd.f32 %v1562, %v1769
      %v1771 = vpop.f32.mrb[0].mxu0
      %v1772 = vadd.f32 %v1566, %v1771
      %1773 = vmatprep.mubr.f32.mxu0 0.0
      %1774 = vmatmul.mubr.f32.gmra.mrb[0].mxu0 %v1589
      %v1775 = vpop.f32.mrb[0].mxu0
      %v1776 = vadd.f32 %v1562, %v1775
      %v1777 = vpop.f32.mrb[0].mxu0
      %v1778 = vadd.f32 %v1566, %v1777
      %1779 = vmatprep.mubr.f32.mxu0 0.0
      %1780 = vmatmul.mubr.f32.gmra.mrb[0].mxu0 %v1592
      %v1781 = vpop.f32.mrb[0].mxu0
      %v1782 = vadd.f32 %v1562, %v1781
      %v1783 = vpop.f32.mrb[0].mxu0
      %v1784 = vadd.f32 %v1566, %v1783
      %1785 = vmatprep.mubr.f32.mxu0 0.0
      %1786 = vmatmul.mubr.f32.gmra.mrb[0].mxu0 %v1595
      %v1787 = vpop.f32.mrb[0].mxu0
      %v1788 = vadd.f32 %v1562, %v1787
      %v1789 = vpop.f32.mrb[0].mxu0
      %v1790 = vadd.f32 %v1566, %v1789
      %1791 = vmatprep.mubr.f32.mxu0 0.0
      %1792 = vmatmul.mubr.f32.gmra.mrb[0].mxu0 %v1598
      %v1793 = vpop.f32.mrb[0].mxu0
      %v1794 = vadd.f32 %v1562, %v1793
      %v1795 = vpop.f32.mrb[0].mxu0
      %v1796 = vadd.f32 %v1566, %v1795
      %1797 = vmatprep.mubr.f32.mxu0 0.0
      %1798 = vmatmul.mubr.f32.gmra.mrb[0].mxu0 %v1601
      %v1799 = vpop.f32.mrb[0].mxu0
      %v1800 = vadd.f32 %v1562, %v1799
      %v1801 = vpop.f32.mrb[0].mxu0
      %v1802 = vadd.f32 %v1566, %v1801
      %1803 = vmatprep.mubr.f32.mxu0 0.0
      %1804 = vmatmul.mubr.f32.gmra.mrb[0].mxu0 %v1604
      %v1805 = vpop.f32.mrb[0].mxu0
      %v1806 = vadd.f32 %v1562, %v1805
      %v1807 = vpop.f32.mrb[0].mxu0
      %v1808 = vadd.f32 %v1566, %v1807
      %1809 = vmatprep.mubr.f32.mxu0 0.0
      %1810 = vmatmul.mubr.f32.gmra.mrb[0].mxu0 %v1607
      %v1811 = vpop.f32.mrb[0].mxu0
      %v1812 = vadd.f32 %v1562, %v1811
      %v1813 = vpop.f32.mrb[0].mxu0
      %v1814 = vadd.f32 %v1566, %v1813
      %1815 = vmatprep.mubr.f32.mxu0 0.0
      %1816 = vmatmul.mubr.f32.gmra.mrb[0].mxu0 %v1610
      %v1817 = vpop.f32.mrb[0].mxu0
      %v1818 = vadd.f32 %v1562, %v1817
      %v1819 = vpop.f32.mrb[0].mxu0
      %v1820 = vadd.f32 %v1566, %v1819
      %1821 = vmatprep.mubr.f32.mxu0 0.0
      %1822 = vmatmul.mubr.f32.gmra.mrb[0].mxu0 %v1613
      %v1823 = vpop.f32.mrb[0].mxu0
      %v1824 = vadd.f32 %v1562, %v1823
      %v1825 = vpop.f32.mrb[0].mxu0
      %v1826 = vadd.f32 %v1566, %v1825
      %1827 = vmatprep.mubr.f32.mxu0 0.0
      %1828 = vmatmul.mubr.f32.gmra.mrb[0].mxu0 %v1616
      %v1829 = vpop.f32.mrb[0].mxu0
      %v1830 = vadd.f32 %v1562, %v1829
      %v1831 = vpop.f32.mrb[0].mxu0
      %v1832 = vadd.f32 %v1566, %v1831
      %1833 = vmatprep.mubr.f32.mxu0 0.0
      %1834 = vmatmul.mubr.f32.gmra.mrb[0].mxu0 %v1619
      %v1835 = vpop.f32.mrb[0].mxu0
      %v1836 = vadd.f32 %v1562, %v1835
      %v1837 = vpop.f32.mrb[0].mxu0
      %v1838 = vadd.f32 %v1566, %v1837
      %1839 = vmatprep.mubr.f32.mxu0 0.0
      %1840 = vmatmul.mubr.f32.gmra.mrb[0].mxu0 %v1622
      %v1841 = vpop.f32.mrb[0].mxu0
      %v1842 = vadd.f32 %v1562, %v1841
      %v1843 = vpop.f32.mrb[0].mxu0
      %v1844 = vadd.f32 %v1566, %v1843
      %1845 = vmatprep.mubr.f32.mxu0 0.0
      %1846 = vmatmul.mubr.f32.gmra.mrb[0].mxu0 %v1625
      %v1847 = vpop.f32.mrb[0].mxu0
      %v1848 = vadd.f32 %v1562, %v1847
      %v1849 = vpop.f32.mrb[0].mxu0
      %v1850 = vadd.f32 %v1566, %v1849
      %1851 = vmatprep.mubr.f32.mxu0 0.0
      %1852 = vmatmul.mubr.f32.gmra.mrb[0].mxu0 %v1628
      %v1853 = vpop.f32.mrb[0].mxu0
      %v1854 = vadd.f32 %v1562, %v1853
      %v1855 = vpop.f32.mrb[0].mxu0
      %v1856 = vadd.f32 %v1566, %v1855
      %1857 = vmatprep.mubr.f32.mxu0 0.0
      %1858 = vmatmul.mubr.f32.gmra.mrb[0].mxu0 %v1631
      %v1859 = vpop.f32.mrb[0].mxu0
      %v1860 = vadd.f32 %v1562, %v1859
      %v1861 = vpop.f32.mrb[0].mxu0
      %v1862 = vadd.f32 %v1566, %v1861
      %1863 = vmatprep.mubr.f32.mxu0 0.0
      %1864 = vmatmul.mubr.f32.gmra.mrb[0].mxu0 %v1634
      %v1865 = vpop.f32.mrb[0].mxu0
      %v1866 = vadd.f32 %v1562, %v1865
      %v1867 = vpop.f32.mrb[0].mxu0
      %v1868 = vadd.f32 %v1566, %v1867
      %1869 = vmatprep.mubr.f32.mxu0 0.0
      %1870 = vmatmul.mubr.f32.gmra.mrb[0].mxu0 %v1637
      %v1871 = vpop.f32.mrb[0].mxu0
      %v1872 = vadd.f32 %v1562, %v1871
      %v1873 = vpop.f32.mrb[0].mxu0
      %v1874 = vadd.f32 %v1566, %v1873
      %1875 = vmatprep.mubr.f32.mxu0 0.0
      %1876 = vmatmul.mubr.f32.gmra.mrb[0].mxu0 %v1640
      %v1877 = vpop.f32.mrb[0].mxu0
      %v1878 = vadd.f32 %v1562, %v1877
      %v1879 = vpop.f32.mrb[0].mxu0
      %v1880 = vadd.f32 %v1566, %v1879
      %1881 = vmatprep.mubr.f32.mxu0 0.0
      %1882 = vmatmul.mubr.f32.gmra.mrb[0].mxu0 %v1643
      %v1883 = vpop.f32.mrb[0].mxu0
      %v1884 = vadd.f32 %v1562, %v1883
      %v1885 = vpop.f32.mrb[0].mxu0
      %v1886 = vadd.f32 %v1566, %v1885
      %1887 = vmatprep.mubr.f32.mxu0 0.0
      %1888 = vmatmul.mubr.f32.gmra.mrb[0].mxu0 %v1646
      %v1889 = vpop.f32.mrb[0].mxu0
      %v1890 = vadd.f32 %v1562, %v1889
      %v1891 = vpop.f32.mrb[0].mxu0
      %v1892 = vadd.f32 %v1566, %v1891
      %1893 = vmatprep.mubr.f32.mxu0 0.0
      %1894 = vmatmul.mubr.f32.gmra.mrb[0].mxu0 %v1649
      %v1895 = vpop.f32.mrb[0].mxu0
      %v1896 = vadd.f32 %v1562, %v1895
      %v1897 = vpop.f32.mrb[0].mxu0
      %v1898 = vadd.f32 %v1566, %v1897
      %1899 = vmatprep.mubr.f32.mxu0 0.0
      %1900 = vmatmul.mubr.f32.gmra.mrb[0].mxu0 %v1652
      %v1901 = vpop.f32.mrb[0].mxu0
      %v1902 = vadd.f32 %v1562, %v1901
      %v1903 = vpop.f32.mrb[0].mxu0
      %v1904 = vadd.f32 %v1566, %v1903
      %1905 = vmatprep.mubr.f32.mxu0 0.0
      %1906 = vmatmul.mubr.f32.gmra.mrb[0].mxu0 %v1655
      %v1907 = vpop.f32.mrb[0].mxu0
      %v1908 = vadd.f32 %v1562, %v1907
      %v1909 = vpop.f32.mrb[0].mxu0
      %v1910 = vadd.f32 %v1566, %v1909
      %1911 = vmatprep.mubr.f32.mxu0 0.0
      %1912 = vmatmul.mubr.f32.gmra.mrb[0].mxu0 %v1658
      %v1913 = vpop.f32.mrb[0].mxu0
      %v1914 = vadd.f32 %v1562, %v1913
      %v1915 = vpop.f32.mrb[0].mxu0
      %v1916 = vadd.f32 %v1566, %v1915
      %1917 = vmatprep.mubr.f32.mxu0 0.0
      %1918 = vmatmul.mubr.f32.gmra.mrb[0].mxu0 %v1661
      %v1919 = vpop.f32.mrb[0].mxu0
      %v1920 = vadd.f32 %v1562, %v1919
      %v1921 = vpop.f32.mrb[0].mxu0
      %v1922 = vadd.f32 %v1566, %v1921
      %1923 = vmatprep.mubr.f32.mxu0 0.0
      %1924 = vmatmul.mubr.f32.gmra.mrb[0].mxu0 %v1664
      %v1925 = vpop.f32.mrb[0].mxu0
      %v1926 = vadd.f32 %v1562, %v1925
      %v1927 = vpop.f32.mrb[0].mxu0
      %v1928 = vadd.f32 %v1566, %v1927
      %1929 = vdwg.mxu0
      %1930 = vst.msk [vmem:[#allocation2] sm:$0xff] %vm1514, 0.0
      %1931 = vst.msk [vmem:[#allocation2 + $0x8] sm:$0xff] %vm1514, 0.0
      %vm1932 = vcmask 254976
      %1933 = vst.msk [vmem:[#allocation2 + $0x10] sm:$0x3] %vm1932, 0.0
      %s1934 = scalar_lea.vmem [#allocation2], 408
      %1935 = vst.msk [vmem:[%s1934] sm:$0xff] %vm1514, 0.0
      %1936 = vst.msk [vmem:[%s1934 + $0x8] sm:$0xff] %vm1514, 0.0
      %1937 = vst.msk [vmem:[%s1934 + $0x10] sm:$0x3] %vm1932, 0.0
      %s1938 = scalar_lea.vmem [#allocation2], 24
      %vm1939 = vcmask 253952
      %1940 = vst.msk [vmem:[%s1938] sm:$0x1] %vm1939, 0.0
      %1941 = vst.msk [vmem:[%s1938 + $0x18] sm:$0x1] %vm1939, 0.0
      %1942 = vst.msk [vmem:[%s1938 + $0x30] sm:$0x1] %vm1939, 0.0
      %1943 = vst.msk [vmem:[%s1938 + $0x48] sm:$0x1] %vm1939, 0.0
      %1944 = vst.msk [vmem:[%s1938 + $0x60] sm:$0x1] %vm1939, 0.0
      %1945 = vst.msk [vmem:[%s1938 + $0x78] sm:$0x1] %vm1939, 0.0
      %1946 = vst.msk [vmem:[%s1938 + $0x90] sm:$0x1] %vm1939, 0.0
      %1947 = vst.msk [vmem:[%s1938 + $0xa8] sm:$0x1] %vm1939, 0.0
      %1948 = vst.msk [vmem:[%s1938 + $0xc0] sm:$0x1] %vm1939, 0.0
      %1949 = vst.msk [vmem:[%s1938 + $0xd8] sm:$0x1] %vm1939, 0.0
      %1950 = vst.msk [vmem:[%s1938 + $0xf0] sm:$0x1] %vm1939, 0.0
      %1951 = vst.msk [vmem:[%s1938 + $0x108] sm:$0x1] %vm1939, 0.0
      %1952 = vst.msk [vmem:[%s1938 + $0x120] sm:$0x1] %vm1939, 0.0
      %1953 = vst.msk [vmem:[%s1938 + $0x138] sm:$0x1] %vm1939, 0.0
      %1954 = vst.msk [vmem:[%s1938 + $0x150] sm:$0x1] %vm1939, 0.0
      %1955 = vst.msk [vmem:[%s1938 + $0x168] sm:$0x1] %vm1939, 0.0
      %1956 = vst.msk [vmem:[%s1938 + $0x11] sm:$0x1] %vm1939, 0.0
      %1957 = vst.msk [vmem:[%s1938 + $0x29] sm:$0x1] %vm1939, 0.0
      %1958 = vst.msk [vmem:[%s1938 + $0x41] sm:$0x1] %vm1939, 0.0
      %1959 = vst.msk [vmem:[%s1938 + $0x59] sm:$0x1] %vm1939, 0.0
      %1960 = vst.msk [vmem:[%s1938 + $0x71] sm:$0x1] %vm1939, 0.0
      %1961 = vst.msk [vmem:[%s1938 + $0x89] sm:$0x1] %vm1939, 0.0
      %1962 = vst.msk [vmem:[%s1938 + $0xa1] sm:$0x1] %vm1939, 0.0
      %1963 = vst.msk [vmem:[%s1938 + $0xb9] sm:$0x1] %vm1939, 0.0
      %1964 = vst.msk [vmem:[%s1938 + $0xd1] sm:$0x1] %vm1939, 0.0
      %1965 = vst.msk [vmem:[%s1938 + $0xe9] sm:$0x1] %vm1939, 0.0
      %1966 = vst.msk [vmem:[%s1938 + $0x101] sm:$0x1] %vm1939, 0.0
      %1967 = vst.msk [vmem:[%s1938 + $0x119] sm:$0x1] %vm1939, 0.0
      %1968 = vst.msk [vmem:[%s1938 + $0x131] sm:$0x1] %vm1939, 0.0
      %1969 = vst.msk [vmem:[%s1938 + $0x149] sm:$0x1] %vm1939, 0.0
      %1970 = vst.msk [vmem:[%s1938 + $0x161] sm:$0x1] %vm1939, 0.0
      %1971 = vst.msk [vmem:[%s1938 + $0x179] sm:$0x1] %vm1939, 0.0
      %s1972 = scalar_lea.vmem [#allocation2], 432
      %1973 = vst.msk [vmem:[%s1972] sm:$0xff] %vm1514, 0.0
      %1974 = vst.msk [vmem:[%s1972 + $0x8] sm:$0xff] %vm1514, 0.0
      %1975 = vst.msk [vmem:[%s1972 + $0x10] sm:$0x3] %vm1932, 0.0
      %s1976 = scalar_lea.vmem [#allocation2], 840
      %1977 = vst.msk [vmem:[%s1976] sm:$0xff] %vm1514, 0.0
      %1978 = vst.msk [vmem:[%s1976 + $0x8] sm:$0xff] %vm1514, 0.0
      %1979 = vst.msk [vmem:[%s1976 + $0x10] sm:$0x3] %vm1932, 0.0
      %s1980 = scalar_lea.vmem [#allocation2], 456
      %1981 = vst.msk [vmem:[%s1980] sm:$0x1] %vm1939, 0.0
      %1982 = vst.msk [vmem:[%s1980 + $0x18] sm:$0x1] %vm1939, 0.0
      %1983 = vst.msk [vmem:[%s1980 + $0x30] sm:$0x1] %vm1939, 0.0
      %1984 = vst.msk [vmem:[%s1980 + $0x48] sm:$0x1] %vm1939, 0.0
      %1985 = vst.msk [vmem:[%s1980 + $0x60] sm:$0x1] %vm1939, 0.0
      %1986 = vst.msk [vmem:[%s1980 + $0x78] sm:$0x1] %vm1939, 0.0
      %1987 = vst.msk [vmem:[%s1980 + $0x90] sm:$0x1] %vm1939, 0.0
      %1988 = vst.msk [vmem:[%s1980 + $0xa8] sm:$0x1] %vm1939, 0.0
      %1989 = vst.msk [vmem:[%s1980 + $0xc0] sm:$0x1] %vm1939, 0.0
      %1990 = vst.msk [vmem:[%s1980 + $0xd8] sm:$0x1] %vm1939, 0.0
      %1991 = vst.msk [vmem:[%s1980 + $0xf0] sm:$0x1] %vm1939, 0.0
      %1992 = vst.msk [vmem:[%s1980 + $0x108] sm:$0x1] %vm1939, 0.0
      %1993 = vst.msk [vmem:[%s1980 + $0x120] sm:$0x1] %vm1939, 0.0
      %1994 = vst.msk [vmem:[%s1980 + $0x138] sm:$0x1] %vm1939, 0.0
      %1995 = vst.msk [vmem:[%s1980 + $0x150] sm:$0x1] %vm1939, 0.0
      %1996 = vst.msk [vmem:[%s1980 + $0x168] sm:$0x1] %vm1939, 0.0
      %1997 = vst.msk [vmem:[%s1980 + $0x11] sm:$0x1] %vm1939, 0.0
      %1998 = vst.msk [vmem:[%s1980 + $0x29] sm:$0x1] %vm1939, 0.0
      %1999 = vst.msk [vmem:[%s1980 + $0x41] sm:$0x1] %vm1939, 0.0
      %2000 = vst.msk [vmem:[%s1980 + $0x59] sm:$0x1] %vm1939, 0.0
      %2001 = vst.msk [vmem:[%s1980 + $0x71] sm:$0x1] %vm1939, 0.0
      %2002 = vst.msk [vmem:[%s1980 + $0x89] sm:$0x1] %vm1939, 0.0
      %2003 = vst.msk [vmem:[%s1980 + $0xa1] sm:$0x1] %vm1939, 0.0
      %2004 = vst.msk [vmem:[%s1980 + $0xb9] sm:$0x1] %vm1939, 0.0
      %2005 = vst.msk [vmem:[%s1980 + $0xd1] sm:$0x1] %vm1939, 0.0
      %2006 = vst.msk [vmem:[%s1980 + $0xe9] sm:$0x1] %vm1939, 0.0
      %2007 = vst.msk [vmem:[%s1980 + $0x101] sm:$0x1] %vm1939, 0.0
      %2008 = vst.msk [vmem:[%s1980 + $0x119] sm:$0x1] %vm1939, 0.0
      %2009 = vst.msk [vmem:[%s1980 + $0x131] sm:$0x1] %vm1939, 0.0
      %2010 = vst.msk [vmem:[%s1980 + $0x149] sm:$0x1] %vm1939, 0.0
      %2011 = vst.msk [vmem:[%s1980 + $0x161] sm:$0x1] %vm1939, 0.0
      %2012 = vst.msk [vmem:[%s1980 + $0x179] sm:$0x1] %vm1939, 0.0
      %s2013 = scalar_lea.vmem [#allocation2], 864
      %2014 = vst.msk [vmem:[%s2013] sm:$0xff] %vm1514, 0.0
      %2015 = vst.msk [vmem:[%s2013 + $0x8] sm:$0xff] %vm1514, 0.0
      %2016 = vst.msk [vmem:[%s2013 + $0x10] sm:$0x3] %vm1932, 0.0
      %s2017 = scalar_lea.vmem [#allocation2], 1272
      %2018 = vst.msk [vmem:[%s2017] sm:$0xff] %vm1514, 0.0
      %2019 = vst.msk [vmem:[%s2017 + $0x8] sm:$0xff] %vm1514, 0.0
      %2020 = vst.msk [vmem:[%s2017 + $0x10] sm:$0x3] %vm1932, 0.0
      %s2021 = scalar_lea.vmem [#allocation2], 888
      %2022 = vst.msk [vmem:[%s2021] sm:$0x1] %vm1939, 0.0
      %2023 = vst.msk [vmem:[%s2021 + $0x18] sm:$0x1] %vm1939, 0.0
      %2024 = vst.msk [vmem:[%s2021 + $0x30] sm:$0x1] %vm1939, 0.0
      %2025 = vst.msk [vmem:[%s2021 + $0x48] sm:$0x1] %vm1939, 0.0
      %2026 = vst.msk [vmem:[%s2021 + $0x60] sm:$0x1] %vm1939, 0.0
      %2027 = vst.msk [vmem:[%s2021 + $0x78] sm:$0x1] %vm1939, 0.0
      %2028 = vst.msk [vmem:[%s2021 + $0x90] sm:$0x1] %vm1939, 0.0
      %2029 = vst.msk [vmem:[%s2021 + $0xa8] sm:$0x1] %vm1939, 0.0
      %2030 = vst.msk [vmem:[%s2021 + $0xc0] sm:$0x1] %vm1939, 0.0
      %2031 = vst.msk [vmem:[%s2021 + $0xd8] sm:$0x1] %vm1939, 0.0
      %2032 = vst.msk [vmem:[%s2021 + $0xf0] sm:$0x1] %vm1939, 0.0
      %2033 = vst.msk [vmem:[%s2021 + $0x108] sm:$0x1] %vm1939, 0.0
      %2034 = vst.msk [vmem:[%s2021 + $0x120] sm:$0x1] %vm1939, 0.0
      %2035 = vst.msk [vmem:[%s2021 + $0x138] sm:$0x1] %vm1939, 0.0
      %2036 = vst.msk [vmem:[%s2021 + $0x150] sm:$0x1] %vm1939, 0.0
      %2037 = vst.msk [vmem:[%s2021 + $0x168] sm:$0x1] %vm1939, 0.0
      %2038 = vst.msk [vmem:[%s2021 + $0x11] sm:$0x1] %vm1939, 0.0
      %2039 = vst.msk [vmem:[%s2021 + $0x29] sm:$0x1] %vm1939, 0.0
      %2040 = vst.msk [vmem:[%s2021 + $0x41] sm:$0x1] %vm1939, 0.0
      %2041 = vst.msk [vmem:[%s2021 + $0x59] sm:$0x1] %vm1939, 0.0
      %2042 = vst.msk [vmem:[%s2021 + $0x71] sm:$0x1] %vm1939, 0.0
      %2043 = vst.msk [vmem:[%s2021 + $0x89] sm:$0x1] %vm1939, 0.0
      %2044 = vst.msk [vmem:[%s2021 + $0xa1] sm:$0x1] %vm1939, 0.0
      %2045 = vst.msk [vmem:[%s2021 + $0xb9] sm:$0x1] %vm1939, 0.0
      %2046 = vst.msk [vmem:[%s2021 + $0xd1] sm:$0x1] %vm1939, 0.0
      %2047 = vst.msk [vmem:[%s2021 + $0xe9] sm:$0x1] %vm1939, 0.0
      %2048 = vst.msk [vmem:[%s2021 + $0x101] sm:$0x1] %vm1939, 0.0
      %2049 = vst.msk [vmem:[%s2021 + $0x119] sm:$0x1] %vm1939, 0.0
      %2050 = vst.msk [vmem:[%s2021 + $0x131] sm:$0x1] %vm1939, 0.0
      %2051 = vst.msk [vmem:[%s2021 + $0x149] sm:$0x1] %vm1939, 0.0
      %2052 = vst.msk [vmem:[%s2021 + $0x161] sm:$0x1] %vm1939, 0.0
      %2053 = vst.msk [vmem:[%s2021 + $0x179] sm:$0x1] %vm1939, 0.0
      %s2054 = scalar_lea.vmem [#allocation2], 1296
      %2055 = vst.msk [vmem:[%s2054] sm:$0xff] %vm1514, 0.0
      %2056 = vst.msk [vmem:[%s2054 + $0x8] sm:$0xff] %vm1514, 0.0
      %2057 = vst.msk [vmem:[%s2054 + $0x10] sm:$0x3] %vm1932, 0.0
      %s2058 = scalar_lea.vmem [#allocation2], 1704
      %2059 = vst.msk [vmem:[%s2058] sm:$0xff] %vm1514, 0.0
      %2060 = vst.msk [vmem:[%s2058 + $0x8] sm:$0xff] %vm1514, 0.0
      %2061 = vst.msk [vmem:[%s2058 + $0x10] sm:$0x3] %vm1932, 0.0
      %s2062 = scalar_lea.vmem [#allocation2], 1320
      %2063 = vst.msk [vmem:[%s2062] sm:$0x1] %vm1939, 0.0
      %2064 = vst.msk [vmem:[%s2062 + $0x18] sm:$0x1] %vm1939, 0.0
      %2065 = vst.msk [vmem:[%s2062 + $0x30] sm:$0x1] %vm1939, 0.0
      %2066 = vst.msk [vmem:[%s2062 + $0x48] sm:$0x1] %vm1939, 0.0
      %2067 = vst.msk [vmem:[%s2062 + $0x60] sm:$0x1] %vm1939, 0.0
      %2068 = vst.msk [vmem:[%s2062 + $0x78] sm:$0x1] %vm1939, 0.0
      %2069 = vst.msk [vmem:[%s2062 + $0x90] sm:$0x1] %vm1939, 0.0
      %2070 = vst.msk [vmem:[%s2062 + $0xa8] sm:$0x1] %vm1939, 0.0
      %2071 = vst.msk [vmem:[%s2062 + $0xc0] sm:$0x1] %vm1939, 0.0
      %2072 = vst.msk [vmem:[%s2062 + $0xd8] sm:$0x1] %vm1939, 0.0
      %2073 = vst.msk [vmem:[%s2062 + $0xf0] sm:$0x1] %vm1939, 0.0
      %2074 = vst.msk [vmem:[%s2062 + $0x108] sm:$0x1] %vm1939, 0.0
      %2075 = vst.msk [vmem:[%s2062 + $0x120] sm:$0x1] %vm1939, 0.0
      %2076 = vst.msk [vmem:[%s2062 + $0x138] sm:$0x1] %vm1939, 0.0
      %2077 = vst.msk [vmem:[%s2062 + $0x150] sm:$0x1] %vm1939, 0.0
      %2078 = vst.msk [vmem:[%s2062 + $0x168] sm:$0x1] %vm1939, 0.0
      %2079 = vst.msk [vmem:[%s2062 + $0x11] sm:$0x1] %vm1939, 0.0
      %2080 = vst.msk [vmem:[%s2062 + $0x29] sm:$0x1] %vm1939, 0.0
      %2081 = vst.msk [vmem:[%s2062 + $0x41] sm:$0x1] %vm1939, 0.0
      %2082 = vst.msk [vmem:[%s2062 + $0x59] sm:$0x1] %vm1939, 0.0
      %2083 = vst.msk [vmem:[%s2062 + $0x71] sm:$0x1] %vm1939, 0.0
      %2084 = vst.msk [vmem:[%s2062 + $0x89] sm:$0x1] %vm1939, 0.0
      %2085 = vst.msk [vmem:[%s2062 + $0xa1] sm:$0x1] %vm1939, 0.0
      %2086 = vst.msk [vmem:[%s2062 + $0xb9] sm:$0x1] %vm1939, 0.0
      %2087 = vst.msk [vmem:[%s2062 + $0xd1] sm:$0x1] %vm1939, 0.0
      %2088 = vst.msk [vmem:[%s2062 + $0xe9] sm:$0x1] %vm1939, 0.0
      %2089 = vst.msk [vmem:[%s2062 + $0x101] sm:$0x1] %vm1939, 0.0
      %2090 = vst.msk [vmem:[%s2062 + $0x119] sm:$0x1] %vm1939, 0.0
      %2091 = vst.msk [vmem:[%s2062 + $0x131] sm:$0x1] %vm1939, 0.0
      %2092 = vst.msk [vmem:[%s2062 + $0x149] sm:$0x1] %vm1939, 0.0
      %2093 = vst.msk [vmem:[%s2062 + $0x161] sm:$0x1] %vm1939, 0.0
      %2094 = vst.msk [vmem:[%s2062 + $0x179] sm:$0x1] %vm1939, 0.0
      %v2095 = vmax.f32 %v1740, 0.0
      %v2096 = vmax.f32 %v1746, 0.0
      %v2097 = vmax.f32 %v1752, 0.0
      %v2098 = vmax.f32 %v1758, 0.0
      %v2099 = vmax.f32 %v1764, 0.0
      %v2100 = vmax.f32 %v1770, 0.0
      %v2101 = vmax.f32 %v1776, 0.0
      %v2102 = vmax.f32 %v1782, 0.0
      %v2103 = vmax.f32 %v1788, 0.0
      %v2104 = vmax.f32 %v1794, 0.0
      %v2105 = vmax.f32 %v1800, 0.0
      %v2106 = vmax.f32 %v1806, 0.0
      %v2107 = vmax.f32 %v1812, 0.0
      %v2108 = vmax.f32 %v1818, 0.0
      %v2109 = vmax.f32 %v1824, 0.0
      %v2110 = vmax.f32 %v1830, 0.0
      %v2111 = vmax.f32 %v1836, 0.0
      %v2112 = vmax.f32 %v1842, 0.0
      %v2113 = vmax.f32 %v1848, 0.0
      %v2114 = vmax.f32 %v1854, 0.0
      %v2115 = vmax.f32 %v1860, 0.0
      %v2116 = vmax.f32 %v1866, 0.0
      %v2117 = vmax.f32 %v1872, 0.0
      %v2118 = vmax.f32 %v1878, 0.0
      %v2119 = vmax.f32 %v1884, 0.0
      %v2120 = vmax.f32 %v1890, 0.0
      %v2121 = vmax.f32 %v1896, 0.0
      %v2122 = vmax.f32 %v1902, 0.0
      %v2123 = vmax.f32 %v1908, 0.0
      %v2124 = vmax.f32 %v1914, 0.0
      %v2125 = vmax.f32 %v1920, 0.0
      %v2126 = vmax.f32 %v1926, 0.0
      %2127 = vst.msk [vmem:[%s1938 + $0x1] sm:$0xff] %vm1514, %v2095
      %2128 = vst.msk [vmem:[%s1938 + $0x9] sm:$0xff] %vm1514, %v2096
      %2129 = vst.msk [vmem:[%s1938 + $0x19] sm:$0xff] %vm1514, %v2097
      %2130 = vst.msk [vmem:[%s1938 + $0x21] sm:$0xff] %vm1514, %v2098
      %2131 = vst.msk [vmem:[%s1938 + $0x31] sm:$0xff] %vm1514, %v2099
      %2132 = vst.msk [vmem:[%s1938 + $0x39] sm:$0xff] %vm1514, %v2100
      %2133 = vst.msk [vmem:[%s1938 + $0x49] sm:$0xff] %vm1514, %v2101
      %2134 = vst.msk [vmem:[%s1938 + $0x51] sm:$0xff] %vm1514, %v2102
      %2135 = vst.msk [vmem:[%s1938 + $0x61] sm:$0xff] %vm1514, %v2103
      %2136 = vst.msk [vmem:[%s1938 + $0x69] sm:$0xff] %vm1514, %v2104
      %2137 = vst.msk [vmem:[%s1938 + $0x79] sm:$0xff] %vm1514, %v2105
      %2138 = vst.msk [vmem:[%s1938 + $0x81] sm:$0xff] %vm1514, %v2106
      %2139 = vst.msk [vmem:[%s1938 + $0x91] sm:$0xff] %vm1514, %v2107
      %2140 = vst.msk [vmem:[%s1938 + $0x99] sm:$0xff] %vm1514, %v2108
      %2141 = vst.msk [vmem:[%s1938 + $0xa9] sm:$0xff] %vm1514, %v2109
      %2142 = vst.msk [vmem:[%s1938 + $0xb1] sm:$0xff] %vm1514, %v2110
      %2143 = vst.msk [vmem:[%s1938 + $0xc1] sm:$0xff] %vm1514, %v2111
      %2144 = vst.msk [vmem:[%s1938 + $0xc9] sm:$0xff] %vm1514, %v2112
      %2145 = vst.msk [vmem:[%s1938 + $0xd9] sm:$0xff] %vm1514, %v2113
      %2146 = vst.msk [vmem:[%s1938 + $0xe1] sm:$0xff] %vm1514, %v2114
      %2147 = vst.msk [vmem:[%s1938 + $0xf1] sm:$0xff] %vm1514, %v2115
      %2148 = vst.msk [vmem:[%s1938 + $0xf9] sm:$0xff] %vm1514, %v2116
      %2149 = vst.msk [vmem:[%s1938 + $0x109] sm:$0xff] %vm1514, %v2117
      %2150 = vst.msk [vmem:[%s1938 + $0x111] sm:$0xff] %vm1514, %v2118
      %2151 = vst.msk [vmem:[%s1938 + $0x121] sm:$0xff] %vm1514, %v2119
      %2152 = vst.msk [vmem:[%s1938 + $0x129] sm:$0xff] %vm1514, %v2120
      %2153 = vst.msk [vmem:[%s1938 + $0x139] sm:$0xff] %vm1514, %v2121
      %2154 = vst.msk [vmem:[%s1938 + $0x141] sm:$0xff] %vm1514, %v2122
      %2155 = vst.msk [vmem:[%s1938 + $0x151] sm:$0xff] %vm1514, %v2123
      %2156 = vst.msk [vmem:[%s1938 + $0x159] sm:$0xff] %vm1514, %v2124
      %2157 = vst.msk [vmem:[%s1938 + $0x169] sm:$0xff] %vm1514, %v2125
      %2158 = vst.msk [vmem:[%s1938 + $0x171] sm:$0xff] %vm1514, %v2126
      %2191 = vrot.lane.b32.xlu0 %v2095, 64
      %v2192 = vpop.permute.xlu0 %2191
      %2193 = vrot.lane.b32.xlu0 %v2096, 64
      %v2194 = vpop.permute.xlu0 %2193
      %2195 = vrot.lane.b32.xlu0 %v2097, 64
      %v2196 = vpop.permute.xlu0 %2195
      %2197 = vrot.lane.b32.xlu0 %v2098, 64
      %v2198 = vpop.permute.xlu0 %2197
      %2199 = vrot.lane.b32.xlu0 %v2099, 64
      %v2200 = vpop.permute.xlu0 %2199
      %2201 = vrot.lane.b32.xlu0 %v2100, 64
      %v2202 = vpop.permute.xlu0 %2201
      %2203 = vrot.lane.b32.xlu0 %v2101, 64
      %v2204 = vpop.permute.xlu0 %2203
      %2205 = vrot.lane.b32.xlu0 %v2102, 64
      %v2206 = vpop.permute.xlu0 %2205
      %2207 = vrot.lane.b32.xlu0 %v2103, 64
      %v2208 = vpop.permute.xlu0 %2207
      %2209 = vrot.lane.b32.xlu0 %v2104, 64
      %v2210 = vpop.permute.xlu0 %2209
      %2211 = vrot.lane.b32.xlu0 %v2105, 64
      %v2212 = vpop.permute.xlu0 %2211
      %2213 = vrot.lane.b32.xlu0 %v2106, 64
      %v2214 = vpop.permute.xlu0 %2213
      %2215 = vrot.lane.b32.xlu0 %v2107, 64
      %v2216 = vpop.permute.xlu0 %2215
      %2217 = vrot.lane.b32.xlu0 %v2108, 64
      %v2218 = vpop.permute.xlu0 %2217
      %2219 = vrot.lane.b32.xlu0 %v2109, 64
      %v2220 = vpop.permute.xlu0 %2219
      %2221 = vrot.lane.b32.xlu0 %v2110, 64
      %v2222 = vpop.permute.xlu0 %2221
      %2223 = vrot.lane.b32.xlu0 %v2111, 64
      %v2224 = vpop.permute.xlu0 %2223
      %2225 = vrot.lane.b32.xlu0 %v2112, 64
      %v2226 = vpop.permute.xlu0 %2225
      %2227 = vrot.lane.b32.xlu0 %v2113, 64
      %v2228 = vpop.permute.xlu0 %2227
      %2229 = vrot.lane.b32.xlu0 %v2114, 64
      %v2230 = vpop.permute.xlu0 %2229
      %2231 = vrot.lane.b32.xlu0 %v2115, 64
      %v2232 = vpop.permute.xlu0 %2231
      %2233 = vrot.lane.b32.xlu0 %v2116, 64
      %v2234 = vpop.permute.xlu0 %2233
      %2235 = vrot.lane.b32.xlu0 %v2117, 64
      %v2236 = vpop.permute.xlu0 %2235
      %2237 = vrot.lane.b32.xlu0 %v2118, 64
      %v2238 = vpop.permute.xlu0 %2237
      %2239 = vrot.lane.b32.xlu0 %v2119, 64
      %v2240 = vpop.permute.xlu0 %2239
      %2241 = vrot.lane.b32.xlu0 %v2120, 64
      %v2242 = vpop.permute.xlu0 %2241
      %2243 = vrot.lane.b32.xlu0 %v2121, 64
      %v2244 = vpop.permute.xlu0 %2243
      %2245 = vrot.lane.b32.xlu0 %v2122, 64
      %v2246 = vpop.permute.xlu0 %2245
      %2247 = vrot.lane.b32.xlu0 %v2123, 64
      %v2248 = vpop.permute.xlu0 %2247
      %2249 = vrot.lane.b32.xlu0 %v2124, 64
      %v2250 = vpop.permute.xlu0 %2249
      %2251 = vrot.lane.b32.xlu0 %v2125, 64
      %v2252 = vpop.permute.xlu0 %2251
      %2253 = vrot.lane.b32.xlu0 %v2126, 64
      %v2254 = vpop.permute.xlu0 %2253
      %2287 = vst.msk [vmem:[%s1980 + $0x1] sm:$0xff] %vm1514, %v2192
      %2288 = vst.msk [vmem:[%s1980 + $0x9] sm:$0xff] %vm1514, %v2194
      %2289 = vst.msk [vmem:[%s1980 + $0x19] sm:$0xff] %vm1514, %v2196
      %2290 = vst.msk [vmem:[%s1980 + $0x21] sm:$0xff] %vm1514, %v2198
      %2291 = vst.msk [vmem:[%s1980 + $0x31] sm:$0xff] %vm1514, %v2200
      %2292 = vst.msk [vmem:[%s1980 + $0x39] sm:$0xff] %vm1514, %v2202
      %2293 = vst.msk [vmem:[%s1980 + $0x49] sm:$0xff] %vm1514, %v2204
      %2294 = vst.msk [vmem:[%s1980 + $0x51] sm:$0xff] %vm1514, %v2206
      %2295 = vst.msk [vmem:[%s1980 + $0x61] sm:$0xff] %vm1514, %v2208
      %2296 = vst.msk [vmem:[%s1980 + $0x69] sm:$0xff] %vm1514, %v2210
      %2297 = vst.msk [vmem:[%s1980 + $0x79] sm:$0xff] %vm1514, %v2212
      %2298 = vst.msk [vmem:[%s1980 + $0x81] sm:$0xff] %vm1514, %v2214
      %2299 = vst.msk [vmem:[%s1980 + $0x91] sm:$0xff] %vm1514, %v2216
      %2300 = vst.msk [vmem:[%s1980 + $0x99] sm:$0xff] %vm1514, %v2218
      %2301 = vst.msk [vmem:[%s1980 + $0xa9] sm:$0xff] %vm1514, %v2220
      %2302 = vst.msk [vmem:[%s1980 + $0xb1] sm:$0xff] %vm1514, %v2222
      %2303 = vst.msk [vmem:[%s1980 + $0xc1] sm:$0xff] %vm1514, %v2224
      %2304 = vst.msk [vmem:[%s1980 + $0xc9] sm:$0xff] %vm1514, %v2226
      %2305 = vst.msk [vmem:[%s1980 + $0xd9] sm:$0xff] %vm1514, %v2228
      %2306 = vst.msk [vmem:[%s1980 + $0xe1] sm:$0xff] %vm1514, %v2230
      %2307 = vst.msk [vmem:[%s1980 + $0xf1] sm:$0xff] %vm1514, %v2232
      %2308 = vst.msk [vmem:[%s1980 + $0xf9] sm:$0xff] %vm1514, %v2234
      %2309 = vst.msk [vmem:[%s1980 + $0x109] sm:$0xff] %vm1514, %v2236
      %2310 = vst.msk [vmem:[%s1980 + $0x111] sm:$0xff] %vm1514, %v2238
      %2311 = vst.msk [vmem:[%s1980 + $0x121] sm:$0xff] %vm1514, %v2240
      %2312 = vst.msk [vmem:[%s1980 + $0x129] sm:$0xff] %vm1514, %v2242
      %2313 = vst.msk [vmem:[%s1980 + $0x139] sm:$0xff] %vm1514, %v2244
      %2314 = vst.msk [vmem:[%s1980 + $0x141] sm:$0xff] %vm1514, %v2246
      %2315 = vst.msk [vmem:[%s1980 + $0x151] sm:$0xff] %vm1514, %v2248
      %2316 = vst.msk [vmem:[%s1980 + $0x159] sm:$0xff] %vm1514, %v2250
      %2317 = vst.msk [vmem:[%s1980 + $0x169] sm:$0xff] %vm1514, %v2252
      %2318 = vst.msk [vmem:[%s1980 + $0x171] sm:$0xff] %vm1514, %v2254
      %v2319 = vmax.f32 %v1742, 0.0
      %v2320 = vmax.f32 %v1748, 0.0
      %v2321 = vmax.f32 %v1754, 0.0
      %v2322 = vmax.f32 %v1760, 0.0
      %v2323 = vmax.f32 %v1766, 0.0
      %v2324 = vmax.f32 %v1772, 0.0
      %v2325 = vmax.f32 %v1778, 0.0
      %v2326 = vmax.f32 %v1784, 0.0
      %v2327 = vmax.f32 %v1790, 0.0
      %v2328 = vmax.f32 %v1796, 0.0
      %v2329 = vmax.f32 %v1802, 0.0
      %v2330 = vmax.f32 %v1808, 0.0
      %v2331 = vmax.f32 %v1814, 0.0
      %v2332 = vmax.f32 %v1820, 0.0
      %v2333 = vmax.f32 %v1826, 0.0
      %v2334 = vmax.f32 %v1832, 0.0
      %v2335 = vmax.f32 %v1838, 0.0
      %v2336 = vmax.f32 %v1844, 0.0
      %v2337 = vmax.f32 %v1850, 0.0
      %v2338 = vmax.f32 %v1856, 0.0
      %v2339 = vmax.f32 %v1862, 0.0
      %v2340 = vmax.f32 %v1868, 0.0
      %v2341 = vmax.f32 %v1874, 0.0
      %v2342 = vmax.f32 %v1880, 0.0
      %v2343 = vmax.f32 %v1886, 0.0
      %v2344 = vmax.f32 %v1892, 0.0
      %v2345 = vmax.f32 %v1898, 0.0
      %v2346 = vmax.f32 %v1904, 0.0
      %v2347 = vmax.f32 %v1910, 0.0
      %v2348 = vmax.f32 %v1916, 0.0
      %v2349 = vmax.f32 %v1922, 0.0
      %v2350 = vmax.f32 %v1928, 0.0
      %2351 = vst.msk [vmem:[%s2021 + $0x1] sm:$0xff] %vm1514, %v2319
      %2352 = vst.msk [vmem:[%s2021 + $0x9] sm:$0xff] %vm1514, %v2320
      %2353 = vst.msk [vmem:[%s2021 + $0x19] sm:$0xff] %vm1514, %v2321
      %2354 = vst.msk [vmem:[%s2021 + $0x21] sm:$0xff] %vm1514, %v2322
      %2355 = vst.msk [vmem:[%s2021 + $0x31] sm:$0xff] %vm1514, %v2323
      %2356 = vst.msk [vmem:[%s2021 + $0x39] sm:$0xff] %vm1514, %v2324
      %2357 = vst.msk [vmem:[%s2021 + $0x49] sm:$0xff] %vm1514, %v2325
      %2358 = vst.msk [vmem:[%s2021 + $0x51] sm:$0xff] %vm1514, %v2326
      %2359 = vst.msk [vmem:[%s2021 + $0x61] sm:$0xff] %vm1514, %v2327
      %2360 = vst.msk [vmem:[%s2021 + $0x69] sm:$0xff] %vm1514, %v2328
      %2361 = vst.msk [vmem:[%s2021 + $0x79] sm:$0xff] %vm1514, %v2329
      %2362 = vst.msk [vmem:[%s2021 + $0x81] sm:$0xff] %vm1514, %v2330
      %2363 = vst.msk [vmem:[%s2021 + $0x91] sm:$0xff] %vm1514, %v2331
      %2364 = vst.msk [vmem:[%s2021 + $0x99] sm:$0xff] %vm1514, %v2332
      %2365 = vst.msk [vmem:[%s2021 + $0xa9] sm:$0xff] %vm1514, %v2333
      %2366 = vst.msk [vmem:[%s2021 + $0xb1] sm:$0xff] %vm1514, %v2334
      %2367 = vst.msk [vmem:[%s2021 + $0xc1] sm:$0xff] %vm1514, %v2335
      %2368 = vst.msk [vmem:[%s2021 + $0xc9] sm:$0xff] %vm1514, %v2336
      %2369 = vst.msk [vmem:[%s2021 + $0xd9] sm:$0xff] %vm1514, %v2337
      %2370 = vst.msk [vmem:[%s2021 + $0xe1] sm:$0xff] %vm1514, %v2338
      %2371 = vst.msk [vmem:[%s2021 + $0xf1] sm:$0xff] %vm1514, %v2339
      %2372 = vst.msk [vmem:[%s2021 + $0xf9] sm:$0xff] %vm1514, %v2340
      %2373 = vst.msk [vmem:[%s2021 + $0x109] sm:$0xff] %vm1514, %v2341
      %2374 = vst.msk [vmem:[%s2021 + $0x111] sm:$0xff] %vm1514, %v2342
      %2375 = vst.msk [vmem:[%s2021 + $0x121] sm:$0xff] %vm1514, %v2343
      %2376 = vst.msk [vmem:[%s2021 + $0x129] sm:$0xff] %vm1514, %v2344
      %2377 = vst.msk [vmem:[%s2021 + $0x139] sm:$0xff] %vm1514, %v2345
      %2378 = vst.msk [vmem:[%s2021 + $0x141] sm:$0xff] %vm1514, %v2346
      %2379 = vst.msk [vmem:[%s2021 + $0x151] sm:$0xff] %vm1514, %v2347
      %2380 = vst.msk [vmem:[%s2021 + $0x159] sm:$0xff] %vm1514, %v2348
      %2381 = vst.msk [vmem:[%s2021 + $0x169] sm:$0xff] %vm1514, %v2349
      %2382 = vst.msk [vmem:[%s2021 + $0x171] sm:$0xff] %vm1514, %v2350
      %2415 = vrot.lane.b32.xlu0 %v2319, 64
      %v2416 = vpop.permute.xlu0 %2415
      %2417 = vrot.lane.b32.xlu0 %v2320, 64
      %v2418 = vpop.permute.xlu0 %2417
      %2419 = vrot.lane.b32.xlu0 %v2321, 64
      %v2420 = vpop.permute.xlu0 %2419
      %2421 = vrot.lane.b32.xlu0 %v2322, 64
      %v2422 = vpop.permute.xlu0 %2421
      %2423 = vrot.lane.b32.xlu0 %v2323, 64
      %v2424 = vpop.permute.xlu0 %2423
      %2425 = vrot.lane.b32.xlu0 %v2324, 64
      %v2426 = vpop.permute.xlu0 %2425
      %2427 = vrot.lane.b32.xlu0 %v2325, 64
      %v2428 = vpop.permute.xlu0 %2427
      %2429 = vrot.lane.b32.xlu0 %v2326, 64
      %v2430 = vpop.permute.xlu0 %2429
      %2431 = vrot.lane.b32.xlu0 %v2327, 64
      %v2432 = vpop.permute.xlu0 %2431
      %2433 = vrot.lane.b32.xlu0 %v2328, 64
      %v2434 = vpop.permute.xlu0 %2433
      %2435 = vrot.lane.b32.xlu0 %v2329, 64
      %v2436 = vpop.permute.xlu0 %2435
      %2437 = vrot.lane.b32.xlu0 %v2330, 64
      %v2438 = vpop.permute.xlu0 %2437
      %2439 = vrot.lane.b32.xlu0 %v2331, 64
      %v2440 = vpop.permute.xlu0 %2439
      %2441 = vrot.lane.b32.xlu0 %v2332, 64
      %v2442 = vpop.permute.xlu0 %2441
      %2443 = vrot.lane.b32.xlu0 %v2333, 64
      %v2444 = vpop.permute.xlu0 %2443
      %2445 = vrot.lane.b32.xlu0 %v2334, 64
      %v2446 = vpop.permute.xlu0 %2445
      %2447 = vrot.lane.b32.xlu0 %v2335, 64
      %v2448 = vpop.permute.xlu0 %2447
      %2449 = vrot.lane.b32.xlu0 %v2336, 64
      %v2450 = vpop.permute.xlu0 %2449
      %2451 = vrot.lane.b32.xlu0 %v2337, 64
      %v2452 = vpop.permute.xlu0 %2451
      %2453 = vrot.lane.b32.xlu0 %v2338, 64
      %v2454 = vpop.permute.xlu0 %2453
      %2455 = vrot.lane.b32.xlu0 %v2339, 64
      %v2456 = vpop.permute.xlu0 %2455
      %2457 = vrot.lane.b32.xlu0 %v2340, 64
      %v2458 = vpop.permute.xlu0 %2457
      %2459 = vrot.lane.b32.xlu0 %v2341, 64
      %v2460 = vpop.permute.xlu0 %2459
      %2461 = vrot.lane.b32.xlu0 %v2342, 64
      %v2462 = vpop.permute.xlu0 %2461
      %2463 = vrot.lane.b32.xlu0 %v2343, 64
      %v2464 = vpop.permute.xlu0 %2463
      %2465 = vrot.lane.b32.xlu0 %v2344, 64
      %v2466 = vpop.permute.xlu0 %2465
      %2467 = vrot.lane.b32.xlu0 %v2345, 64
      %v2468 = vpop.permute.xlu0 %2467
      %2469 = vrot.lane.b32.xlu0 %v2346, 64
      %v2470 = vpop.permute.xlu0 %2469
      %2471 = vrot.lane.b32.xlu0 %v2347, 64
      %v2472 = vpop.permute.xlu0 %2471
      %2473 = vrot.lane.b32.xlu0 %v2348, 64
      %v2474 = vpop.permute.xlu0 %2473
      %2475 = vrot.lane.b32.xlu0 %v2349, 64
      %v2476 = vpop.permute.xlu0 %2475
      %2477 = vrot.lane.b32.xlu0 %v2350, 64
      %v2478 = vpop.permute.xlu0 %2477
      %2511 = vst.msk [vmem:[%s2062 + $0x1] sm:$0xff] %vm1514, %v2416
      %2512 = vst.msk [vmem:[%s2062 + $0x9] sm:$0xff] %vm1514, %v2418
      %2513 = vst.msk [vmem:[%s2062 + $0x19] sm:$0xff] %vm1514, %v2420
      %2514 = vst.msk [vmem:[%s2062 + $0x21] sm:$0xff] %vm1514, %v2422
      %2515 = vst.msk [vmem:[%s2062 + $0x31] sm:$0xff] %vm1514, %v2424
      %2516 = vst.msk [vmem:[%s2062 + $0x39] sm:$0xff] %vm1514, %v2426
      %2517 = vst.msk [vmem:[%s2062 + $0x49] sm:$0xff] %vm1514, %v2428
      %2518 = vst.msk [vmem:[%s2062 + $0x51] sm:$0xff] %vm1514, %v2430
      %2519 = vst.msk [vmem:[%s2062 + $0x61] sm:$0xff] %vm1514, %v2432
      %2520 = vst.msk [vmem:[%s2062 + $0x69] sm:$0xff] %vm1514, %v2434
      %2521 = vst.msk [vmem:[%s2062 + $0x79] sm:$0xff] %vm1514, %v2436
      %2522 = vst.msk [vmem:[%s2062 + $0x81] sm:$0xff] %vm1514, %v2438
      %2523 = vst.msk [vmem:[%s2062 + $0x91] sm:$0xff] %vm1514, %v2440
      %2524 = vst.msk [vmem:[%s2062 + $0x99] sm:$0xff] %vm1514, %v2442
      %2525 = vst.msk [vmem:[%s2062 + $0xa9] sm:$0xff] %vm1514, %v2444
      %2526 = vst.msk [vmem:[%s2062 + $0xb1] sm:$0xff] %vm1514, %v2446
      %2527 = vst.msk [vmem:[%s2062 + $0xc1] sm:$0xff] %vm1514, %v2448
      %2528 = vst.msk [vmem:[%s2062 + $0xc9] sm:$0xff] %vm1514, %v2450
      %2529 = vst.msk [vmem:[%s2062 + $0xd9] sm:$0xff] %vm1514, %v2452
      %2530 = vst.msk [vmem:[%s2062 + $0xe1] sm:$0xff] %vm1514, %v2454
      %2531 = vst.msk [vmem:[%s2062 + $0xf1] sm:$0xff] %vm1514, %v2456
      %2532 = vst.msk [vmem:[%s2062 + $0xf9] sm:$0xff] %vm1514, %v2458
      %2533 = vst.msk [vmem:[%s2062 + $0x109] sm:$0xff] %vm1514, %v2460
      %2534 = vst.msk [vmem:[%s2062 + $0x111] sm:$0xff] %vm1514, %v2462
      %2535 = vst.msk [vmem:[%s2062 + $0x121] sm:$0xff] %vm1514, %v2464
      %2536 = vst.msk [vmem:[%s2062 + $0x129] sm:$0xff] %vm1514, %v2466
      %2537 = vst.msk [vmem:[%s2062 + $0x139] sm:$0xff] %vm1514, %v2468
      %2538 = vst.msk [vmem:[%s2062 + $0x141] sm:$0xff] %vm1514, %v2470
      %2539 = vst.msk [vmem:[%s2062 + $0x151] sm:$0xff] %vm1514, %v2472
      %2540 = vst.msk [vmem:[%s2062 + $0x159] sm:$0xff] %vm1514, %v2474
      %2541 = vst.msk [vmem:[%s2062 + $0x169] sm:$0xff] %vm1514, %v2476
      %2542 = vst.msk [vmem:[%s2062 + $0x171] sm:$0xff] %vm1514, %v2478
      %2575 = vrot.lane.b32.xlu0 %v1740, 96
      %v2576 = vpop.permute.xlu0 %2575
      %2577 = vrot.lane.b32.xlu0 %v1746, 96
      %v2578 = vpop.permute.xlu0 %2577
      %2579 = vrot.lane.b32.xlu0 %v1752, 96
      %v2580 = vpop.permute.xlu0 %2579
      %2581 = vrot.lane.b32.xlu0 %v1758, 96
      %v2582 = vpop.permute.xlu0 %2581
      %2583 = vrot.lane.b32.xlu0 %v1764, 96
      %v2584 = vpop.permute.xlu0 %2583
      %2585 = vrot.lane.b32.xlu0 %v1770, 96
      %v2586 = vpop.permute.xlu0 %2585
      %2587 = vrot.lane.b32.xlu0 %v1776, 96
      %v2588 = vpop.permute.xlu0 %2587
      %2589 = vrot.lane.b32.xlu0 %v1782, 96
      %v2590 = vpop.permute.xlu0 %2589
      %2591 = vrot.lane.b32.xlu0 %v1788, 96
      %v2592 = vpop.permute.xlu0 %2591
      %2593 = vrot.lane.b32.xlu0 %v1794, 96
      %v2594 = vpop.permute.xlu0 %2593
      %2595 = vrot.lane.b32.xlu0 %v1800, 96
      %v2596 = vpop.permute.xlu0 %2595
      %2597 = vrot.lane.b32.xlu0 %v1806, 96
      %v2598 = vpop.permute.xlu0 %2597
      %2599 = vrot.lane.b32.xlu0 %v1812, 96
      %v2600 = vpop.permute.xlu0 %2599
      %2601 = vrot.lane.b32.xlu0 %v1818, 96
      %v2602 = vpop.permute.xlu0 %2601
      %2603 = vrot.lane.b32.xlu0 %v1824, 96
      %v2604 = vpop.permute.xlu0 %2603
      %2605 = vrot.lane.b32.xlu0 %v1830, 96
      %v2606 = vpop.permute.xlu0 %2605
      %2607 = vrot.lane.b32.xlu0 %v1836, 96
      %v2608 = vpop.permute.xlu0 %2607
      %2609 = vrot.lane.b32.xlu0 %v1842, 96
      %v2610 = vpop.permute.xlu0 %2609
      %2611 = vrot.lane.b32.xlu0 %v1848, 96
      %v2612 = vpop.permute.xlu0 %2611
      %2613 = vrot.lane.b32.xlu0 %v1854, 96
      %v2614 = vpop.permute.xlu0 %2613
      %2615 = vrot.lane.b32.xlu0 %v1860, 96
      %v2616 = vpop.permute.xlu0 %2615
      %2617 = vrot.lane.b32.xlu0 %v1866, 96
      %v2618 = vpop.permute.xlu0 %2617
      %2619 = vrot.lane.b32.xlu0 %v1872, 96
      %v2620 = vpop.permute.xlu0 %2619
      %2621 = vrot.lane.b32.xlu0 %v1878, 96
      %v2622 = vpop.permute.xlu0 %2621
      %2623 = vrot.lane.b32.xlu0 %v1884, 96
      %v2624 = vpop.permute.xlu0 %2623
      %2625 = vrot.lane.b32.xlu0 %v1890, 96
      %v2626 = vpop.permute.xlu0 %2625
      %2627 = vrot.lane.b32.xlu0 %v1896, 96
      %v2628 = vpop.permute.xlu0 %2627
      %2629 = vrot.lane.b32.xlu0 %v1902, 96
      %v2630 = vpop.permute.xlu0 %2629
      %2631 = vrot.lane.b32.xlu0 %v1908, 96
      %v2632 = vpop.permute.xlu0 %2631
      %2633 = vrot.lane.b32.xlu0 %v1914, 96
      %v2634 = vpop.permute.xlu0 %2633
      %2635 = vrot.lane.b32.xlu0 %v1920, 96
      %v2636 = vpop.permute.xlu0 %2635
      %2637 = vrot.lane.b32.xlu0 %v1926, 96
      %v2638 = vpop.permute.xlu0 %2637
      %2671 = vrot.lane.b32.xlu0 %v1740, 64
      %v2672 = vpop.permute.xlu0 %2671
      %2673 = vrot.lane.b32.xlu0 %v1746, 64
      %v2674 = vpop.permute.xlu0 %2673
      %2675 = vrot.lane.b32.xlu0 %v1752, 64
      %v2676 = vpop.permute.xlu0 %2675
      %2677 = vrot.lane.b32.xlu0 %v1758, 64
      %v2678 = vpop.permute.xlu0 %2677
      %2679 = vrot.lane.b32.xlu0 %v1764, 64
      %v2680 = vpop.permute.xlu0 %2679
      %2681 = vrot.lane.b32.xlu0 %v1770, 64
      %v2682 = vpop.permute.xlu0 %2681
      %2683 = vrot.lane.b32.xlu0 %v1776, 64
      %v2684 = vpop.permute.xlu0 %2683
      %2685 = vrot.lane.b32.xlu0 %v1782, 64
      %v2686 = vpop.permute.xlu0 %2685
      %2687 = vrot.lane.b32.xlu0 %v1788, 64
      %v2688 = vpop.permute.xlu0 %2687
      %2689 = vrot.lane.b32.xlu0 %v1794, 64
      %v2690 = vpop.permute.xlu0 %2689
      %2691 = vrot.lane.b32.xlu0 %v1800, 64
      %v2692 = vpop.permute.xlu0 %2691
      %2693 = vrot.lane.b32.xlu0 %v1806, 64
      %v2694 = vpop.permute.xlu0 %2693
      %2695 = vrot.lane.b32.xlu0 %v1812, 64
      %v2696 = vpop.permute.xlu0 %2695
      %2697 = vrot.lane.b32.xlu0 %v1818, 64
      %v2698 = vpop.permute.xlu0 %2697
      %2699 = vrot.lane.b32.xlu0 %v1824, 64
      %v2700 = vpop.permute.xlu0 %2699
      %2701 = vrot.lane.b32.xlu0 %v1830, 64
      %v2702 = vpop.permute.xlu0 %2701
      %2703 = vrot.lane.b32.xlu0 %v1836, 64
      %v2704 = vpop.permute.xlu0 %2703
      %2705 = vrot.lane.b32.xlu0 %v1842, 64
      %v2706 = vpop.permute.xlu0 %2705
      %2707 = vrot.lane.b32.xlu0 %v1848, 64
      %v2708 = vpop.permute.xlu0 %2707
      %2709 = vrot.lane.b32.xlu0 %v1854, 64
      %v2710 = vpop.permute.xlu0 %2709
      %2711 = vrot.lane.b32.xlu0 %v1860, 64
      %v2712 = vpop.permute.xlu0 %2711
      %2713 = vrot.lane.b32.xlu0 %v1866, 64
      %v2714 = vpop.permute.xlu0 %2713
      %2715 = vrot.lane.b32.xlu0 %v1872, 64
      %v2716 = vpop.permute.xlu0 %2715
      %2717 = vrot.lane.b32.xlu0 %v1878, 64
      %v2718 = vpop.permute.xlu0 %2717
      %2719 = vrot.lane.b32.xlu0 %v1884, 64
      %v2720 = vpop.permute.xlu0 %2719
      %2721 = vrot.lane.b32.xlu0 %v1890, 64
      %v2722 = vpop.permute.xlu0 %2721
      %2723 = vrot.lane.b32.xlu0 %v1896, 64
      %v2724 = vpop.permute.xlu0 %2723
      %2725 = vrot.lane.b32.xlu0 %v1902, 64
      %v2726 = vpop.permute.xlu0 %2725
      %2727 = vrot.lane.b32.xlu0 %v1908, 64
      %v2728 = vpop.permute.xlu0 %2727
      %2729 = vrot.lane.b32.xlu0 %v1914, 64
      %v2730 = vpop.permute.xlu0 %2729
      %2731 = vrot.lane.b32.xlu0 %v1920, 64
      %v2732 = vpop.permute.xlu0 %2731
      %2733 = vrot.lane.b32.xlu0 %v1926, 64
      %v2734 = vpop.permute.xlu0 %2733
      %2799 = vrot.lane.b32.xlu0 %v1742, 32
      %v2800 = vpop.permute.xlu0 %2799
      %2801 = vrot.lane.b32.xlu0 %v1748, 32
      %v2802 = vpop.permute.xlu0 %2801
      %2803 = vrot.lane.b32.xlu0 %v1754, 32
      %v2804 = vpop.permute.xlu0 %2803
      %2805 = vrot.lane.b32.xlu0 %v1760, 32
      %v2806 = vpop.permute.xlu0 %2805
      %2807 = vrot.lane.b32.xlu0 %v1766, 32
      %v2808 = vpop.permute.xlu0 %2807
      %2809 = vrot.lane.b32.xlu0 %v1772, 32
      %v2810 = vpop.permute.xlu0 %2809
      %2811 = vrot.lane.b32.xlu0 %v1778, 32
      %v2812 = vpop.permute.xlu0 %2811
      %2813 = vrot.lane.b32.xlu0 %v1784, 32
      %v2814 = vpop.permute.xlu0 %2813
      %2815 = vrot.lane.b32.xlu0 %v1790, 32
      %v2816 = vpop.permute.xlu0 %2815
      %2817 = vrot.lane.b32.xlu0 %v1796, 32
      %v2818 = vpop.permute.xlu0 %2817
      %2819 = vrot.lane.b32.xlu0 %v1802, 32
      %v2820 = vpop.permute.xlu0 %2819
      %2821 = vrot.lane.b32.xlu0 %v1808, 32
      %v2822 = vpop.permute.xlu0 %2821
      %2823 = vrot.lane.b32.xlu0 %v1814, 32
      %v2824 = vpop.permute.xlu0 %2823
      %2825 = vrot.lane.b32.xlu0 %v1820, 32
      %v2826 = vpop.permute.xlu0 %2825
      %2827 = vrot.lane.b32.xlu0 %v1826, 32
      %v2828 = vpop.permute.xlu0 %2827
      %2829 = vrot.lane.b32.xlu0 %v1832, 32
      %v2830 = vpop.permute.xlu0 %2829
      %2831 = vrot.lane.b32.xlu0 %v1838, 32
      %v2832 = vpop.permute.xlu0 %2831
      %2833 = vrot.lane.b32.xlu0 %v1844, 32
      %v2834 = vpop.permute.xlu0 %2833
      %2835 = vrot.lane.b32.xlu0 %v1850, 32
      %v2836 = vpop.permute.xlu0 %2835
      %2837 = vrot.lane.b32.xlu0 %v1856, 32
      %v2838 = vpop.permute.xlu0 %2837
      %2839 = vrot.lane.b32.xlu0 %v1862, 32
      %v2840 = vpop.permute.xlu0 %2839
      %2841 = vrot.lane.b32.xlu0 %v1868, 32
      %v2842 = vpop.permute.xlu0 %2841
      %2843 = vrot.lane.b32.xlu0 %v1874, 32
      %v2844 = vpop.permute.xlu0 %2843
      %2845 = vrot.lane.b32.xlu0 %v1880, 32
      %v2846 = vpop.permute.xlu0 %2845
      %2847 = vrot.lane.b32.xlu0 %v1886, 32
      %v2848 = vpop.permute.xlu0 %2847
      %2849 = vrot.lane.b32.xlu0 %v1892, 32
      %v2850 = vpop.permute.xlu0 %2849
      %2851 = vrot.lane.b32.xlu0 %v1898, 32
      %v2852 = vpop.permute.xlu0 %2851
      %2853 = vrot.lane.b32.xlu0 %v1904, 32
      %v2854 = vpop.permute.xlu0 %2853
      %2855 = vrot.lane.b32.xlu0 %v1910, 32
      %v2856 = vpop.permute.xlu0 %2855
      %2857 = vrot.lane.b32.xlu0 %v1916, 32
      %v2858 = vpop.permute.xlu0 %2857
      %2859 = vrot.lane.b32.xlu0 %v1922, 32
      %v2860 = vpop.permute.xlu0 %2859
      %2861 = vrot.lane.b32.xlu0 %v1928, 32
      %v2862 = vpop.permute.xlu0 %2861
      %v2895 = vsel %vm1514, %v2576, %v2672
      %v2896 = vsel %vm1514, %v2578, %v2674
      %v2897 = vsel %vm1514, %v2580, %v2676
      %v2898 = vsel %vm1514, %v2582, %v2678
      %v2899 = vsel %vm1514, %v2584, %v2680
      %v2900 = vsel %vm1514, %v2586, %v2682
      %v2901 = vsel %vm1514, %v2588, %v2684
      %v2902 = vsel %vm1514, %v2590, %v2686
      %v2903 = vsel %vm1514, %v2592, %v2688
      %v2904 = vsel %vm1514, %v2594, %v2690
      %v2905 = vsel %vm1514, %v2596, %v2692
      %v2906 = vsel %vm1514, %v2598, %v2694
      %v2907 = vsel %vm1514, %v2600, %v2696
      %v2908 = vsel %vm1514, %v2602, %v2698
      %v2909 = vsel %vm1514, %v2604, %v2700
      %v2910 = vsel %vm1514, %v2606, %v2702
      %v2911 = vsel %vm1514, %v2608, %v2704
      %v2912 = vsel %vm1514, %v2610, %v2706
      %v2913 = vsel %vm1514, %v2612, %v2708
      %v2914 = vsel %vm1514, %v2614, %v2710
      %v2915 = vsel %vm1514, %v2616, %v2712
      %v2916 = vsel %vm1514, %v2618, %v2714
      %v2917 = vsel %vm1514, %v2620, %v2716
      %v2918 = vsel %vm1514, %v2622, %v2718
      %v2919 = vsel %vm1514, %v2624, %v2720
      %v2920 = vsel %vm1514, %v2626, %v2722
      %v2921 = vsel %vm1514, %v2628, %v2724
      %v2922 = vsel %vm1514, %v2630, %v2726
      %v2923 = vsel %vm1514, %v2632, %v2728
      %v2924 = vsel %vm1514, %v2634, %v2730
      %v2925 = vsel %vm1514, %v2636, %v2732
      %v2926 = vsel %vm1514, %v2638, %v2734
      %vm2927 = vcmask 523264
      %v2928 = vsel %vm2927, %v2895, %v2800
      %v2929 = vsel %vm2927, %v2896, %v2802
      %v2930 = vsel %vm2927, %v2897, %v2804
      %v2931 = vsel %vm2927, %v2898, %v2806
      %v2932 = vsel %vm2927, %v2899, %v2808
      %v2933 = vsel %vm2927, %v2900, %v2810
      %v2934 = vsel %vm2927, %v2901, %v2812
      %v2935 = vsel %vm2927, %v2902, %v2814
      %v2936 = vsel %vm2927, %v2903, %v2816
      %v2937 = vsel %vm2927, %v2904, %v2818
      %v2938 = vsel %vm2927, %v2905, %v2820
      %v2939 = vsel %vm2927, %v2906, %v2822
      %v2940 = vsel %vm2927, %v2907, %v2824
      %v2941 = vsel %vm2927, %v2908, %v2826
      %v2942 = vsel %vm2927, %v2909, %v2828
      %v2943 = vsel %vm2927, %v2910, %v2830
      %v2944 = vsel %vm2927, %v2911, %v2832
      %v2945 = vsel %vm2927, %v2912, %v2834
      %v2946 = vsel %vm2927, %v2913, %v2836
      %v2947 = vsel %vm2927, %v2914, %v2838
      %v2948 = vsel %vm2927, %v2915, %v2840
      %v2949 = vsel %vm2927, %v2916, %v2842
      %v2950 = vsel %vm2927, %v2917, %v2844
      %v2951 = vsel %vm2927, %v2918, %v2846
      %v2952 = vsel %vm2927, %v2919, %v2848
      %v2953 = vsel %vm2927, %v2920, %v2850
      %v2954 = vsel %vm2927, %v2921, %v2852
      %v2955 = vsel %vm2927, %v2922, %v2854
      %v2956 = vsel %vm2927, %v2923, %v2856
      %v2957 = vsel %vm2927, %v2924, %v2858
      %v2958 = vsel %vm2927, %v2925, %v2860
      %v2959 = vsel %vm2927, %v2926, %v2862
      %vm2960 = vcmask 785408
      %v2961 = vsel %vm2960, %v2928, %v1742
      %v2962 = vsel %vm2960, %v2929, %v1748
      %v2963 = vsel %vm2960, %v2930, %v1754
      %v2964 = vsel %vm2960, %v2931, %v1760
      %v2965 = vsel %vm2960, %v2932, %v1766
      %v2966 = vsel %vm2960, %v2933, %v1772
      %v2967 = vsel %vm2960, %v2934, %v1778
      %v2968 = vsel %vm2960, %v2935, %v1784
      %v2969 = vsel %vm2960, %v2936, %v1790
      %v2970 = vsel %vm2960, %v2937, %v1796
      %v2971 = vsel %vm2960, %v2938, %v1802
      %v2972 = vsel %vm2960, %v2939, %v1808
      %v2973 = vsel %vm2960, %v2940, %v1814
      %v2974 = vsel %vm2960, %v2941, %v1820
      %v2975 = vsel %vm2960, %v2942, %v1826
      %v2976 = vsel %vm2960, %v2943, %v1832
      %v2977 = vsel %vm2960, %v2944, %v1838
      %v2978 = vsel %vm2960, %v2945, %v1844
      %v2979 = vsel %vm2960, %v2946, %v1850
      %v2980 = vsel %vm2960, %v2947, %v1856
      %v2981 = vsel %vm2960, %v2948, %v1862
      %v2982 = vsel %vm2960, %v2949, %v1868
      %v2983 = vsel %vm2960, %v2950, %v1874
      %v2984 = vsel %vm2960, %v2951, %v1880
      %v2985 = vsel %vm2960, %v2952, %v1886
      %v2986 = vsel %vm2960, %v2953, %v1892
      %v2987 = vsel %vm2960, %v2954, %v1898
      %v2988 = vsel %vm2960, %v2955, %v1904
      %v2989 = vsel %vm2960, %v2956, %v1910
      %v2990 = vsel %vm2960, %v2957, %v1916
      %v2991 = vsel %vm2960, %v2958, %v1922
      %v2992 = vsel %vm2960, %v2959, %v1928
      %v2993 = vld [vmem:[%s1938 + $0x1] sm:$0xff]
      %v2994 = vld [vmem:[%s1938 + $0x9] sm:$0xff]
      %v2995 = vld [vmem:[%s1938 + $0x19] sm:$0xff]
      %v2996 = vld [vmem:[%s1938 + $0x21] sm:$0xff]
      %v2997 = vld [vmem:[%s1938 + $0x31] sm:$0xff]
      %v2998 = vld [vmem:[%s1938 + $0x39] sm:$0xff]
      %v2999 = vld [vmem:[%s1938 + $0x49] sm:$0xff]
      %v3000 = vld [vmem:[%s1938 + $0x51] sm:$0xff]
      %v3001 = vld [vmem:[%s1938 + $0x61] sm:$0xff]
      %v3002 = vld [vmem:[%s1938 + $0x69] sm:$0xff]
      %v3003 = vld [vmem:[%s1938 + $0x79] sm:$0xff]
      %v3004 = vld [vmem:[%s1938 + $0x81] sm:$0xff]
      %v3005 = vld [vmem:[%s1938 + $0x91] sm:$0xff]
      %v3006 = vld [vmem:[%s1938 + $0x99] sm:$0xff]
      %v3007 = vld [vmem:[%s1938 + $0xa9] sm:$0xff]
      %v3008 = vld [vmem:[%s1938 + $0xb1] sm:$0xff]
      %v3009 = vld [vmem:[%s1938 + $0xc1] sm:$0xff]
      %v3010 = vld [vmem:[%s1938 + $0xc9] sm:$0xff]
      %v3011 = vld [vmem:[%s1938 + $0xd9] sm:$0xff]
      %v3012 = vld [vmem:[%s1938 + $0xe1] sm:$0xff]
      %v3013 = vld [vmem:[%s1938 + $0xf1] sm:$0xff]
      %v3014 = vld [vmem:[%s1938 + $0xf9] sm:$0xff]
      %v3015 = vld [vmem:[%s1938 + $0x109] sm:$0xff]
      %v3016 = vld [vmem:[%s1938 + $0x111] sm:$0xff]
      %v3017 = vld [vmem:[%s1938 + $0x121] sm:$0xff]
      %v3018 = vld [vmem:[%s1938 + $0x129] sm:$0xff]
      %v3019 = vld [vmem:[%s1938 + $0x139] sm:$0xff]
      %v3020 = vld [vmem:[%s1938 + $0x141] sm:$0xff]
      %v3021 = vld [vmem:[%s1938 + $0x151] sm:$0xff]
      %v3022 = vld [vmem:[%s1938 + $0x159] sm:$0xff]
      %v3023 = vld [vmem:[%s1938 + $0x169] sm:$0xff]
      %v3024 = vld [vmem:[%s1938 + $0x171] sm:$0xff]
      %v3025 = vld [vmem:[%s1938 + $0x2] sm:$0xff]
      %v3026 = vld [vmem:[%s1938 + $0xa] sm:$0xff]
      %v3027 = vld [vmem:[%s1938 + $0x1a] sm:$0xff]
      %v3028 = vld [vmem:[%s1938 + $0x22] sm:$0xff]
      %v3029 = vld [vmem:[%s1938 + $0x32] sm:$0xff]
      %v3030 = vld [vmem:[%s1938 + $0x3a] sm:$0xff]
      %v3031 = vld [vmem:[%s1938 + $0x4a] sm:$0xff]
      %v3032 = vld [vmem:[%s1938 + $0x52] sm:$0xff]
      %v3033 = vld [vmem:[%s1938 + $0x62] sm:$0xff]
      %v3034 = vld [vmem:[%s1938 + $0x6a] sm:$0xff]
      %v3035 = vld [vmem:[%s1938 + $0x7a] sm:$0xff]
      %v3036 = vld [vmem:[%s1938 + $0x82] sm:$0xff]
      %v3037 = vld [vmem:[%s1938 + $0x92] sm:$0xff]
      %v3038 = vld [vmem:[%s1938 + $0x9a] sm:$0xff]
      %v3039 = vld [vmem:[%s1938 + $0xaa] sm:$0xff]
      %v3040 = vld [vmem:[%s1938 + $0xb2] sm:$0xff]
      %v3041 = vld [vmem:[%s1938 + $0xc2] sm:$0xff]
      %v3042 = vld [vmem:[%s1938 + $0xca] sm:$0xff]
      %v3043 = vld [vmem:[%s1938 + $0xda] sm:$0xff]
      %v3044 = vld [vmem:[%s1938 + $0xe2] sm:$0xff]
      %v3045 = vld [vmem:[%s1938 + $0xf2] sm:$0xff]
      %v3046 = vld [vmem:[%s1938 + $0xfa] sm:$0xff]
      %v3047 = vld [vmem:[%s1938 + $0x10a] sm:$0xff]
      %v3048 = vld [vmem:[%s1938 + $0x112] sm:$0xff]
      %v3049 = vld [vmem:[%s1938 + $0x122] sm:$0xff]
      %v3050 = vld [vmem:[%s1938 + $0x12a] sm:$0xff]
      %v3051 = vld [vmem:[%s1938 + $0x13a] sm:$0xff]
      %v3052 = vld [vmem:[%s1938 + $0x142] sm:$0xff]
      %v3053 = vld [vmem:[%s1938 + $0x152] sm:$0xff]
      %v3054 = vld [vmem:[%s1938 + $0x15a] sm:$0xff]
      %v3055 = vld [vmem:[%s1938 + $0x16a] sm:$0xff]
      %v3056 = vld [vmem:[%s1938 + $0x172] sm:$0xff]
      %v3057 = vld [vmem:[%s1980] sm:$0xff]
      %v3058 = vld [vmem:[%s1980 + $0x8] sm:$0xff]
      %v3059 = vld [vmem:[%s1980 + $0x18] sm:$0xff]
      %v3060 = vld [vmem:[%s1980 + $0x20] sm:$0xff]
      %v3061 = vld [vmem:[%s1980 + $0x30] sm:$0xff]
      %v3062 = vld [vmem:[%s1980 + $0x38] sm:$0xff]
      %v3063 = vld [vmem:[%s1980 + $0x48] sm:$0xff]
      %v3064 = vld [vmem:[%s1980 + $0x50] sm:$0xff]
      %v3065 = vld [vmem:[%s1980 + $0x60] sm:$0xff]
      %v3066 = vld [vmem:[%s1980 + $0x68] sm:$0xff]
      %v3067 = vld [vmem:[%s1980 + $0x78] sm:$0xff]
      %v3068 = vld [vmem:[%s1980 + $0x80] sm:$0xff]
      %v3069 = vld [vmem:[%s1980 + $0x90] sm:$0xff]
      %v3070 = vld [vmem:[%s1980 + $0x98] sm:$0xff]
      %v3071 = vld [vmem:[%s1980 + $0xa8] sm:$0xff]
      %v3072 = vld [vmem:[%s1980 + $0xb0] sm:$0xff]
      %v3073 = vld [vmem:[%s1980 + $0xc0] sm:$0xff]
      %v3074 = vld [vmem:[%s1980 + $0xc8] sm:$0xff]
      %v3075 = vld [vmem:[%s1980 + $0xd8] sm:$0xff]
      %v3076 = vld [vmem:[%s1980 + $0xe0] sm:$0xff]
      %v3077 = vld [vmem:[%s1980 + $0xf0] sm:$0xff]
      %v3078 = vld [vmem:[%s1980 + $0xf8] sm:$0xff]
      %v3079 = vld [vmem:[%s1980 + $0x108] sm:$0xff]
      %v3080 = vld [vmem:[%s1980 + $0x110] sm:$0xff]
      %v3081 = vld [vmem:[%s1980 + $0x120] sm:$0xff]
      %v3082 = vld [vmem:[%s1980 + $0x128] sm:$0xff]
      %v3083 = vld [vmem:[%s1980 + $0x138] sm:$0xff]
      %v3084 = vld [vmem:[%s1980 + $0x140] sm:$0xff]
      %v3085 = vld [vmem:[%s1980 + $0x150] sm:$0xff]
      %v3086 = vld [vmem:[%s1980 + $0x158] sm:$0xff]
      %v3087 = vld [vmem:[%s1980 + $0x168] sm:$0xff]
      %v3088 = vld [vmem:[%s1980 + $0x170] sm:$0xff]
      %v3089 = vld [vmem:[%s1980 + $0x1] sm:$0xff]
      %v3090 = vld [vmem:[%s1980 + $0x9] sm:$0xff]
      %v3091 = vld [vmem:[%s1980 + $0x19] sm:$0xff]
      %v3092 = vld [vmem:[%s1980 + $0x21] sm:$0xff]
      %v3093 = vld [vmem:[%s1980 + $0x31] sm:$0xff]
      %v3094 = vld [vmem:[%s1980 + $0x39] sm:$0xff]
      %v3095 = vld [vmem:[%s1980 + $0x49] sm:$0xff]
      %v3096 = vld [vmem:[%s1980 + $0x51] sm:$0xff]
      %v3097 = vld [vmem:[%s1980 + $0x61] sm:$0xff]
      %v3098 = vld [vmem:[%s1980 + $0x69] sm:$0xff]
      %v3099 = vld [vmem:[%s1980 + $0x79] sm:$0xff]
      %v3100 = vld [vmem:[%s1980 + $0x81] sm:$0xff]
      %v3101 = vld [vmem:[%s1980 + $0x91] sm:$0xff]
      %v3102 = vld [vmem:[%s1980 + $0x99] sm:$0xff]
      %v3103 = vld [vmem:[%s1980 + $0xa9] sm:$0xff]
      %v3104 = vld [vmem:[%s1980 + $0xb1] sm:$0xff]
      %v3105 = vld [vmem:[%s1980 + $0xc1] sm:$0xff]
      %v3106 = vld [vmem:[%s1980 + $0xc9] sm:$0xff]
      %v3107 = vld [vmem:[%s1980 + $0xd9] sm:$0xff]
      %v3108 = vld [vmem:[%s1980 + $0xe1] sm:$0xff]
      %v3109 = vld [vmem:[%s1980 + $0xf1] sm:$0xff]
      %v3110 = vld [vmem:[%s1980 + $0xf9] sm:$0xff]
      %v3111 = vld [vmem:[%s1980 + $0x109] sm:$0xff]
      %v3112 = vld [vmem:[%s1980 + $0x111] sm:$0xff]
      %v3113 = vld [vmem:[%s1980 + $0x121] sm:$0xff]
      %v3114 = vld [vmem:[%s1980 + $0x129] sm:$0xff]
      %v3115 = vld [vmem:[%s1980 + $0x139] sm:$0xff]
      %v3116 = vld [vmem:[%s1980 + $0x141] sm:$0xff]
      %v3117 = vld [vmem:[%s1980 + $0x151] sm:$0xff]
      %v3118 = vld [vmem:[%s1980 + $0x159] sm:$0xff]
      %v3119 = vld [vmem:[%s1980 + $0x169] sm:$0xff]
      %v3120 = vld [vmem:[%s1980 + $0x171] sm:$0xff]
      %s3121 = scalar_lea.vmem [#allocation2], 48
      %v3122 = vld [vmem:[%s3121 + $0x1] sm:$0xff]
      %v3123 = vld [vmem:[%s3121 + $0x9] sm:$0xff]
      %v3124 = vld [vmem:[%s3121 + $0x19] sm:$0xff]
      %v3125 = vld [vmem:[%s3121 + $0x21] sm:$0xff]
      %v3126 = vld [vmem:[%s3121 + $0x31] sm:$0xff]
      %v3127 = vld [vmem:[%s3121 + $0x39] sm:$0xff]
      %v3128 = vld [vmem:[%s3121 + $0x49] sm:$0xff]
      %v3129 = vld [vmem:[%s3121 + $0x51] sm:$0xff]
      %v3130 = vld [vmem:[%s3121 + $0x61] sm:$0xff]
      %v3131 = vld [vmem:[%s3121 + $0x69] sm:$0xff]
      %v3132 = vld [vmem:[%s3121 + $0x79] sm:$0xff]
      %v3133 = vld [vmem:[%s3121 + $0x81] sm:$0xff]
      %v3134 = vld [vmem:[%s3121 + $0x91] sm:$0xff]
      %v3135 = vld [vmem:[%s3121 + $0x99] sm:$0xff]
      %v3136 = vld [vmem:[%s3121 + $0xa9] sm:$0xff]
      %v3137 = vld [vmem:[%s3121 + $0xb1] sm:$0xff]
      %v3138 = vld [vmem:[%s3121 + $0xc1] sm:$0xff]
      %v3139 = vld [vmem:[%s3121 + $0xc9] sm:$0xff]
      %v3140 = vld [vmem:[%s3121 + $0xd9] sm:$0xff]
      %v3141 = vld [vmem:[%s3121 + $0xe1] sm:$0xff]
      %v3142 = vld [vmem:[%s3121 + $0xf1] sm:$0xff]
      %v3143 = vld [vmem:[%s3121 + $0xf9] sm:$0xff]
      %v3144 = vld [vmem:[%s3121 + $0x109] sm:$0xff]
      %v3145 = vld [vmem:[%s3121 + $0x111] sm:$0xff]
      %v3146 = vld [vmem:[%s3121 + $0x121] sm:$0xff]
      %v3147 = vld [vmem:[%s3121 + $0x129] sm:$0xff]
      %v3148 = vld [vmem:[%s3121 + $0x139] sm:$0xff]
      %v3149 = vld [vmem:[%s3121 + $0x141] sm:$0xff]
      %v3150 = vld [vmem:[%s3121 + $0x151] sm:$0xff]
      %v3151 = vld [vmem:[%s3121 + $0x159] sm:$0xff]
      %v3152 = vld [vmem:[%s3121 + $0x169] sm:$0xff]
      %v3153 = vld [vmem:[%s3121 + $0x171] sm:$0xff]
      %v3154 = vld [vmem:[%s3121 + $0x2] sm:$0xff]
      %v3155 = vld [vmem:[%s3121 + $0xa] sm:$0xff]
      %v3156 = vld [vmem:[%s3121 + $0x1a] sm:$0xff]
      %v3157 = vld [vmem:[%s3121 + $0x22] sm:$0xff]
      %v3158 = vld [vmem:[%s3121 + $0x32] sm:$0xff]
      %v3159 = vld [vmem:[%s3121 + $0x3a] sm:$0xff]
      %v3160 = vld [vmem:[%s3121 + $0x4a] sm:$0xff]
      %v3161 = vld [vmem:[%s3121 + $0x52] sm:$0xff]
      %v3162 = vld [vmem:[%s3121 + $0x62] sm:$0xff]
      %v3163 = vld [vmem:[%s3121 + $0x6a] sm:$0xff]
      %v3164 = vld [vmem:[%s3121 + $0x7a] sm:$0xff]
      %v3165 = vld [vmem:[%s3121 + $0x82] sm:$0xff]
      %v3166 = vld [vmem:[%s3121 + $0x92] sm:$0xff]
      %v3167 = vld [vmem:[%s3121 + $0x9a] sm:$0xff]
      %v3168 = vld [vmem:[%s3121 + $0xaa] sm:$0xff]
      %v3169 = vld [vmem:[%s3121 + $0xb2] sm:$0xff]
      %v3170 = vld [vmem:[%s3121 + $0xc2] sm:$0xff]
      %v3171 = vld [vmem:[%s3121 + $0xca] sm:$0xff]
      %v3172 = vld [vmem:[%s3121 + $0xda] sm:$0xff]
      %v3173 = vld [vmem:[%s3121 + $0xe2] sm:$0xff]
      %v3174 = vld [vmem:[%s3121 + $0xf2] sm:$0xff]
      %v3175 = vld [vmem:[%s3121 + $0xfa] sm:$0xff]
      %v3176 = vld [vmem:[%s3121 + $0x10a] sm:$0xff]
      %v3177 = vld [vmem:[%s3121 + $0x112] sm:$0xff]
      %v3178 = vld [vmem:[%s3121 + $0x122] sm:$0xff]
      %v3179 = vld [vmem:[%s3121 + $0x12a] sm:$0xff]
      %v3180 = vld [vmem:[%s3121 + $0x13a] sm:$0xff]
      %v3181 = vld [vmem:[%s3121 + $0x142] sm:$0xff]
      %v3182 = vld [vmem:[%s3121 + $0x152] sm:$0xff]
      %v3183 = vld [vmem:[%s3121 + $0x15a] sm:$0xff]
      %v3184 = vld [vmem:[%s3121 + $0x16a] sm:$0xff]
      %v3185 = vld [vmem:[%s3121 + $0x172] sm:$0xff]
      %s3186 = scalar_lea.vmem [#allocation2], 480
      %v3187 = vld [vmem:[%s3186] sm:$0xff]
      %v3188 = vld [vmem:[%s3186 + $0x8] sm:$0xff]
      %v3189 = vld [vmem:[%s3186 + $0x18] sm:$0xff]
      %v3190 = vld [vmem:[%s3186 + $0x20] sm:$0xff]
      %v3191 = vld [vmem:[%s3186 + $0x30] sm:$0xff]
      %v3192 = vld [vmem:[%s3186 + $0x38] sm:$0xff]
      %v3193 = vld [vmem:[%s3186 + $0x48] sm:$0xff]
      %v3194 = vld [vmem:[%s3186 + $0x50] sm:$0xff]
      %v3195 = vld [vmem:[%s3186 + $0x60] sm:$0xff]
      %v3196 = vld [vmem:[%s3186 + $0x68] sm:$0xff]
      %v3197 = vld [vmem:[%s3186 + $0x78] sm:$0xff]
      %v3198 = vld [vmem:[%s3186 + $0x80] sm:$0xff]
      %v3199 = vld [vmem:[%s3186 + $0x90] sm:$0xff]
      %v3200 = vld [vmem:[%s3186 + $0x98] sm:$0xff]
      %v3201 = vld [vmem:[%s3186 + $0xa8] sm:$0xff]
      %v3202 = vld [vmem:[%s3186 + $0xb0] sm:$0xff]
      %v3203 = vld [vmem:[%s3186 + $0xc0] sm:$0xff]
      %v3204 = vld [vmem:[%s3186 + $0xc8] sm:$0xff]
      %v3205 = vld [vmem:[%s3186 + $0xd8] sm:$0xff]
      %v3206 = vld [vmem:[%s3186 + $0xe0] sm:$0xff]
      %v3207 = vld [vmem:[%s3186 + $0xf0] sm:$0xff]
      %v3208 = vld [vmem:[%s3186 + $0xf8] sm:$0xff]
      %v3209 = vld [vmem:[%s3186 + $0x108] sm:$0xff]
      %v3210 = vld [vmem:[%s3186 + $0x110] sm:$0xff]
      %v3211 = vld [vmem:[%s3186 + $0x120] sm:$0xff]
      %v3212 = vld [vmem:[%s3186 + $0x128] sm:$0xff]
      %v3213 = vld [vmem:[%s3186 + $0x138] sm:$0xff]
      %v3214 = vld [vmem:[%s3186 + $0x140] sm:$0xff]
      %v3215 = vld [vmem:[%s3186 + $0x150] sm:$0xff]
      %v3216 = vld [vmem:[%s3186 + $0x158] sm:$0xff]
      %v3217 = vld [vmem:[%s3186 + $0x168] sm:$0xff]
      %v3218 = vld [vmem:[%s3186 + $0x170] sm:$0xff]
      %v3219 = vld [vmem:[%s3186 + $0x1] sm:$0xff]
      %v3220 = vld [vmem:[%s3186 + $0x9] sm:$0xff]
      %v3221 = vld [vmem:[%s3186 + $0x19] sm:$0xff]
      %v3222 = vld [vmem:[%s3186 + $0x21] sm:$0xff]
      %v3223 = vld [vmem:[%s3186 + $0x31] sm:$0xff]
      %v3224 = vld [vmem:[%s3186 + $0x39] sm:$0xff]
      %v3225 = vld [vmem:[%s3186 + $0x49] sm:$0xff]
      %v3226 = vld [vmem:[%s3186 + $0x51] sm:$0xff]
      %v3227 = vld [vmem:[%s3186 + $0x61] sm:$0xff]
      %v3228 = vld [vmem:[%s3186 + $0x69] sm:$0xff]
      %v3229 = vld [vmem:[%s3186 + $0x79] sm:$0xff]
      %v3230 = vld [vmem:[%s3186 + $0x81] sm:$0xff]
      %v3231 = vld [vmem:[%s3186 + $0x91] sm:$0xff]
      %v3232 = vld [vmem:[%s3186 + $0x99] sm:$0xff]
      %v3233 = vld [vmem:[%s3186 + $0xa9] sm:$0xff]
      %v3234 = vld [vmem:[%s3186 + $0xb1] sm:$0xff]
      %v3235 = vld [vmem:[%s3186 + $0xc1] sm:$0xff]
      %v3236 = vld [vmem:[%s3186 + $0xc9] sm:$0xff]
      %v3237 = vld [vmem:[%s3186 + $0xd9] sm:$0xff]
      %v3238 = vld [vmem:[%s3186 + $0xe1] sm:$0xff]
      %v3239 = vld [vmem:[%s3186 + $0xf1] sm:$0xff]
      %v3240 = vld [vmem:[%s3186 + $0xf9] sm:$0xff]
      %v3241 = vld [vmem:[%s3186 + $0x109] sm:$0xff]
      %v3242 = vld [vmem:[%s3186 + $0x111] sm:$0xff]
      %v3243 = vld [vmem:[%s3186 + $0x121] sm:$0xff]
      %v3244 = vld [vmem:[%s3186 + $0x129] sm:$0xff]
      %v3245 = vld [vmem:[%s3186 + $0x139] sm:$0xff]
      %v3246 = vld [vmem:[%s3186 + $0x141] sm:$0xff]
      %v3247 = vld [vmem:[%s3186 + $0x151] sm:$0xff]
      %v3248 = vld [vmem:[%s3186 + $0x159] sm:$0xff]
      %v3249 = vld [vmem:[%s3186 + $0x169] sm:$0xff]
      %v3250 = vld [vmem:[%s3186 + $0x171] sm:$0xff]
      %v3251 = vld [vmem:[%s2013 + $0x1] sm:$0xff]
      %v3252 = vld [vmem:[%s2013 + $0x9] sm:$0xff]
      %v3253 = vld [vmem:[%s2013 + $0x19] sm:$0xff]
      %v3254 = vld [vmem:[%s2013 + $0x21] sm:$0xff]
      %v3255 = vld [vmem:[%s2013 + $0x31] sm:$0xff]
      %v3256 = vld [vmem:[%s2013 + $0x39] sm:$0xff]
      %v3257 = vld [vmem:[%s2013 + $0x49] sm:$0xff]
      %v3258 = vld [vmem:[%s2013 + $0x51] sm:$0xff]
      %v3259 = vld [vmem:[%s2013 + $0x61] sm:$0xff]
      %v3260 = vld [vmem:[%s2013 + $0x69] sm:$0xff]
      %v3261 = vld [vmem:[%s2013 + $0x79] sm:$0xff]
      %v3262 = vld [vmem:[%s2013 + $0x81] sm:$0xff]
      %v3263 = vld [vmem:[%s2013 + $0x91] sm:$0xff]
      %v3264 = vld [vmem:[%s2013 + $0x99] sm:$0xff]
      %v3265 = vld [vmem:[%s2013 + $0xa9] sm:$0xff]
      %v3266 = vld [vmem:[%s2013 + $0xb1] sm:$0xff]
      %v3267 = vld [vmem:[%s2013 + $0xc1] sm:$0xff]
      %v3268 = vld [vmem:[%s2013 + $0xc9] sm:$0xff]
      %v3269 = vld [vmem:[%s2013 + $0xd9] sm:$0xff]
      %v3270 = vld [vmem:[%s2013 + $0xe1] sm:$0xff]
      %v3271 = vld [vmem:[%s2013 + $0xf1] sm:$0xff]
      %v3272 = vld [vmem:[%s2013 + $0xf9] sm:$0xff]
      %v3273 = vld [vmem:[%s2013 + $0x109] sm:$0xff]
      %v3274 = vld [vmem:[%s2013 + $0x111] sm:$0xff]
      %v3275 = vld [vmem:[%s2013 + $0x121] sm:$0xff]
      %v3276 = vld [vmem:[%s2013 + $0x129] sm:$0xff]
      %v3277 = vld [vmem:[%s2013 + $0x139] sm:$0xff]
      %v3278 = vld [vmem:[%s2013 + $0x141] sm:$0xff]
      %v3279 = vld [vmem:[%s2013 + $0x151] sm:$0xff]
      %v3280 = vld [vmem:[%s2013 + $0x159] sm:$0xff]
      %v3281 = vld [vmem:[%s2013 + $0x169] sm:$0xff]
      %v3282 = vld [vmem:[%s2013 + $0x171] sm:$0xff]
      %v3283 = vld [vmem:[%s2013 + $0x2] sm:$0xff]
      %v3284 = vld [vmem:[%s2013 + $0xa] sm:$0xff]
      %v3285 = vld [vmem:[%s2013 + $0x1a] sm:$0xff]
      %v3286 = vld [vmem:[%s2013 + $0x22] sm:$0xff]
      %v3287 = vld [vmem:[%s2013 + $0x32] sm:$0xff]
      %v3288 = vld [vmem:[%s2013 + $0x3a] sm:$0xff]
      %v3289 = vld [vmem:[%s2013 + $0x4a] sm:$0xff]
      %v3290 = vld [vmem:[%s2013 + $0x52] sm:$0xff]
      %v3291 = vld [vmem:[%s2013 + $0x62] sm:$0xff]
      %v3292 = vld [vmem:[%s2013 + $0x6a] sm:$0xff]
      %v3293 = vld [vmem:[%s2013 + $0x7a] sm:$0xff]
      %v3294 = vld [vmem:[%s2013 + $0x82] sm:$0xff]
      %v3295 = vld [vmem:[%s2013 + $0x92] sm:$0xff]
      %v3296 = vld [vmem:[%s2013 + $0x9a] sm:$0xff]
      %v3297 = vld [vmem:[%s2013 + $0xaa] sm:$0xff]
      %v3298 = vld [vmem:[%s2013 + $0xb2] sm:$0xff]
      %v3299 = vld [vmem:[%s2013 + $0xc2] sm:$0xff]
      %v3300 = vld [vmem:[%s2013 + $0xca] sm:$0xff]
      %v3301 = vld [vmem:[%s2013 + $0xda] sm:$0xff]
      %v3302 = vld [vmem:[%s2013 + $0xe2] sm:$0xff]
      %v3303 = vld [vmem:[%s2013 + $0xf2] sm:$0xff]
      %v3304 = vld [vmem:[%s2013 + $0xfa] sm:$0xff]
      %v3305 = vld [vmem:[%s2013 + $0x10a] sm:$0xff]
      %v3306 = vld [vmem:[%s2013 + $0x112] sm:$0xff]
      %v3307 = vld [vmem:[%s2013 + $0x122] sm:$0xff]
      %v3308 = vld [vmem:[%s2013 + $0x12a] sm:$0xff]
      %v3309 = vld [vmem:[%s2013 + $0x13a] sm:$0xff]
      %v3310 = vld [vmem:[%s2013 + $0x142] sm:$0xff]
      %v3311 = vld [vmem:[%s2013 + $0x152] sm:$0xff]
      %v3312 = vld [vmem:[%s2013 + $0x15a] sm:$0xff]
      %v3313 = vld [vmem:[%s2013 + $0x16a] sm:$0xff]
      %v3314 = vld [vmem:[%s2013 + $0x172] sm:$0xff]
      %v3315 = vld [vmem:[%s2054] sm:$0xff]
      %v3316 = vld [vmem:[%s2054 + $0x8] sm:$0xff]
      %v3317 = vld [vmem:[%s2054 + $0x18] sm:$0xff]
      %v3318 = vld [vmem:[%s2054 + $0x20] sm:$0xff]
      %v3319 = vld [vmem:[%s2054 + $0x30] sm:$0xff]
      %v3320 = vld [vmem:[%s2054 + $0x38] sm:$0xff]
      %v3321 = vld [vmem:[%s2054 + $0x48] sm:$0xff]
      %v3322 = vld [vmem:[%s2054 + $0x50] sm:$0xff]
      %v3323 = vld [vmem:[%s2054 + $0x60] sm:$0xff]
      %v3324 = vld [vmem:[%s2054 + $0x68] sm:$0xff]
      %v3325 = vld [vmem:[%s2054 + $0x78] sm:$0xff]
      %v3326 = vld [vmem:[%s2054 + $0x80] sm:$0xff]
      %v3327 = vld [vmem:[%s2054 + $0x90] sm:$0xff]
      %v3328 = vld [vmem:[%s2054 + $0x98] sm:$0xff]
      %v3329 = vld [vmem:[%s2054 + $0xa8] sm:$0xff]
      %v3330 = vld [vmem:[%s2054 + $0xb0] sm:$0xff]
      %v3331 = vld [vmem:[%s2054 + $0xc0] sm:$0xff]
      %v3332 = vld [vmem:[%s2054 + $0xc8] sm:$0xff]
      %v3333 = vld [vmem:[%s2054 + $0xd8] sm:$0xff]
      %v3334 = vld [vmem:[%s2054 + $0xe0] sm:$0xff]
      %v3335 = vld [vmem:[%s2054 + $0xf0] sm:$0xff]
      %v3336 = vld [vmem:[%s2054 + $0xf8] sm:$0xff]
      %v3337 = vld [vmem:[%s2054 + $0x108] sm:$0xff]
      %v3338 = vld [vmem:[%s2054 + $0x110] sm:$0xff]
      %v3339 = vld [vmem:[%s2054 + $0x120] sm:$0xff]
      %v3340 = vld [vmem:[%s2054 + $0x128] sm:$0xff]
      %v3341 = vld [vmem:[%s2054 + $0x138] sm:$0xff]
      %v3342 = vld [vmem:[%s2054 + $0x140] sm:$0xff]
      %v3343 = vld [vmem:[%s2054 + $0x150] sm:$0xff]
      %v3344 = vld [vmem:[%s2054 + $0x158] sm:$0xff]
      %v3345 = vld [vmem:[%s2054 + $0x168] sm:$0xff]
      %v3346 = vld [vmem:[%s2054 + $0x170] sm:$0xff]
      %v3347 = vld [vmem:[%s2054 + $0x1] sm:$0xff]
      %v3348 = vld [vmem:[%s2054 + $0x9] sm:$0xff]
      %v3349 = vld [vmem:[%s2054 + $0x19] sm:$0xff]
      %v3350 = vld [vmem:[%s2054 + $0x21] sm:$0xff]
      %v3351 = vld [vmem:[%s2054 + $0x31] sm:$0xff]
      %v3352 = vld [vmem:[%s2054 + $0x39] sm:$0xff]
      %v3353 = vld [vmem:[%s2054 + $0x49] sm:$0xff]
      %v3354 = vld [vmem:[%s2054 + $0x51] sm:$0xff]
      %v3355 = vld [vmem:[%s2054 + $0x61] sm:$0xff]
      %v3356 = vld [vmem:[%s2054 + $0x69] sm:$0xff]
      %v3357 = vld [vmem:[%s2054 + $0x79] sm:$0xff]
      %v3358 = vld [vmem:[%s2054 + $0x81] sm:$0xff]
      %v3359 = vld [vmem:[%s2054 + $0x91] sm:$0xff]
      %v3360 = vld [vmem:[%s2054 + $0x99] sm:$0xff]
      %v3361 = vld [vmem:[%s2054 + $0xa9] sm:$0xff]
      %v3362 = vld [vmem:[%s2054 + $0xb1] sm:$0xff]
      %v3363 = vld [vmem:[%s2054 + $0xc1] sm:$0xff]
      %v3364 = vld [vmem:[%s2054 + $0xc9] sm:$0xff]
      %v3365 = vld [vmem:[%s2054 + $0xd9] sm:$0xff]
      %v3366 = vld [vmem:[%s2054 + $0xe1] sm:$0xff]
      %v3367 = vld [vmem:[%s2054 + $0xf1] sm:$0xff]
      %v3368 = vld [vmem:[%s2054 + $0xf9] sm:$0xff]
      %v3369 = vld [vmem:[%s2054 + $0x109] sm:$0xff]
      %v3370 = vld [vmem:[%s2054 + $0x111] sm:$0xff]
      %v3371 = vld [vmem:[%s2054 + $0x121] sm:$0xff]
      %v3372 = vld [vmem:[%s2054 + $0x129] sm:$0xff]
      %v3373 = vld [vmem:[%s2054 + $0x139] sm:$0xff]
      %v3374 = vld [vmem:[%s2054 + $0x141] sm:$0xff]
      %v3375 = vld [vmem:[%s2054 + $0x151] sm:$0xff]
      %v3376 = vld [vmem:[%s2054 + $0x159] sm:$0xff]
      %v3377 = vld [vmem:[%s2054 + $0x169] sm:$0xff]
      %v3378 = vld [vmem:[%s2054 + $0x171] sm:$0xff]
      %v3379 = vld [vmem:[%s2021 + $0x1] sm:$0xff]
      %v3380 = vld [vmem:[%s2021 + $0x9] sm:$0xff]
      %v3381 = vld [vmem:[%s2021 + $0x19] sm:$0xff]
      %v3382 = vld [vmem:[%s2021 + $0x21] sm:$0xff]
      %v3383 = vld [vmem:[%s2021 + $0x31] sm:$0xff]
      %v3384 = vld [vmem:[%s2021 + $0x39] sm:$0xff]
      %v3385 = vld [vmem:[%s2021 + $0x49] sm:$0xff]
      %v3386 = vld [vmem:[%s2021 + $0x51] sm:$0xff]
      %v3387 = vld [vmem:[%s2021 + $0x61] sm:$0xff]
      %v3388 = vld [vmem:[%s2021 + $0x69] sm:$0xff]
      %v3389 = vld [vmem:[%s2021 + $0x79] sm:$0xff]
      %v3390 = vld [vmem:[%s2021 + $0x81] sm:$0xff]
      %v3391 = vld [vmem:[%s2021 + $0x91] sm:$0xff]
      %v3392 = vld [vmem:[%s2021 + $0x99] sm:$0xff]
      %v3393 = vld [vmem:[%s2021 + $0xa9] sm:$0xff]
      %v3394 = vld [vmem:[%s2021 + $0xb1] sm:$0xff]
      %v3395 = vld [vmem:[%s2021 + $0xc1] sm:$0xff]
      %v3396 = vld [vmem:[%s2021 + $0xc9] sm:$0xff]
      %v3397 = vld [vmem:[%s2021 + $0xd9] sm:$0xff]
      %v3398 = vld [vmem:[%s2021 + $0xe1] sm:$0xff]
      %v3399 = vld [vmem:[%s2021 + $0xf1] sm:$0xff]
      %v3400 = vld [vmem:[%s2021 + $0xf9] sm:$0xff]
      %v3401 = vld [vmem:[%s2021 + $0x109] sm:$0xff]
      %v3402 = vld [vmem:[%s2021 + $0x111] sm:$0xff]
      %v3403 = vld [vmem:[%s2021 + $0x121] sm:$0xff]
      %v3404 = vld [vmem:[%s2021 + $0x129] sm:$0xff]
      %v3405 = vld [vmem:[%s2021 + $0x139] sm:$0xff]
      %v3406 = vld [vmem:[%s2021 + $0x141] sm:$0xff]
      %v3407 = vld [vmem:[%s2021 + $0x151] sm:$0xff]
      %v3408 = vld [vmem:[%s2021 + $0x159] sm:$0xff]
      %v3409 = vld [vmem:[%s2021 + $0x169] sm:$0xff]
      %v3410 = vld [vmem:[%s2021 + $0x171] sm:$0xff]
      %v3411 = vld [vmem:[%s2021 + $0x2] sm:$0xff]
      %v3412 = vld [vmem:[%s2021 + $0xa] sm:$0xff]
      %v3413 = vld [vmem:[%s2021 + $0x1a] sm:$0xff]
      %v3414 = vld [vmem:[%s2021 + $0x22] sm:$0xff]
      %v3415 = vld [vmem:[%s2021 + $0x32] sm:$0xff]
      %v3416 = vld [vmem:[%s2021 + $0x3a] sm:$0xff]
      %v3417 = vld [vmem:[%s2021 + $0x4a] sm:$0xff]
      %v3418 = vld [vmem:[%s2021 + $0x52] sm:$0xff]
      %v3419 = vld [vmem:[%s2021 + $0x62] sm:$0xff]
      %v3420 = vld [vmem:[%s2021 + $0x6a] sm:$0xff]
      %v3421 = vld [vmem:[%s2021 + $0x7a] sm:$0xff]
      %v3422 = vld [vmem:[%s2021 + $0x82] sm:$0xff]
      %v3423 = vld [vmem:[%s2021 + $0x92] sm:$0xff]
      %v3424 = vld [vmem:[%s2021 + $0x9a] sm:$0xff]
      %v3425 = vld [vmem:[%s2021 + $0xaa] sm:$0xff]
      %v3426 = vld [vmem:[%s2021 + $0xb2] sm:$0xff]
      %v3427 = vld [vmem:[%s2021 + $0xc2] sm:$0xff]
      %v3428 = vld [vmem:[%s2021 + $0xca] sm:$0xff]
      %v3429 = vld [vmem:[%s2021 + $0xda] sm:$0xff]
      %v3430 = vld [vmem:[%s2021 + $0xe2] sm:$0xff]
      %v3431 = vld [vmem:[%s2021 + $0xf2] sm:$0xff]
      %v3432 = vld [vmem:[%s2021 + $0xfa] sm:$0xff]
      %v3433 = vld [vmem:[%s2021 + $0x10a] sm:$0xff]
      %v3434 = vld [vmem:[%s2021 + $0x112] sm:$0xff]
      %v3435 = vld [vmem:[%s2021 + $0x122] sm:$0xff]
      %v3436 = vld [vmem:[%s2021 + $0x12a] sm:$0xff]
      %v3437 = vld [vmem:[%s2021 + $0x13a] sm:$0xff]
      %v3438 = vld [vmem:[%s2021 + $0x142] sm:$0xff]
      %v3439 = vld [vmem:[%s2021 + $0x152] sm:$0xff]
      %v3440 = vld [vmem:[%s2021 + $0x15a] sm:$0xff]
      %v3441 = vld [vmem:[%s2021 + $0x16a] sm:$0xff]
      %v3442 = vld [vmem:[%s2021 + $0x172] sm:$0xff]
      %v3443 = vld [vmem:[%s2062] sm:$0xff]
      %v3444 = vld [vmem:[%s2062 + $0x8] sm:$0xff]
      %v3445 = vld [vmem:[%s2062 + $0x18] sm:$0xff]
      %v3446 = vld [vmem:[%s2062 + $0x20] sm:$0xff]
      %v3447 = vld [vmem:[%s2062 + $0x30] sm:$0xff]
      %v3448 = vld [vmem:[%s2062 + $0x38] sm:$0xff]
      %v3449 = vld [vmem:[%s2062 + $0x48] sm:$0xff]
      %v3450 = vld [vmem:[%s2062 + $0x50] sm:$0xff]
      %v3451 = vld [vmem:[%s2062 + $0x60] sm:$0xff]
      %v3452 = vld [vmem:[%s2062 + $0x68] sm:$0xff]
      %v3453 = vld [vmem:[%s2062 + $0x78] sm:$0xff]
      %v3454 = vld [vmem:[%s2062 + $0x80] sm:$0xff]
      %v3455 = vld [vmem:[%s2062 + $0x90] sm:$0xff]
      %v3456 = vld [vmem:[%s2062 + $0x98] sm:$0xff]
      %v3457 = vld [vmem:[%s2062 + $0xa8] sm:$0xff]
      %v3458 = vld [vmem:[%s2062 + $0xb0] sm:$0xff]
      %v3459 = vld [vmem:[%s2062 + $0xc0] sm:$0xff]
      %v3460 = vld [vmem:[%s2062 + $0xc8] sm:$0xff]
      %v3461 = vld [vmem:[%s2062 + $0xd8] sm:$0xff]
      %v3462 = vld [vmem:[%s2062 + $0xe0] sm:$0xff]
      %v3463 = vld [vmem:[%s2062 + $0xf0] sm:$0xff]
      %v3464 = vld [vmem:[%s2062 + $0xf8] sm:$0xff]
      %v3465 = vld [vmem:[%s2062 + $0x108] sm:$0xff]
      %v3466 = vld [vmem:[%s2062 + $0x110] sm:$0xff]
      %v3467 = vld [vmem:[%s2062 + $0x120] sm:$0xff]
      %v3468 = vld [vmem:[%s2062 + $0x128] sm:$0xff]
      %v3469 = vld [vmem:[%s2062 + $0x138] sm:$0xff]
      %v3470 = vld [vmem:[%s2062 + $0x140] sm:$0xff]
      %v3471 = vld [vmem:[%s2062 + $0x150] sm:$0xff]
      %v3472 = vld [vmem:[%s2062 + $0x158] sm:$0xff]
      %v3473 = vld [vmem:[%s2062 + $0x168] sm:$0xff]
      %v3474 = vld [vmem:[%s2062 + $0x170] sm:$0xff]
      %v3475 = vld [vmem:[%s2062 + $0x1] sm:$0xff]
      %v3476 = vld [vmem:[%s2062 + $0x9] sm:$0xff]
      %v3477 = vld [vmem:[%s2062 + $0x19] sm:$0xff]
      %v3478 = vld [vmem:[%s2062 + $0x21] sm:$0xff]
      %v3479 = vld [vmem:[%s2062 + $0x31] sm:$0xff]
      %v3480 = vld [vmem:[%s2062 + $0x39] sm:$0xff]
      %v3481 = vld [vmem:[%s2062 + $0x49] sm:$0xff]
      %v3482 = vld [vmem:[%s2062 + $0x51] sm:$0xff]
      %v3483 = vld [vmem:[%s2062 + $0x61] sm:$0xff]
      %v3484 = vld [vmem:[%s2062 + $0x69] sm:$0xff]
      %v3485 = vld [vmem:[%s2062 + $0x79] sm:$0xff]
      %v3486 = vld [vmem:[%s2062 + $0x81] sm:$0xff]
      %v3487 = vld [vmem:[%s2062 + $0x91] sm:$0xff]
      %v3488 = vld [vmem:[%s2062 + $0x99] sm:$0xff]
      %v3489 = vld [vmem:[%s2062 + $0xa9] sm:$0xff]
      %v3490 = vld [vmem:[%s2062 + $0xb1] sm:$0xff]
      %v3491 = vld [vmem:[%s2062 + $0xc1] sm:$0xff]
      %v3492 = vld [vmem:[%s2062 + $0xc9] sm:$0xff]
      %v3493 = vld [vmem:[%s2062 + $0xd9] sm:$0xff]
      %v3494 = vld [vmem:[%s2062 + $0xe1] sm:$0xff]
      %v3495 = vld [vmem:[%s2062 + $0xf1] sm:$0xff]
      %v3496 = vld [vmem:[%s2062 + $0xf9] sm:$0xff]
      %v3497 = vld [vmem:[%s2062 + $0x109] sm:$0xff]
      %v3498 = vld [vmem:[%s2062 + $0x111] sm:$0xff]
      %v3499 = vld [vmem:[%s2062 + $0x121] sm:$0xff]
      %v3500 = vld [vmem:[%s2062 + $0x129] sm:$0xff]
      %v3501 = vld [vmem:[%s2062 + $0x139] sm:$0xff]
      %v3502 = vld [vmem:[%s2062 + $0x141] sm:$0xff]
      %v3503 = vld [vmem:[%s2062 + $0x151] sm:$0xff]
      %v3504 = vld [vmem:[%s2062 + $0x159] sm:$0xff]
      %v3505 = vld [vmem:[%s2062 + $0x169] sm:$0xff]
      %v3506 = vld [vmem:[%s2062 + $0x171] sm:$0xff]
      %3539 = vrot.lane.b32.xlu0 %v3025, 32
      %v3540 = vpop.permute.xlu0 %3539
      %3541 = vrot.lane.b32.xlu0 %v3026, 32
      %v3542 = vpop.permute.xlu0 %3541
      %3543 = vrot.lane.b32.xlu0 %v3027, 32
      %v3544 = vpop.permute.xlu0 %3543
      %3545 = vrot.lane.b32.xlu0 %v3028, 32
      %v3546 = vpop.permute.xlu0 %3545
      %3547 = vrot.lane.b32.xlu0 %v3029, 32
      %v3548 = vpop.permute.xlu0 %3547
      %3549 = vrot.lane.b32.xlu0 %v3030, 32
      %v3550 = vpop.permute.xlu0 %3549
      %3551 = vrot.lane.b32.xlu0 %v3031, 32
      %v3552 = vpop.permute.xlu0 %3551
      %3553 = vrot.lane.b32.xlu0 %v3032, 32
      %v3554 = vpop.permute.xlu0 %3553
      %3555 = vrot.lane.b32.xlu0 %v3033, 32
      %v3556 = vpop.permute.xlu0 %3555
      %3557 = vrot.lane.b32.xlu0 %v3034, 32
      %v3558 = vpop.permute.xlu0 %3557
      %3559 = vrot.lane.b32.xlu0 %v3035, 32
      %v3560 = vpop.permute.xlu0 %3559
      %3561 = vrot.lane.b32.xlu0 %v3036, 32
      %v3562 = vpop.permute.xlu0 %3561
      %3563 = vrot.lane.b32.xlu0 %v3037, 32
      %v3564 = vpop.permute.xlu0 %3563
      %3565 = vrot.lane.b32.xlu0 %v3038, 32
      %v3566 = vpop.permute.xlu0 %3565
      %3567 = vrot.lane.b32.xlu0 %v3039, 32
      %v3568 = vpop.permute.xlu0 %3567
      %3569 = vrot.lane.b32.xlu0 %v3040, 32
      %v3570 = vpop.permute.xlu0 %3569
      %3571 = vrot.lane.b32.xlu0 %v3041, 32
      %v3572 = vpop.permute.xlu0 %3571
      %3573 = vrot.lane.b32.xlu0 %v3042, 32
      %v3574 = vpop.permute.xlu0 %3573
      %3575 = vrot.lane.b32.xlu0 %v3043, 32
      %v3576 = vpop.permute.xlu0 %3575
      %3577 = vrot.lane.b32.xlu0 %v3044, 32
      %v3578 = vpop.permute.xlu0 %3577
      %3579 = vrot.lane.b32.xlu0 %v3045, 32
      %v3580 = vpop.permute.xlu0 %3579
      %3581 = vrot.lane.b32.xlu0 %v3046, 32
      %v3582 = vpop.permute.xlu0 %3581
      %3583 = vrot.lane.b32.xlu0 %v3047, 32
      %v3584 = vpop.permute.xlu0 %3583
      %3585 = vrot.lane.b32.xlu0 %v3048, 32
      %v3586 = vpop.permute.xlu0 %3585
      %3587 = vrot.lane.b32.xlu0 %v3049, 32
      %v3588 = vpop.permute.xlu0 %3587
      %3589 = vrot.lane.b32.xlu0 %v3050, 32
      %v3590 = vpop.permute.xlu0 %3589
      %3591 = vrot.lane.b32.xlu0 %v3051, 32
      %v3592 = vpop.permute.xlu0 %3591
      %3593 = vrot.lane.b32.xlu0 %v3052, 32
      %v3594 = vpop.permute.xlu0 %3593
      %3595 = vrot.lane.b32.xlu0 %v3053, 32
      %v3596 = vpop.permute.xlu0 %3595
      %3597 = vrot.lane.b32.xlu0 %v3054, 32
      %v3598 = vpop.permute.xlu0 %3597
      %3599 = vrot.lane.b32.xlu0 %v3055, 32
      %v3600 = vpop.permute.xlu0 %3599
      %3601 = vrot.lane.b32.xlu0 %v3056, 32
      %v3602 = vpop.permute.xlu0 %3601
      %3667 = vrot.lane.b32.xlu0 %v3057, 64
      %v3668 = vpop.permute.xlu0 %3667
      %3669 = vrot.lane.b32.xlu0 %v3058, 64
      %v3670 = vpop.permute.xlu0 %3669
      %3671 = vrot.lane.b32.xlu0 %v3059, 64
      %v3672 = vpop.permute.xlu0 %3671
      %3673 = vrot.lane.b32.xlu0 %v3060, 64
      %v3674 = vpop.permute.xlu0 %3673
      %3675 = vrot.lane.b32.xlu0 %v3061, 64
      %v3676 = vpop.permute.xlu0 %3675
      %3677 = vrot.lane.b32.xlu0 %v3062, 64
      %v3678 = vpop.permute.xlu0 %3677
      %3679 = vrot.lane.b32.xlu0 %v3063, 64
      %v3680 = vpop.permute.xlu0 %3679
      %3681 = vrot.lane.b32.xlu0 %v3064, 64
      %v3682 = vpop.permute.xlu0 %3681
      %3683 = vrot.lane.b32.xlu0 %v3065, 64
      %v3684 = vpop.permute.xlu0 %3683
      %3685 = vrot.lane.b32.xlu0 %v3066, 64
      %v3686 = vpop.permute.xlu0 %3685
      %3687 = vrot.lane.b32.xlu0 %v3067, 64
      %v3688 = vpop.permute.xlu0 %3687
      %3689 = vrot.lane.b32.xlu0 %v3068, 64
      %v3690 = vpop.permute.xlu0 %3689
      %3691 = vrot.lane.b32.xlu0 %v3069, 64
      %v3692 = vpop.permute.xlu0 %3691
      %3693 = vrot.lane.b32.xlu0 %v3070, 64
      %v3694 = vpop.permute.xlu0 %3693
      %3695 = vrot.lane.b32.xlu0 %v3071, 64
      %v3696 = vpop.permute.xlu0 %3695
      %3697 = vrot.lane.b32.xlu0 %v3072, 64
      %v3698 = vpop.permute.xlu0 %3697
      %3699 = vrot.lane.b32.xlu0 %v3073, 64
      %v3700 = vpop.permute.xlu0 %3699
      %3701 = vrot.lane.b32.xlu0 %v3074, 64
      %v3702 = vpop.permute.xlu0 %3701
      %3703 = vrot.lane.b32.xlu0 %v3075, 64
      %v3704 = vpop.permute.xlu0 %3703
      %3705 = vrot.lane.b32.xlu0 %v3076, 64
      %v3706 = vpop.permute.xlu0 %3705
      %3707 = vrot.lane.b32.xlu0 %v3077, 64
      %v3708 = vpop.permute.xlu0 %3707
      %3709 = vrot.lane.b32.xlu0 %v3078, 64
      %v3710 = vpop.permute.xlu0 %3709
      %3711 = vrot.lane.b32.xlu0 %v3079, 64
      %v3712 = vpop.permute.xlu0 %3711
      %3713 = vrot.lane.b32.xlu0 %v3080, 64
      %v3714 = vpop.permute.xlu0 %3713
      %3715 = vrot.lane.b32.xlu0 %v3081, 64
      %v3716 = vpop.permute.xlu0 %3715
      %3717 = vrot.lane.b32.xlu0 %v3082, 64
      %v3718 = vpop.permute.xlu0 %3717
      %3719 = vrot.lane.b32.xlu0 %v3083, 64
      %v3720 = vpop.permute.xlu0 %3719
      %3721 = vrot.lane.b32.xlu0 %v3084, 64
      %v3722 = vpop.permute.xlu0 %3721
      %3723 = vrot.lane.b32.xlu0 %v3085, 64
      %v3724 = vpop.permute.xlu0 %3723
      %3725 = vrot.lane.b32.xlu0 %v3086, 64
      %v3726 = vpop.permute.xlu0 %3725
      %3727 = vrot.lane.b32.xlu0 %v3087, 64
      %v3728 = vpop.permute.xlu0 %3727
      %3729 = vrot.lane.b32.xlu0 %v3088, 64
      %v3730 = vpop.permute.xlu0 %3729
      %3795 = vrot.lane.b32.xlu0 %v3089, 96
      %v3796 = vpop.permute.xlu0 %3795
      %3797 = vrot.lane.b32.xlu0 %v3090, 96
      %v3798 = vpop.permute.xlu0 %3797
      %3799 = vrot.lane.b32.xlu0 %v3091, 96
      %v3800 = vpop.permute.xlu0 %3799
      %3801 = vrot.lane.b32.xlu0 %v3092, 96
      %v3802 = vpop.permute.xlu0 %3801
      %3803 = vrot.lane.b32.xlu0 %v3093, 96
      %v3804 = vpop.permute.xlu0 %3803
      %3805 = vrot.lane.b32.xlu0 %v3094, 96
      %v3806 = vpop.permute.xlu0 %3805
      %3807 = vrot.lane.b32.xlu0 %v3095, 96
      %v3808 = vpop.permute.xlu0 %3807
      %3809 = vrot.lane.b32.xlu0 %v3096, 96
      %v3810 = vpop.permute.xlu0 %3809
      %3811 = vrot.lane.b32.xlu0 %v3097, 96
      %v3812 = vpop.permute.xlu0 %3811
      %3813 = vrot.lane.b32.xlu0 %v3098, 96
      %v3814 = vpop.permute.xlu0 %3813
      %3815 = vrot.lane.b32.xlu0 %v3099, 96
      %v3816 = vpop.permute.xlu0 %3815
      %3817 = vrot.lane.b32.xlu0 %v3100, 96
      %v3818 = vpop.permute.xlu0 %3817
      %3819 = vrot.lane.b32.xlu0 %v3101, 96
      %v3820 = vpop.permute.xlu0 %3819
      %3821 = vrot.lane.b32.xlu0 %v3102, 96
      %v3822 = vpop.permute.xlu0 %3821
      %3823 = vrot.lane.b32.xlu0 %v3103, 96
      %v3824 = vpop.permute.xlu0 %3823
      %3825 = vrot.lane.b32.xlu0 %v3104, 96
      %v3826 = vpop.permute.xlu0 %3825
      %3827 = vrot.lane.b32.xlu0 %v3105, 96
      %v3828 = vpop.permute.xlu0 %3827
      %3829 = vrot.lane.b32.xlu0 %v3106, 96
      %v3830 = vpop.permute.xlu0 %3829
      %3831 = vrot.lane.b32.xlu0 %v3107, 96
      %v3832 = vpop.permute.xlu0 %3831
      %3833 = vrot.lane.b32.xlu0 %v3108, 96
      %v3834 = vpop.permute.xlu0 %3833
      %3835 = vrot.lane.b32.xlu0 %v3109, 96
      %v3836 = vpop.permute.xlu0 %3835
      %3837 = vrot.lane.b32.xlu0 %v3110, 96
      %v3838 = vpop.permute.xlu0 %3837
      %3839 = vrot.lane.b32.xlu0 %v3111, 96
      %v3840 = vpop.permute.xlu0 %3839
      %3841 = vrot.lane.b32.xlu0 %v3112, 96
      %v3842 = vpop.permute.xlu0 %3841
      %3843 = vrot.lane.b32.xlu0 %v3113, 96
      %v3844 = vpop.permute.xlu0 %3843
      %3845 = vrot.lane.b32.xlu0 %v3114, 96
      %v3846 = vpop.permute.xlu0 %3845
      %3847 = vrot.lane.b32.xlu0 %v3115, 96
      %v3848 = vpop.permute.xlu0 %3847
      %3849 = vrot.lane.b32.xlu0 %v3116, 96
      %v3850 = vpop.permute.xlu0 %3849
      %3851 = vrot.lane.b32.xlu0 %v3117, 96
      %v3852 = vpop.permute.xlu0 %3851
      %3853 = vrot.lane.b32.xlu0 %v3118, 96
      %v3854 = vpop.permute.xlu0 %3853
      %3855 = vrot.lane.b32.xlu0 %v3119, 96
      %v3856 = vpop.permute.xlu0 %3855
      %3857 = vrot.lane.b32.xlu0 %v3120, 96
      %v3858 = vpop.permute.xlu0 %3857
      %3923 = vrot.lane.b32.xlu0 %v3154, 32
      %v3924 = vpop.permute.xlu0 %3923
      %3925 = vrot.lane.b32.xlu0 %v3155, 32
      %v3926 = vpop.permute.xlu0 %3925
      %3927 = vrot.lane.b32.xlu0 %v3156, 32
      %v3928 = vpop.permute.xlu0 %3927
      %3929 = vrot.lane.b32.xlu0 %v3157, 32
      %v3930 = vpop.permute.xlu0 %3929
      %3931 = vrot.lane.b32.xlu0 %v3158, 32
      %v3932 = vpop.permute.xlu0 %3931
      %3933 = vrot.lane.b32.xlu0 %v3159, 32
      %v3934 = vpop.permute.xlu0 %3933
      %3935 = vrot.lane.b32.xlu0 %v3160, 32
      %v3936 = vpop.permute.xlu0 %3935
      %3937 = vrot.lane.b32.xlu0 %v3161, 32
      %v3938 = vpop.permute.xlu0 %3937
      %3939 = vrot.lane.b32.xlu0 %v3162, 32
      %v3940 = vpop.permute.xlu0 %3939
      %3941 = vrot.lane.b32.xlu0 %v3163, 32
      %v3942 = vpop.permute.xlu0 %3941
      %3943 = vrot.lane.b32.xlu0 %v3164, 32
      %v3944 = vpop.permute.xlu0 %3943
      %3945 = vrot.lane.b32.xlu0 %v3165, 32
      %v3946 = vpop.permute.xlu0 %3945
      %3947 = vrot.lane.b32.xlu0 %v3166, 32
      %v3948 = vpop.permute.xlu0 %3947
      %3949 = vrot.lane.b32.xlu0 %v3167, 32
      %v3950 = vpop.permute.xlu0 %3949
      %3951 = vrot.lane.b32.xlu0 %v3168, 32
      %v3952 = vpop.permute.xlu0 %3951
      %3953 = vrot.lane.b32.xlu0 %v3169, 32
      %v3954 = vpop.permute.xlu0 %3953
      %3955 = vrot.lane.b32.xlu0 %v3170, 32
      %v3956 = vpop.permute.xlu0 %3955
      %3957 = vrot.lane.b32.xlu0 %v3171, 32
      %v3958 = vpop.permute.xlu0 %3957
      %3959 = vrot.lane.b32.xlu0 %v3172, 32
      %v3960 = vpop.permute.xlu0 %3959
      %3961 = vrot.lane.b32.xlu0 %v3173, 32
      %v3962 = vpop.permute.xlu0 %3961
      %3963 = vrot.lane.b32.xlu0 %v3174, 32
      %v3964 = vpop.permute.xlu0 %3963
      %3965 = vrot.lane.b32.xlu0 %v3175, 32
      %v3966 = vpop.permute.xlu0 %3965
      %3967 = vrot.lane.b32.xlu0 %v3176, 32
      %v3968 = vpop.permute.xlu0 %3967
      %3969 = vrot.lane.b32.xlu0 %v3177, 32
      %v3970 = vpop.permute.xlu0 %3969
      %3971 = vrot.lane.b32.xlu0 %v3178, 32
      %v3972 = vpop.permute.xlu0 %3971
      %3973 = vrot.lane.b32.xlu0 %v3179, 32
      %v3974 = vpop.permute.xlu0 %3973
      %3975 = vrot.lane.b32.xlu0 %v3180, 32
      %v3976 = vpop.permute.xlu0 %3975
      %3977 = vrot.lane.b32.xlu0 %v3181, 32
      %v3978 = vpop.permute.xlu0 %3977
      %3979 = vrot.lane.b32.xlu0 %v3182, 32
      %v3980 = vpop.permute.xlu0 %3979
      %3981 = vrot.lane.b32.xlu0 %v3183, 32
      %v3982 = vpop.permute.xlu0 %3981
      %3983 = vrot.lane.b32.xlu0 %v3184, 32
      %v3984 = vpop.permute.xlu0 %3983
      %3985 = vrot.lane.b32.xlu0 %v3185, 32
      %v3986 = vpop.permute.xlu0 %3985
      %4051 = vrot.lane.b32.xlu0 %v3187, 64
      %v4052 = vpop.permute.xlu0 %4051
      %4053 = vrot.lane.b32.xlu0 %v3188, 64
      %v4054 = vpop.permute.xlu0 %4053
      %4055 = vrot.lane.b32.xlu0 %v3189, 64
      %v4056 = vpop.permute.xlu0 %4055
      %4057 = vrot.lane.b32.xlu0 %v3190, 64
      %v4058 = vpop.permute.xlu0 %4057
      %4059 = vrot.lane.b32.xlu0 %v3191, 64
      %v4060 = vpop.permute.xlu0 %4059
      %4061 = vrot.lane.b32.xlu0 %v3192, 64
      %v4062 = vpop.permute.xlu0 %4061
      %4063 = vrot.lane.b32.xlu0 %v3193, 64
      %v4064 = vpop.permute.xlu0 %4063
      %4065 = vrot.lane.b32.xlu0 %v3194, 64
      %v4066 = vpop.permute.xlu0 %4065
      %4067 = vrot.lane.b32.xlu0 %v3195, 64
      %v4068 = vpop.permute.xlu0 %4067
      %4069 = vrot.lane.b32.xlu0 %v3196, 64
      %v4070 = vpop.permute.xlu0 %4069
      %4071 = vrot.lane.b32.xlu0 %v3197, 64
      %v4072 = vpop.permute.xlu0 %4071
      %4073 = vrot.lane.b32.xlu0 %v3198, 64
      %v4074 = vpop.permute.xlu0 %4073
      %4075 = vrot.lane.b32.xlu0 %v3199, 64
      %v4076 = vpop.permute.xlu0 %4075
      %4077 = vrot.lane.b32.xlu0 %v3200, 64
      %v4078 = vpop.permute.xlu0 %4077
      %4079 = vrot.lane.b32.xlu0 %v3201, 64
      %v4080 = vpop.permute.xlu0 %4079
      %4081 = vrot.lane.b32.xlu0 %v3202, 64
      %v4082 = vpop.permute.xlu0 %4081
      %4083 = vrot.lane.b32.xlu0 %v3203, 64
      %v4084 = vpop.permute.xlu0 %4083
      %4085 = vrot.lane.b32.xlu0 %v3204, 64
      %v4086 = vpop.permute.xlu0 %4085
      %4087 = vrot.lane.b32.xlu0 %v3205, 64
      %v4088 = vpop.permute.xlu0 %4087
      %4089 = vrot.lane.b32.xlu0 %v3206, 64
      %v4090 = vpop.permute.xlu0 %4089
      %4091 = vrot.lane.b32.xlu0 %v3207, 64
      %v4092 = vpop.permute.xlu0 %4091
      %4093 = vrot.lane.b32.xlu0 %v3208, 64
      %v4094 = vpop.permute.xlu0 %4093
      %4095 = vrot.lane.b32.xlu0 %v3209, 64
      %v4096 = vpop.permute.xlu0 %4095
      %4097 = vrot.lane.b32.xlu0 %v3210, 64
      %v4098 = vpop.permute.xlu0 %4097
      %4099 = vrot.lane.b32.xlu0 %v3211, 64
      %v4100 = vpop.permute.xlu0 %4099
      %4101 = vrot.lane.b32.xlu0 %v3212, 64
      %v4102 = vpop.permute.xlu0 %4101
      %4103 = vrot.lane.b32.xlu0 %v3213, 64
      %v4104 = vpop.permute.xlu0 %4103
      %4105 = vrot.lane.b32.xlu0 %v3214, 64
      %v4106 = vpop.permute.xlu0 %4105
      %4107 = vrot.lane.b32.xlu0 %v3215, 64
      %v4108 = vpop.permute.xlu0 %4107
      %4109 = vrot.lane.b32.xlu0 %v3216, 64
      %v4110 = vpop.permute.xlu0 %4109
      %4111 = vrot.lane.b32.xlu0 %v3217, 64
      %v4112 = vpop.permute.xlu0 %4111
      %4113 = vrot.lane.b32.xlu0 %v3218, 64
      %v4114 = vpop.permute.xlu0 %4113
      %4179 = vrot.lane.b32.xlu0 %v3219, 96
      %v4180 = vpop.permute.xlu0 %4179
      %4181 = vrot.lane.b32.xlu0 %v3220, 96
      %v4182 = vpop.permute.xlu0 %4181
      %4183 = vrot.lane.b32.xlu0 %v3221, 96
      %v4184 = vpop.permute.xlu0 %4183
      %4185 = vrot.lane.b32.xlu0 %v3222, 96
      %v4186 = vpop.permute.xlu0 %4185
      %4187 = vrot.lane.b32.xlu0 %v3223, 96
      %v4188 = vpop.permute.xlu0 %4187
      %4189 = vrot.lane.b32.xlu0 %v3224, 96
      %v4190 = vpop.permute.xlu0 %4189
      %4191 = vrot.lane.b32.xlu0 %v3225, 96
      %v4192 = vpop.permute.xlu0 %4191
      %4193 = vrot.lane.b32.xlu0 %v3226, 96
      %v4194 = vpop.permute.xlu0 %4193
      %4195 = vrot.lane.b32.xlu0 %v3227, 96
      %v4196 = vpop.permute.xlu0 %4195
      %4197 = vrot.lane.b32.xlu0 %v3228, 96
      %v4198 = vpop.permute.xlu0 %4197
      %4199 = vrot.lane.b32.xlu0 %v3229, 96
      %v4200 = vpop.permute.xlu0 %4199
      %4201 = vrot.lane.b32.xlu0 %v3230, 96
      %v4202 = vpop.permute.xlu0 %4201
      %4203 = vrot.lane.b32.xlu0 %v3231, 96
      %v4204 = vpop.permute.xlu0 %4203
      %4205 = vrot.lane.b32.xlu0 %v3232, 96
      %v4206 = vpop.permute.xlu0 %4205
      %4207 = vrot.lane.b32.xlu0 %v3233, 96
      %v4208 = vpop.permute.xlu0 %4207
      %4209 = vrot.lane.b32.xlu0 %v3234, 96
      %v4210 = vpop.permute.xlu0 %4209
      %4211 = vrot.lane.b32.xlu0 %v3235, 96
      %v4212 = vpop.permute.xlu0 %4211
      %4213 = vrot.lane.b32.xlu0 %v3236, 96
      %v4214 = vpop.permute.xlu0 %4213
      %4215 = vrot.lane.b32.xlu0 %v3237, 96
      %v4216 = vpop.permute.xlu0 %4215
      %4217 = vrot.lane.b32.xlu0 %v3238, 96
      %v4218 = vpop.permute.xlu0 %4217
      %4219 = vrot.lane.b32.xlu0 %v3239, 96
      %v4220 = vpop.permute.xlu0 %4219
      %4221 = vrot.lane.b32.xlu0 %v3240, 96
      %v4222 = vpop.permute.xlu0 %4221
      %4223 = vrot.lane.b32.xlu0 %v3241, 96
      %v4224 = vpop.permute.xlu0 %4223
      %4225 = vrot.lane.b32.xlu0 %v3242, 96
      %v4226 = vpop.permute.xlu0 %4225
      %4227 = vrot.lane.b32.xlu0 %v3243, 96
      %v4228 = vpop.permute.xlu0 %4227
      %4229 = vrot.lane.b32.xlu0 %v3244, 96
      %v4230 = vpop.permute.xlu0 %4229
      %4231 = vrot.lane.b32.xlu0 %v3245, 96
      %v4232 = vpop.permute.xlu0 %4231
      %4233 = vrot.lane.b32.xlu0 %v3246, 96
      %v4234 = vpop.permute.xlu0 %4233
      %4235 = vrot.lane.b32.xlu0 %v3247, 96
      %v4236 = vpop.permute.xlu0 %4235
      %4237 = vrot.lane.b32.xlu0 %v3248, 96
      %v4238 = vpop.permute.xlu0 %4237
      %4239 = vrot.lane.b32.xlu0 %v3249, 96
      %v4240 = vpop.permute.xlu0 %4239
      %4241 = vrot.lane.b32.xlu0 %v3250, 96
      %v4242 = vpop.permute.xlu0 %4241
      %4307 = vrot.lane.b32.xlu0 %v3283, 32
      %v4308 = vpop.permute.xlu0 %4307
      %4309 = vrot.lane.b32.xlu0 %v3284, 32
      %v4310 = vpop.permute.xlu0 %4309
      %4311 = vrot.lane.b32.xlu0 %v3285, 32
      %v4312 = vpop.permute.xlu0 %4311
      %4313 = vrot.lane.b32.xlu0 %v3286, 32
      %v4314 = vpop.permute.xlu0 %4313
      %4315 = vrot.lane.b32.xlu0 %v3287, 32
      %v4316 = vpop.permute.xlu0 %4315
      %4317 = vrot.lane.b32.xlu0 %v3288, 32
      %v4318 = vpop.permute.xlu0 %4317
      %4319 = vrot.lane.b32.xlu0 %v3289, 32
      %v4320 = vpop.permute.xlu0 %4319
      %4321 = vrot.lane.b32.xlu0 %v3290, 32
      %v4322 = vpop.permute.xlu0 %4321
      %4323 = vrot.lane.b32.xlu0 %v3291, 32
      %v4324 = vpop.permute.xlu0 %4323
      %4325 = vrot.lane.b32.xlu0 %v3292, 32
      %v4326 = vpop.permute.xlu0 %4325
      %4327 = vrot.lane.b32.xlu0 %v3293, 32
      %v4328 = vpop.permute.xlu0 %4327
      %4329 = vrot.lane.b32.xlu0 %v3294, 32
      %v4330 = vpop.permute.xlu0 %4329
      %4331 = vrot.lane.b32.xlu0 %v3295, 32
      %v4332 = vpop.permute.xlu0 %4331
      %4333 = vrot.lane.b32.xlu0 %v3296, 32
      %v4334 = vpop.permute.xlu0 %4333
      %4335 = vrot.lane.b32.xlu0 %v3297, 32
      %v4336 = vpop.permute.xlu0 %4335
      %4337 = vrot.lane.b32.xlu0 %v3298, 32
      %v4338 = vpop.permute.xlu0 %4337
      %4339 = vrot.lane.b32.xlu0 %v3299, 32
      %v4340 = vpop.permute.xlu0 %4339
      %4341 = vrot.lane.b32.xlu0 %v3300, 32
      %v4342 = vpop.permute.xlu0 %4341
      %4343 = vrot.lane.b32.xlu0 %v3301, 32
      %v4344 = vpop.permute.xlu0 %4343
      %4345 = vrot.lane.b32.xlu0 %v3302, 32
      %v4346 = vpop.permute.xlu0 %4345
      %4347 = vrot.lane.b32.xlu0 %v3303, 32
      %v4348 = vpop.permute.xlu0 %4347
      %4349 = vrot.lane.b32.xlu0 %v3304, 32
      %v4350 = vpop.permute.xlu0 %4349
      %4351 = vrot.lane.b32.xlu0 %v3305, 32
      %v4352 = vpop.permute.xlu0 %4351
      %4353 = vrot.lane.b32.xlu0 %v3306, 32
      %v4354 = vpop.permute.xlu0 %4353
      %4355 = vrot.lane.b32.xlu0 %v3307, 32
      %v4356 = vpop.permute.xlu0 %4355
      %4357 = vrot.lane.b32.xlu0 %v3308, 32
      %v4358 = vpop.permute.xlu0 %4357
      %4359 = vrot.lane.b32.xlu0 %v3309, 32
      %v4360 = vpop.permute.xlu0 %4359
      %4361 = vrot.lane.b32.xlu0 %v3310, 32
      %v4362 = vpop.permute.xlu0 %4361
      %4363 = vrot.lane.b32.xlu0 %v3311, 32
      %v4364 = vpop.permute.xlu0 %4363
      %4365 = vrot.lane.b32.xlu0 %v3312, 32
      %v4366 = vpop.permute.xlu0 %4365
      %4367 = vrot.lane.b32.xlu0 %v3313, 32
      %v4368 = vpop.permute.xlu0 %4367
      %4369 = vrot.lane.b32.xlu0 %v3314, 32
      %v4370 = vpop.permute.xlu0 %4369
      %4435 = vrot.lane.b32.xlu0 %v3315, 64
      %v4436 = vpop.permute.xlu0 %4435
      %4437 = vrot.lane.b32.xlu0 %v3316, 64
      %v4438 = vpop.permute.xlu0 %4437
      %4439 = vrot.lane.b32.xlu0 %v3317, 64
      %v4440 = vpop.permute.xlu0 %4439
      %4441 = vrot.lane.b32.xlu0 %v3318, 64
      %v4442 = vpop.permute.xlu0 %4441
      %4443 = vrot.lane.b32.xlu0 %v3319, 64
      %v4444 = vpop.permute.xlu0 %4443
      %4445 = vrot.lane.b32.xlu0 %v3320, 64
      %v4446 = vpop.permute.xlu0 %4445
      %4447 = vrot.lane.b32.xlu0 %v3321, 64
      %v4448 = vpop.permute.xlu0 %4447
      %4449 = vrot.lane.b32.xlu0 %v3322, 64
      %v4450 = vpop.permute.xlu0 %4449
      %4451 = vrot.lane.b32.xlu0 %v3323, 64
      %v4452 = vpop.permute.xlu0 %4451
      %4453 = vrot.lane.b32.xlu0 %v3324, 64
      %v4454 = vpop.permute.xlu0 %4453
      %4455 = vrot.lane.b32.xlu0 %v3325, 64
      %v4456 = vpop.permute.xlu0 %4455
      %4457 = vrot.lane.b32.xlu0 %v3326, 64
      %v4458 = vpop.permute.xlu0 %4457
      %4459 = vrot.lane.b32.xlu0 %v3327, 64
      %v4460 = vpop.permute.xlu0 %4459
      %4461 = vrot.lane.b32.xlu0 %v3328, 64
      %v4462 = vpop.permute.xlu0 %4461
      %4463 = vrot.lane.b32.xlu0 %v3329, 64
      %v4464 = vpop.permute.xlu0 %4463
      %4465 = vrot.lane.b32.xlu0 %v3330, 64
      %v4466 = vpop.permute.xlu0 %4465
      %4467 = vrot.lane.b32.xlu0 %v3331, 64
      %v4468 = vpop.permute.xlu0 %4467
      %4469 = vrot.lane.b32.xlu0 %v3332, 64
      %v4470 = vpop.permute.xlu0 %4469
      %4471 = vrot.lane.b32.xlu0 %v3333, 64
      %v4472 = vpop.permute.xlu0 %4471
      %4473 = vrot.lane.b32.xlu0 %v3334, 64
      %v4474 = vpop.permute.xlu0 %4473
      %4475 = vrot.lane.b32.xlu0 %v3335, 64
      %v4476 = vpop.permute.xlu0 %4475
      %4477 = vrot.lane.b32.xlu0 %v3336, 64
      %v4478 = vpop.permute.xlu0 %4477
      %4479 = vrot.lane.b32.xlu0 %v3337, 64
      %v4480 = vpop.permute.xlu0 %4479
      %4481 = vrot.lane.b32.xlu0 %v3338, 64
      %v4482 = vpop.permute.xlu0 %4481
      %4483 = vrot.lane.b32.xlu0 %v3339, 64
      %v4484 = vpop.permute.xlu0 %4483
      %4485 = vrot.lane.b32.xlu0 %v3340, 64
      %v4486 = vpop.permute.xlu0 %4485
      %4487 = vrot.lane.b32.xlu0 %v3341, 64
      %v4488 = vpop.permute.xlu0 %4487
      %4489 = vrot.lane.b32.xlu0 %v3342, 64
      %v4490 = vpop.permute.xlu0 %4489
      %4491 = vrot.lane.b32.xlu0 %v3343, 64
      %v4492 = vpop.permute.xlu0 %4491
      %4493 = vrot.lane.b32.xlu0 %v3344, 64
      %v4494 = vpop.permute.xlu0 %4493
      %4495 = vrot.lane.b32.xlu0 %v3345, 64
      %v4496 = vpop.permute.xlu0 %4495
      %4497 = vrot.lane.b32.xlu0 %v3346, 64
      %v4498 = vpop.permute.xlu0 %4497
      %4563 = vrot.lane.b32.xlu0 %v3347, 96
      %v4564 = vpop.permute.xlu0 %4563
      %4565 = vrot.lane.b32.xlu0 %v3348, 96
      %v4566 = vpop.permute.xlu0 %4565
      %4567 = vrot.lane.b32.xlu0 %v3349, 96
      %v4568 = vpop.permute.xlu0 %4567
      %4569 = vrot.lane.b32.xlu0 %v3350, 96
      %v4570 = vpop.permute.xlu0 %4569
      %4571 = vrot.lane.b32.xlu0 %v3351, 96
      %v4572 = vpop.permute.xlu0 %4571
      %4573 = vrot.lane.b32.xlu0 %v3352, 96
      %v4574 = vpop.permute.xlu0 %4573
      %4575 = vrot.lane.b32.xlu0 %v3353, 96
      %v4576 = vpop.permute.xlu0 %4575
      %4577 = vrot.lane.b32.xlu0 %v3354, 96
      %v4578 = vpop.permute.xlu0 %4577
      %4579 = vrot.lane.b32.xlu0 %v3355, 96
      %v4580 = vpop.permute.xlu0 %4579
      %4581 = vrot.lane.b32.xlu0 %v3356, 96
      %v4582 = vpop.permute.xlu0 %4581
      %4583 = vrot.lane.b32.xlu0 %v3357, 96
      %v4584 = vpop.permute.xlu0 %4583
      %4585 = vrot.lane.b32.xlu0 %v3358, 96
      %v4586 = vpop.permute.xlu0 %4585
      %4587 = vrot.lane.b32.xlu0 %v3359, 96
      %v4588 = vpop.permute.xlu0 %4587
      %4589 = vrot.lane.b32.xlu0 %v3360, 96
      %v4590 = vpop.permute.xlu0 %4589
      %4591 = vrot.lane.b32.xlu0 %v3361, 96
      %v4592 = vpop.permute.xlu0 %4591
      %4593 = vrot.lane.b32.xlu0 %v3362, 96
      %v4594 = vpop.permute.xlu0 %4593
      %4595 = vrot.lane.b32.xlu0 %v3363, 96
      %v4596 = vpop.permute.xlu0 %4595
      %4597 = vrot.lane.b32.xlu0 %v3364, 96
      %v4598 = vpop.permute.xlu0 %4597
      %4599 = vrot.lane.b32.xlu0 %v3365, 96
      %v4600 = vpop.permute.xlu0 %4599
      %4601 = vrot.lane.b32.xlu0 %v3366, 96
      %v4602 = vpop.permute.xlu0 %4601
      %4603 = vrot.lane.b32.xlu0 %v3367, 96
      %v4604 = vpop.permute.xlu0 %4603
      %4605 = vrot.lane.b32.xlu0 %v3368, 96
      %v4606 = vpop.permute.xlu0 %4605
      %4607 = vrot.lane.b32.xlu0 %v3369, 96
      %v4608 = vpop.permute.xlu0 %4607
      %4609 = vrot.lane.b32.xlu0 %v3370, 96
      %v4610 = vpop.permute.xlu0 %4609
      %4611 = vrot.lane.b32.xlu0 %v3371, 96
      %v4612 = vpop.permute.xlu0 %4611
      %4613 = vrot.lane.b32.xlu0 %v3372, 96
      %v4614 = vpop.permute.xlu0 %4613
      %4615 = vrot.lane.b32.xlu0 %v3373, 96
      %v4616 = vpop.permute.xlu0 %4615
      %4617 = vrot.lane.b32.xlu0 %v3374, 96
      %v4618 = vpop.permute.xlu0 %4617
      %4619 = vrot.lane.b32.xlu0 %v3375, 96
      %v4620 = vpop.permute.xlu0 %4619
      %4621 = vrot.lane.b32.xlu0 %v3376, 96
      %v4622 = vpop.permute.xlu0 %4621
      %4623 = vrot.lane.b32.xlu0 %v3377, 96
      %v4624 = vpop.permute.xlu0 %4623
      %4625 = vrot.lane.b32.xlu0 %v3378, 96
      %v4626 = vpop.permute.xlu0 %4625
      %4691 = vrot.lane.b32.xlu0 %v3411, 32
      %v4692 = vpop.permute.xlu0 %4691
      %4693 = vrot.lane.b32.xlu0 %v3412, 32
      %v4694 = vpop.permute.xlu0 %4693
      %4695 = vrot.lane.b32.xlu0 %v3413, 32
      %v4696 = vpop.permute.xlu0 %4695
      %4697 = vrot.lane.b32.xlu0 %v3414, 32
      %v4698 = vpop.permute.xlu0 %4697
      %4699 = vrot.lane.b32.xlu0 %v3415, 32
      %v4700 = vpop.permute.xlu0 %4699
      %4701 = vrot.lane.b32.xlu0 %v3416, 32
      %v4702 = vpop.permute.xlu0 %4701
      %4703 = vrot.lane.b32.xlu0 %v3417, 32
      %v4704 = vpop.permute.xlu0 %4703
      %4705 = vrot.lane.b32.xlu0 %v3418, 32
      %v4706 = vpop.permute.xlu0 %4705
      %4707 = vrot.lane.b32.xlu0 %v3419, 32
      %v4708 = vpop.permute.xlu0 %4707
      %4709 = vrot.lane.b32.xlu0 %v3420, 32
      %v4710 = vpop.permute.xlu0 %4709
      %4711 = vrot.lane.b32.xlu0 %v3421, 32
      %v4712 = vpop.permute.xlu0 %4711
      %4713 = vrot.lane.b32.xlu0 %v3422, 32
      %v4714 = vpop.permute.xlu0 %4713
      %4715 = vrot.lane.b32.xlu0 %v3423, 32
      %v4716 = vpop.permute.xlu0 %4715
      %4717 = vrot.lane.b32.xlu0 %v3424, 32
      %v4718 = vpop.permute.xlu0 %4717
      %4719 = vrot.lane.b32.xlu0 %v3425, 32
      %v4720 = vpop.permute.xlu0 %4719
      %4721 = vrot.lane.b32.xlu0 %v3426, 32
      %v4722 = vpop.permute.xlu0 %4721
      %4723 = vrot.lane.b32.xlu0 %v3427, 32
      %v4724 = vpop.permute.xlu0 %4723
      %4725 = vrot.lane.b32.xlu0 %v3428, 32
      %v4726 = vpop.permute.xlu0 %4725
      %4727 = vrot.lane.b32.xlu0 %v3429, 32
      %v4728 = vpop.permute.xlu0 %4727
      %4729 = vrot.lane.b32.xlu0 %v3430, 32
      %v4730 = vpop.permute.xlu0 %4729
      %4731 = vrot.lane.b32.xlu0 %v3431, 32
      %v4732 = vpop.permute.xlu0 %4731
      %4733 = vrot.lane.b32.xlu0 %v3432, 32
      %v4734 = vpop.permute.xlu0 %4733
      %4735 = vrot.lane.b32.xlu0 %v3433, 32
      %v4736 = vpop.permute.xlu0 %4735
      %4737 = vrot.lane.b32.xlu0 %v3434, 32
      %v4738 = vpop.permute.xlu0 %4737
      %4739 = vrot.lane.b32.xlu0 %v3435, 32
      %v4740 = vpop.permute.xlu0 %4739
      %4741 = vrot.lane.b32.xlu0 %v3436, 32
      %v4742 = vpop.permute.xlu0 %4741
      %4743 = vrot.lane.b32.xlu0 %v3437, 32
      %v4744 = vpop.permute.xlu0 %4743
      %4745 = vrot.lane.b32.xlu0 %v3438, 32
      %v4746 = vpop.permute.xlu0 %4745
      %4747 = vrot.lane.b32.xlu0 %v3439, 32
      %v4748 = vpop.permute.xlu0 %4747
      %4749 = vrot.lane.b32.xlu0 %v3440, 32
      %v4750 = vpop.permute.xlu0 %4749
      %4751 = vrot.lane.b32.xlu0 %v3441, 32
      %v4752 = vpop.permute.xlu0 %4751
      %4753 = vrot.lane.b32.xlu0 %v3442, 32
      %v4754 = vpop.permute.xlu0 %4753
      %4819 = vrot.lane.b32.xlu0 %v3443, 64
      %v4820 = vpop.permute.xlu0 %4819
      %4821 = vrot.lane.b32.xlu0 %v3444, 64
      %v4822 = vpop.permute.xlu0 %4821
      %4823 = vrot.lane.b32.xlu0 %v3445, 64
      %v4824 = vpop.permute.xlu0 %4823
      %4825 = vrot.lane.b32.xlu0 %v3446, 64
      %v4826 = vpop.permute.xlu0 %4825
      %4827 = vrot.lane.b32.xlu0 %v3447, 64
      %v4828 = vpop.permute.xlu0 %4827
      %4829 = vrot.lane.b32.xlu0 %v3448, 64
      %v4830 = vpop.permute.xlu0 %4829
      %4831 = vrot.lane.b32.xlu0 %v3449, 64
      %v4832 = vpop.permute.xlu0 %4831
      %4833 = vrot.lane.b32.xlu0 %v3450, 64
      %v4834 = vpop.permute.xlu0 %4833
      %4835 = vrot.lane.b32.xlu0 %v3451, 64
      %v4836 = vpop.permute.xlu0 %4835
      %4837 = vrot.lane.b32.xlu0 %v3452, 64
      %v4838 = vpop.permute.xlu0 %4837
      %4839 = vrot.lane.b32.xlu0 %v3453, 64
      %v4840 = vpop.permute.xlu0 %4839
      %4841 = vrot.lane.b32.xlu0 %v3454, 64
      %v4842 = vpop.permute.xlu0 %4841
      %4843 = vrot.lane.b32.xlu0 %v3455, 64
      %v4844 = vpop.permute.xlu0 %4843
      %4845 = vrot.lane.b32.xlu0 %v3456, 64
      %v4846 = vpop.permute.xlu0 %4845
      %4847 = vrot.lane.b32.xlu0 %v3457, 64
      %v4848 = vpop.permute.xlu0 %4847
      %4849 = vrot.lane.b32.xlu0 %v3458, 64
      %v4850 = vpop.permute.xlu0 %4849
      %4851 = vrot.lane.b32.xlu0 %v3459, 64
      %v4852 = vpop.permute.xlu0 %4851
      %4853 = vrot.lane.b32.xlu0 %v3460, 64
      %v4854 = vpop.permute.xlu0 %4853
      %4855 = vrot.lane.b32.xlu0 %v3461, 64
      %v4856 = vpop.permute.xlu0 %4855
      %4857 = vrot.lane.b32.xlu0 %v3462, 64
      %v4858 = vpop.permute.xlu0 %4857
      %4859 = vrot.lane.b32.xlu0 %v3463, 64
      %v4860 = vpop.permute.xlu0 %4859
      %4861 = vrot.lane.b32.xlu0 %v3464, 64
      %v4862 = vpop.permute.xlu0 %4861
      %4863 = vrot.lane.b32.xlu0 %v3465, 64
      %v4864 = vpop.permute.xlu0 %4863
      %4865 = vrot.lane.b32.xlu0 %v3466, 64
      %v4866 = vpop.permute.xlu0 %4865
      %4867 = vrot.lane.b32.xlu0 %v3467, 64
      %v4868 = vpop.permute.xlu0 %4867
      %4869 = vrot.lane.b32.xlu0 %v3468, 64
      %v4870 = vpop.permute.xlu0 %4869
      %4871 = vrot.lane.b32.xlu0 %v3469, 64
      %v4872 = vpop.permute.xlu0 %4871
      %4873 = vrot.lane.b32.xlu0 %v3470, 64
      %v4874 = vpop.permute.xlu0 %4873
      %4875 = vrot.lane.b32.xlu0 %v3471, 64
      %v4876 = vpop.permute.xlu0 %4875
      %4877 = vrot.lane.b32.xlu0 %v3472, 64
      %v4878 = vpop.permute.xlu0 %4877
      %4879 = vrot.lane.b32.xlu0 %v3473, 64
      %v4880 = vpop.permute.xlu0 %4879
      %4881 = vrot.lane.b32.xlu0 %v3474, 64
      %v4882 = vpop.permute.xlu0 %4881
      %4947 = vrot.lane.b32.xlu0 %v3475, 96
      %v4948 = vpop.permute.xlu0 %4947
      %4949 = vrot.lane.b32.xlu0 %v3476, 96
      %v4950 = vpop.permute.xlu0 %4949
      %4951 = vrot.lane.b32.xlu0 %v3477, 96
      %v4952 = vpop.permute.xlu0 %4951
      %4953 = vrot.lane.b32.xlu0 %v3478, 96
      %v4954 = vpop.permute.xlu0 %4953
      %4955 = vrot.lane.b32.xlu0 %v3479, 96
      %v4956 = vpop.permute.xlu0 %4955
      %4957 = vrot.lane.b32.xlu0 %v3480, 96
      %v4958 = vpop.permute.xlu0 %4957
      %4959 = vrot.lane.b32.xlu0 %v3481, 96
      %v4960 = vpop.permute.xlu0 %4959
      %4961 = vrot.lane.b32.xlu0 %v3482, 96
      %v4962 = vpop.permute.xlu0 %4961
      %4963 = vrot.lane.b32.xlu0 %v3483, 96
      %v4964 = vpop.permute.xlu0 %4963
      %4965 = vrot.lane.b32.xlu0 %v3484, 96
      %v4966 = vpop.permute.xlu0 %4965
      %4967 = vrot.lane.b32.xlu0 %v3485, 96
      %v4968 = vpop.permute.xlu0 %4967
      %4969 = vrot.lane.b32.xlu0 %v3486, 96
      %v4970 = vpop.permute.xlu0 %4969
      %4971 = vrot.lane.b32.xlu0 %v3487, 96
      %v4972 = vpop.permute.xlu0 %4971
      %4973 = vrot.lane.b32.xlu0 %v3488, 96
      %v4974 = vpop.permute.xlu0 %4973
      %4975 = vrot.lane.b32.xlu0 %v3489, 96
      %v4976 = vpop.permute.xlu0 %4975
      %4977 = vrot.lane.b32.xlu0 %v3490, 96
      %v4978 = vpop.permute.xlu0 %4977
      %4979 = vrot.lane.b32.xlu0 %v3491, 96
      %v4980 = vpop.permute.xlu0 %4979
      %4981 = vrot.lane.b32.xlu0 %v3492, 96
      %v4982 = vpop.permute.xlu0 %4981
      %4983 = vrot.lane.b32.xlu0 %v3493, 96
      %v4984 = vpop.permute.xlu0 %4983
      %4985 = vrot.lane.b32.xlu0 %v3494, 96
      %v4986 = vpop.permute.xlu0 %4985
      %4987 = vrot.lane.b32.xlu0 %v3495, 96
      %v4988 = vpop.permute.xlu0 %4987
      %4989 = vrot.lane.b32.xlu0 %v3496, 96
      %v4990 = vpop.permute.xlu0 %4989
      %4991 = vrot.lane.b32.xlu0 %v3497, 96
      %v4992 = vpop.permute.xlu0 %4991
      %4993 = vrot.lane.b32.xlu0 %v3498, 96
      %v4994 = vpop.permute.xlu0 %4993
      %4995 = vrot.lane.b32.xlu0 %v3499, 96
      %v4996 = vpop.permute.xlu0 %4995
      %4997 = vrot.lane.b32.xlu0 %v3500, 96
      %v4998 = vpop.permute.xlu0 %4997
      %4999 = vrot.lane.b32.xlu0 %v3501, 96
      %v5000 = vpop.permute.xlu0 %4999
      %5001 = vrot.lane.b32.xlu0 %v3502, 96
      %v5002 = vpop.permute.xlu0 %5001
      %5003 = vrot.lane.b32.xlu0 %v3503, 96
      %v5004 = vpop.permute.xlu0 %5003
      %5005 = vrot.lane.b32.xlu0 %v3504, 96
      %v5006 = vpop.permute.xlu0 %5005
      %5007 = vrot.lane.b32.xlu0 %v3505, 96
      %v5008 = vpop.permute.xlu0 %5007
      %5009 = vrot.lane.b32.xlu0 %v3506, 96
      %v5010 = vpop.permute.xlu0 %5009
      %v5043 = vsel %vm1514, %v2993, %v3540
      %v5044 = vsel %vm1514, %v2994, %v3542
      %v5045 = vsel %vm1514, %v2995, %v3544
      %v5046 = vsel %vm1514, %v2996, %v3546
      %v5047 = vsel %vm1514, %v2997, %v3548
      %v5048 = vsel %vm1514, %v2998, %v3550
      %v5049 = vsel %vm1514, %v2999, %v3552
      %v5050 = vsel %vm1514, %v3000, %v3554
      %v5051 = vsel %vm1514, %v3001, %v3556
      %v5052 = vsel %vm1514, %v3002, %v3558
      %v5053 = vsel %vm1514, %v3003, %v3560
      %v5054 = vsel %vm1514, %v3004, %v3562
      %v5055 = vsel %vm1514, %v3005, %v3564
      %v5056 = vsel %vm1514, %v3006, %v3566
      %v5057 = vsel %vm1514, %v3007, %v3568
      %v5058 = vsel %vm1514, %v3008, %v3570
      %v5059 = vsel %vm1514, %v3009, %v3572
      %v5060 = vsel %vm1514, %v3010, %v3574
      %v5061 = vsel %vm1514, %v3011, %v3576
      %v5062 = vsel %vm1514, %v3012, %v3578
      %v5063 = vsel %vm1514, %v3013, %v3580
      %v5064 = vsel %vm1514, %v3014, %v3582
      %v5065 = vsel %vm1514, %v3015, %v3584
      %v5066 = vsel %vm1514, %v3016, %v3586
      %v5067 = vsel %vm1514, %v3017, %v3588
      %v5068 = vsel %vm1514, %v3018, %v3590
      %v5069 = vsel %vm1514, %v3019, %v3592
      %v5070 = vsel %vm1514, %v3020, %v3594
      %v5071 = vsel %vm1514, %v3021, %v3596
      %v5072 = vsel %vm1514, %v3022, %v3598
      %v5073 = vsel %vm1514, %v3023, %v3600
      %v5074 = vsel %vm1514, %v3024, %v3602
      %v5075 = vsel %vm2927, %v5043, %v3668
      %v5076 = vsel %vm2927, %v5044, %v3670
      %v5077 = vsel %vm2927, %v5045, %v3672
      %v5078 = vsel %vm2927, %v5046, %v3674
      %v5079 = vsel %vm2927, %v5047, %v3676
      %v5080 = vsel %vm2927, %v5048, %v3678
      %v5081 = vsel %vm2927, %v5049, %v3680
      %v5082 = vsel %vm2927, %v5050, %v3682
      %v5083 = vsel %vm2927, %v5051, %v3684
      %v5084 = vsel %vm2927, %v5052, %v3686
      %v5085 = vsel %vm2927, %v5053, %v3688
      %v5086 = vsel %vm2927, %v5054, %v3690
      %v5087 = vsel %vm2927, %v5055, %v3692
      %v5088 = vsel %vm2927, %v5056, %v3694
      %v5089 = vsel %vm2927, %v5057, %v3696
      %v5090 = vsel %vm2927, %v5058, %v3698
      %v5091 = vsel %vm2927, %v5059, %v3700
      %v5092 = vsel %vm2927, %v5060, %v3702
      %v5093 = vsel %vm2927, %v5061, %v3704
      %v5094 = vsel %vm2927, %v5062, %v3706
      %v5095 = vsel %vm2927, %v5063, %v3708
      %v5096 = vsel %vm2927, %v5064, %v3710
      %v5097 = vsel %vm2927, %v5065, %v3712
      %v5098 = vsel %vm2927, %v5066, %v3714
      %v5099 = vsel %vm2927, %v5067, %v3716
      %v5100 = vsel %vm2927, %v5068, %v3718
      %v5101 = vsel %vm2927, %v5069, %v3720
      %v5102 = vsel %vm2927, %v5070, %v3722
      %v5103 = vsel %vm2927, %v5071, %v3724
      %v5104 = vsel %vm2927, %v5072, %v3726
      %v5105 = vsel %vm2927, %v5073, %v3728
      %v5106 = vsel %vm2927, %v5074, %v3730
      %v5107 = vsel %vm2960, %v5075, %v3796
      %v5108 = vsel %vm2960, %v5076, %v3798
      %v5109 = vsel %vm2960, %v5077, %v3800
      %v5110 = vsel %vm2960, %v5078, %v3802
      %v5111 = vsel %vm2960, %v5079, %v3804
      %v5112 = vsel %vm2960, %v5080, %v3806
      %v5113 = vsel %vm2960, %v5081, %v3808
      %v5114 = vsel %vm2960, %v5082, %v3810
      %v5115 = vsel %vm2960, %v5083, %v3812
      %v5116 = vsel %vm2960, %v5084, %v3814
      %v5117 = vsel %vm2960, %v5085, %v3816
      %v5118 = vsel %vm2960, %v5086, %v3818
      %v5119 = vsel %vm2960, %v5087, %v3820
      %v5120 = vsel %vm2960, %v5088, %v3822
      %v5121 = vsel %vm2960, %v5089, %v3824
      %v5122 = vsel %vm2960, %v5090, %v3826
      %v5123 = vsel %vm2960, %v5091, %v3828
      %v5124 = vsel %vm2960, %v5092, %v3830
      %v5125 = vsel %vm2960, %v5093, %v3832
      %v5126 = vsel %vm2960, %v5094, %v3834
      %v5127 = vsel %vm2960, %v5095, %v3836
      %v5128 = vsel %vm2960, %v5096, %v3838
      %v5129 = vsel %vm2960, %v5097, %v3840
      %v5130 = vsel %vm2960, %v5098, %v3842
      %v5131 = vsel %vm2960, %v5099, %v3844
      %v5132 = vsel %vm2960, %v5100, %v3846
      %v5133 = vsel %vm2960, %v5101, %v3848
      %v5134 = vsel %vm2960, %v5102, %v3850
      %v5135 = vsel %vm2960, %v5103, %v3852
      %v5136 = vsel %vm2960, %v5104, %v3854
      %v5137 = vsel %vm2960, %v5105, %v3856
      %v5138 = vsel %vm2960, %v5106, %v3858
      %v5139 = vsel %vm1514, %v3122, %v3924
      %v5140 = vsel %vm1514, %v3123, %v3926
      %v5141 = vsel %vm1514, %v3124, %v3928
      %v5142 = vsel %vm1514, %v3125, %v3930
      %v5143 = vsel %vm1514, %v3126, %v3932
      %v5144 = vsel %vm1514, %v3127, %v3934
      %v5145 = vsel %vm1514, %v3128, %v3936
      %v5146 = vsel %vm1514, %v3129, %v3938
      %v5147 = vsel %vm1514, %v3130, %v3940
      %v5148 = vsel %vm1514, %v3131, %v3942
      %v5149 = vsel %vm1514, %v3132, %v3944
      %v5150 = vsel %vm1514, %v3133, %v3946
      %v5151 = vsel %vm1514, %v3134, %v3948
      %v5152 = vsel %vm1514, %v3135, %v3950
      %v5153 = vsel %vm1514, %v3136, %v3952
      %v5154 = vsel %vm1514, %v3137, %v3954
      %v5155 = vsel %vm1514, %v3138, %v3956
      %v5156 = vsel %vm1514, %v3139, %v3958
      %v5157 = vsel %vm1514, %v3140, %v3960
      %v5158 = vsel %vm1514, %v3141, %v3962
      %v5159 = vsel %vm1514, %v3142, %v3964
      %v5160 = vsel %vm1514, %v3143, %v3966
      %v5161 = vsel %vm1514, %v3144, %v3968
      %v5162 = vsel %vm1514, %v3145, %v3970
      %v5163 = vsel %vm1514, %v3146, %v3972
      %v5164 = vsel %vm1514, %v3147, %v3974
      %v5165 = vsel %vm1514, %v3148, %v3976
      %v5166 = vsel %vm1514, %v3149, %v3978
      %v5167 = vsel %vm1514, %v3150, %v3980
      %v5168 = vsel %vm1514, %v3151, %v3982
      %v5169 = vsel %vm1514, %v3152, %v3984
      %v5170 = vsel %vm1514, %v3153, %v3986
      %v5171 = vsel %vm2927, %v5139, %v4052
      %v5172 = vsel %vm2927, %v5140, %v4054
      %v5173 = vsel %vm2927, %v5141, %v4056
      %v5174 = vsel %vm2927, %v5142, %v4058
      %v5175 = vsel %vm2927, %v5143, %v4060
      %v5176 = vsel %vm2927, %v5144, %v4062
      %v5177 = vsel %vm2927, %v5145, %v4064
      %v5178 = vsel %vm2927, %v5146, %v4066
      %v5179 = vsel %vm2927, %v5147, %v4068
      %v5180 = vsel %vm2927, %v5148, %v4070
      %v5181 = vsel %vm2927, %v5149, %v4072
      %v5182 = vsel %vm2927, %v5150, %v4074
      %v5183 = vsel %vm2927, %v5151, %v4076
      %v5184 = vsel %vm2927, %v5152, %v4078
      %v5185 = vsel %vm2927, %v5153, %v4080
      %v5186 = vsel %vm2927, %v5154, %v4082
      %v5187 = vsel %vm2927, %v5155, %v4084
      %v5188 = vsel %vm2927, %v5156, %v4086
      %v5189 = vsel %vm2927, %v5157, %v4088
      %v5190 = vsel %vm2927, %v5158, %v4090
      %v5191 = vsel %vm2927, %v5159, %v4092
      %v5192 = vsel %vm2927, %v5160, %v4094
      %v5193 = vsel %vm2927, %v5161, %v4096
      %v5194 = vsel %vm2927, %v5162, %v4098
      %v5195 = vsel %vm2927, %v5163, %v4100
      %v5196 = vsel %vm2927, %v5164, %v4102
      %v5197 = vsel %vm2927, %v5165, %v4104
      %v5198 = vsel %vm2927, %v5166, %v4106
      %v5199 = vsel %vm2927, %v5167, %v4108
      %v5200 = vsel %vm2927, %v5168, %v4110
      %v5201 = vsel %vm2927, %v5169, %v4112
      %v5202 = vsel %vm2927, %v5170, %v4114
      %v5203 = vsel %vm2960, %v5171, %v4180
      %v5204 = vsel %vm2960, %v5172, %v4182
      %v5205 = vsel %vm2960, %v5173, %v4184
      %v5206 = vsel %vm2960, %v5174, %v4186
      %v5207 = vsel %vm2960, %v5175, %v4188
      %v5208 = vsel %vm2960, %v5176, %v4190
      %v5209 = vsel %vm2960, %v5177, %v4192
      %v5210 = vsel %vm2960, %v5178, %v4194
      %v5211 = vsel %vm2960, %v5179, %v4196
      %v5212 = vsel %vm2960, %v5180, %v4198
      %v5213 = vsel %vm2960, %v5181, %v4200
      %v5214 = vsel %vm2960, %v5182, %v4202
      %v5215 = vsel %vm2960, %v5183, %v4204
      %v5216 = vsel %vm2960, %v5184, %v4206
      %v5217 = vsel %vm2960, %v5185, %v4208
      %v5218 = vsel %vm2960, %v5186, %v4210
      %v5219 = vsel %vm2960, %v5187, %v4212
      %v5220 = vsel %vm2960, %v5188, %v4214
      %v5221 = vsel %vm2960, %v5189, %v4216
      %v5222 = vsel %vm2960, %v5190, %v4218
      %v5223 = vsel %vm2960, %v5191, %v4220
      %v5224 = vsel %vm2960, %v5192, %v4222
      %v5225 = vsel %vm2960, %v5193, %v4224
      %v5226 = vsel %vm2960, %v5194, %v4226
      %v5227 = vsel %vm2960, %v5195, %v4228
      %v5228 = vsel %vm2960, %v5196, %v4230
      %v5229 = vsel %vm2960, %v5197, %v4232
      %v5230 = vsel %vm2960, %v5198, %v4234
      %v5231 = vsel %vm2960, %v5199, %v4236
      %v5232 = vsel %vm2960, %v5200, %v4238
      %v5233 = vsel %vm2960, %v5201, %v4240
      %v5234 = vsel %vm2960, %v5202, %v4242
      %v5235 = vsel %vm1514, %v3251, %v4308
      %v5236 = vsel %vm1514, %v3252, %v4310
      %v5237 = vsel %vm1514, %v3253, %v4312
      %v5238 = vsel %vm1514, %v3254, %v4314
      %v5239 = vsel %vm1514, %v3255, %v4316
      %v5240 = vsel %vm1514, %v3256, %v4318
      %v5241 = vsel %vm1514, %v3257, %v4320
      %v5242 = vsel %vm1514, %v3258, %v4322
      %v5243 = vsel %vm1514, %v3259, %v4324
      %v5244 = vsel %vm1514, %v3260, %v4326
      %v5245 = vsel %vm1514, %v3261, %v4328
      %v5246 = vsel %vm1514, %v3262, %v4330
      %v5247 = vsel %vm1514, %v3263, %v4332
      %v5248 = vsel %vm1514, %v3264, %v4334
      %v5249 = vsel %vm1514, %v3265, %v4336
      %v5250 = vsel %vm1514, %v3266, %v4338
      %v5251 = vsel %vm1514, %v3267, %v4340
      %v5252 = vsel %vm1514, %v3268, %v4342
      %v5253 = vsel %vm1514, %v3269, %v4344
      %v5254 = vsel %vm1514, %v3270, %v4346
      %v5255 = vsel %vm1514, %v3271, %v4348
      %v5256 = vsel %vm1514, %v3272, %v4350
      %v5257 = vsel %vm1514, %v3273, %v4352
      %v5258 = vsel %vm1514, %v3274, %v4354
      %v5259 = vsel %vm1514, %v3275, %v4356
      %v5260 = vsel %vm1514, %v3276, %v4358
      %v5261 = vsel %vm1514, %v3277, %v4360
      %v5262 = vsel %vm1514, %v3278, %v4362
      %v5263 = vsel %vm1514, %v3279, %v4364
      %v5264 = vsel %vm1514, %v3280, %v4366
      %v5265 = vsel %vm1514, %v3281, %v4368
      %v5266 = vsel %vm1514, %v3282, %v4370
      %v5267 = vsel %vm2927, %v5235, %v4436
      %v5268 = vsel %vm2927, %v5236, %v4438
      %v5269 = vsel %vm2927, %v5237, %v4440
      %v5270 = vsel %vm2927, %v5238, %v4442
      %v5271 = vsel %vm2927, %v5239, %v4444
      %v5272 = vsel %vm2927, %v5240, %v4446
      %v5273 = vsel %vm2927, %v5241, %v4448
      %v5274 = vsel %vm2927, %v5242, %v4450
      %v5275 = vsel %vm2927, %v5243, %v4452
      %v5276 = vsel %vm2927, %v5244, %v4454
      %v5277 = vsel %vm2927, %v5245, %v4456
      %v5278 = vsel %vm2927, %v5246, %v4458
      %v5279 = vsel %vm2927, %v5247, %v4460
      %v5280 = vsel %vm2927, %v5248, %v4462
      %v5281 = vsel %vm2927, %v5249, %v4464
      %v5282 = vsel %vm2927, %v5250, %v4466
      %v5283 = vsel %vm2927, %v5251, %v4468
      %v5284 = vsel %vm2927, %v5252, %v4470
      %v5285 = vsel %vm2927, %v5253, %v4472
      %v5286 = vsel %vm2927, %v5254, %v4474
      %v5287 = vsel %vm2927, %v5255, %v4476
      %v5288 = vsel %vm2927, %v5256, %v4478
      %v5289 = vsel %vm2927, %v5257, %v4480
      %v5290 = vsel %vm2927, %v5258, %v4482
      %v5291 = vsel %vm2927, %v5259, %v4484
      %v5292 = vsel %vm2927, %v5260, %v4486
      %v5293 = vsel %vm2927, %v5261, %v4488
      %v5294 = vsel %vm2927, %v5262, %v4490
      %v5295 = vsel %vm2927, %v5263, %v4492
      %v5296 = vsel %vm2927, %v5264, %v4494
      %v5297 = vsel %vm2927, %v5265, %v4496
      %v5298 = vsel %vm2927, %v5266, %v4498
      %v5299 = vsel %vm2960, %v5267, %v4564
      %v5300 = vsel %vm2960, %v5268, %v4566
      %v5301 = vsel %vm2960, %v5269, %v4568
      %v5302 = vsel %vm2960, %v5270, %v4570
      %v5303 = vsel %vm2960, %v5271, %v4572
      %v5304 = vsel %vm2960, %v5272, %v4574
      %v5305 = vsel %vm2960, %v5273, %v4576
      %v5306 = vsel %vm2960, %v5274, %v4578
      %v5307 = vsel %vm2960, %v5275, %v4580
      %v5308 = vsel %vm2960, %v5276, %v4582
      %v5309 = vsel %vm2960, %v5277, %v4584
      %v5310 = vsel %vm2960, %v5278, %v4586
      %v5311 = vsel %vm2960, %v5279, %v4588
      %v5312 = vsel %vm2960, %v5280, %v4590
      %v5313 = vsel %vm2960, %v5281, %v4592
      %v5314 = vsel %vm2960, %v5282, %v4594
      %v5315 = vsel %vm2960, %v5283, %v4596
      %v5316 = vsel %vm2960, %v5284, %v4598
      %v5317 = vsel %vm2960, %v5285, %v4600
      %v5318 = vsel %vm2960, %v5286, %v4602
      %v5319 = vsel %vm2960, %v5287, %v4604
      %v5320 = vsel %vm2960, %v5288, %v4606
      %v5321 = vsel %vm2960, %v5289, %v4608
      %v5322 = vsel %vm2960, %v5290, %v4610
      %v5323 = vsel %vm2960, %v5291, %v4612
      %v5324 = vsel %vm2960, %v5292, %v4614
      %v5325 = vsel %vm2960, %v5293, %v4616
      %v5326 = vsel %vm2960, %v5294, %v4618
      %v5327 = vsel %vm2960, %v5295, %v4620
      %v5328 = vsel %vm2960, %v5296, %v4622
      %v5329 = vsel %vm2960, %v5297, %v4624
      %v5330 = vsel %vm2960, %v5298, %v4626
      %v5331 = vsel %vm1514, %v3379, %v4692
      %v5332 = vsel %vm1514, %v3380, %v4694
      %v5333 = vsel %vm1514, %v3381, %v4696
      %v5334 = vsel %vm1514, %v3382, %v4698
      %v5335 = vsel %vm1514, %v3383, %v4700
      %v5336 = vsel %vm1514, %v3384, %v4702
      %v5337 = vsel %vm1514, %v3385, %v4704
      %v5338 = vsel %vm1514, %v3386, %v4706
      %v5339 = vsel %vm1514, %v3387, %v4708
      %v5340 = vsel %vm1514, %v3388, %v4710
      %v5341 = vsel %vm1514, %v3389, %v4712
      %v5342 = vsel %vm1514, %v3390, %v4714
      %v5343 = vsel %vm1514, %v3391, %v4716
      %v5344 = vsel %vm1514, %v3392, %v4718
      %v5345 = vsel %vm1514, %v3393, %v4720
      %v5346 = vsel %vm1514, %v3394, %v4722
      %v5347 = vsel %vm1514, %v3395, %v4724
      %v5348 = vsel %vm1514, %v3396, %v4726
      %v5349 = vsel %vm1514, %v3397, %v4728
      %v5350 = vsel %vm1514, %v3398, %v4730
      %v5351 = vsel %vm1514, %v3399, %v4732
      %v5352 = vsel %vm1514, %v3400, %v4734
      %v5353 = vsel %vm1514, %v3401, %v4736
      %v5354 = vsel %vm1514, %v3402, %v4738
      %v5355 = vsel %vm1514, %v3403, %v4740
      %v5356 = vsel %vm1514, %v3404, %v4742
      %v5357 = vsel %vm1514, %v3405, %v4744
      %v5358 = vsel %vm1514, %v3406, %v4746
      %v5359 = vsel %vm1514, %v3407, %v4748
      %v5360 = vsel %vm1514, %v3408, %v4750
      %v5361 = vsel %vm1514, %v3409, %v4752
      %v5362 = vsel %vm1514, %v3410, %v4754
      %v5363 = vsel %vm2927, %v5331, %v4820
      %v5364 = vsel %vm2927, %v5332, %v4822
      %v5365 = vsel %vm2927, %v5333, %v4824
      %v5366 = vsel %vm2927, %v5334, %v4826
      %v5367 = vsel %vm2927, %v5335, %v4828
      %v5368 = vsel %vm2927, %v5336, %v4830
      %v5369 = vsel %vm2927, %v5337, %v4832
      %v5370 = vsel %vm2927, %v5338, %v4834
      %v5371 = vsel %vm2927, %v5339, %v4836
      %v5372 = vsel %vm2927, %v5340, %v4838
      %v5373 = vsel %vm2927, %v5341, %v4840
      %v5374 = vsel %vm2927, %v5342, %v4842
      %v5375 = vsel %vm2927, %v5343, %v4844
      %v5376 = vsel %vm2927, %v5344, %v4846
      %v5377 = vsel %vm2927, %v5345, %v4848
      %v5378 = vsel %vm2927, %v5346, %v4850
      %v5379 = vsel %vm2927, %v5347, %v4852
      %v5380 = vsel %vm2927, %v5348, %v4854
      %v5381 = vsel %vm2927, %v5349, %v4856
      %v5382 = vsel %vm2927, %v5350, %v4858
      %v5383 = vsel %vm2927, %v5351, %v4860
      %v5384 = vsel %vm2927, %v5352, %v4862
      %v5385 = vsel %vm2927, %v5353, %v4864
      %v5386 = vsel %vm2927, %v5354, %v4866
      %v5387 = vsel %vm2927, %v5355, %v4868
      %v5388 = vsel %vm2927, %v5356, %v4870
      %v5389 = vsel %vm2927, %v5357, %v4872
      %v5390 = vsel %vm2927, %v5358, %v4874
      %v5391 = vsel %vm2927, %v5359, %v4876
      %v5392 = vsel %vm2927, %v5360, %v4878
      %v5393 = vsel %vm2927, %v5361, %v4880
      %v5394 = vsel %vm2927, %v5362, %v4882
      %v5395 = vsel %vm2960, %v5363, %v4948
      %v5396 = vsel %vm2960, %v5364, %v4950
      %v5397 = vsel %vm2960, %v5365, %v4952
      %v5398 = vsel %vm2960, %v5366, %v4954
      %v5399 = vsel %vm2960, %v5367, %v4956
      %v5400 = vsel %vm2960, %v5368, %v4958
      %v5401 = vsel %vm2960, %v5369, %v4960
      %v5402 = vsel %vm2960, %v5370, %v4962
      %v5403 = vsel %vm2960, %v5371, %v4964
      %v5404 = vsel %vm2960, %v5372, %v4966
      %v5405 = vsel %vm2960, %v5373, %v4968
      %v5406 = vsel %vm2960, %v5374, %v4970
      %v5407 = vsel %vm2960, %v5375, %v4972
      %v5408 = vsel %vm2960, %v5376, %v4974
      %v5409 = vsel %vm2960, %v5377, %v4976
      %v5410 = vsel %vm2960, %v5378, %v4978
      %v5411 = vsel %vm2960, %v5379, %v4980
      %v5412 = vsel %vm2960, %v5380, %v4982
      %v5413 = vsel %vm2960, %v5381, %v4984
      %v5414 = vsel %vm2960, %v5382, %v4986
      %v5415 = vsel %vm2960, %v5383, %v4988
      %v5416 = vsel %vm2960, %v5384, %v4990
      %v5417 = vsel %vm2960, %v5385, %v4992
      %v5418 = vsel %vm2960, %v5386, %v4994
      %v5419 = vsel %vm2960, %v5387, %v4996
      %v5420 = vsel %vm2960, %v5388, %v4998
      %v5421 = vsel %vm2960, %v5389, %v5000
      %v5422 = vsel %vm2960, %v5390, %v5002
      %v5423 = vsel %vm2960, %v5391, %v5004
      %v5424 = vsel %vm2960, %v5392, %v5006
      %v5425 = vsel %vm2960, %v5393, %v5008
      %v5426 = vsel %vm2960, %v5394, %v5010
      %v5427 = vld [vmem:[%s3] sm:$0xff]
      %v5428 = vld [vmem:[%s3 + $0x8] sm:$0xff]
      %v5429 = vld [vmem:[%s3 + $0x10] sm:$0xff]
      %v5430 = vld [vmem:[%s3 + $0x18] sm:$0xff]
      %v5431 = vld [vmem:[%s3 + $0x20] sm:$0xff]
      %v5432 = vld [vmem:[%s3 + $0x28] sm:$0xff]
      %v5433 = vld [vmem:[%s3 + $0x30] sm:$0xff]
      %v5434 = vld [vmem:[%s3 + $0x38] sm:$0xff]
      %v5435 = vld [vmem:[%s3 + $0x40] sm:$0xff]
      %v5436 = vld [vmem:[%s3 + $0x48] sm:$0xff]
      %v5437 = vld [vmem:[%s3 + $0x50] sm:$0xff]
      %v5438 = vld [vmem:[%s3 + $0x58] sm:$0xff]
      %v5439 = vld [vmem:[%s3 + $0x60] sm:$0xff]
      %v5440 = vld [vmem:[%s3 + $0x68] sm:$0xff]
      %v5441 = vld [vmem:[%s3 + $0x70] sm:$0xff]
      %v5442 = vld [vmem:[%s3 + $0x78] sm:$0xff]
      %v5443 = vld [vmem:[%s3 + $0x80] sm:$0xff]
      %v5444 = vld [vmem:[%s3 + $0x88] sm:$0xff]
      %v5445 = vld [vmem:[%s3 + $0x90] sm:$0xff]
      %v5446 = vld [vmem:[%s3 + $0x98] sm:$0xff]
      %v5447 = vld [vmem:[%s3 + $0xa0] sm:$0xff]
      %v5448 = vld [vmem:[%s3 + $0xa8] sm:$0xff]
      %v5449 = vld [vmem:[%s3 + $0xb0] sm:$0xff]
      %v5450 = vld [vmem:[%s3 + $0xb8] sm:$0xff]
      %v5451 = vld [vmem:[%s3 + $0xc0] sm:$0xff]
      %v5452 = vld [vmem:[%s3 + $0xc8] sm:$0xff]
      %v5453 = vld [vmem:[%s3 + $0xd0] sm:$0xff]
      %v5454 = vld [vmem:[%s3 + $0xd8] sm:$0xff]
      %v5455 = vld [vmem:[%s3 + $0xe0] sm:$0xff]
      %v5456 = vld [vmem:[%s3 + $0xe8] sm:$0xff]
      %v5457 = vld [vmem:[%s3 + $0xf0] sm:$0xff]
      %v5458 = vld [vmem:[%s3 + $0xf8] sm:$0xff]
      %v5459 = vld [vmem:[%s3 + $0x100] sm:$0xff]
      %v5460 = vld [vmem:[%s3 + $0x108] sm:$0xff]
      %v5461 = vld [vmem:[%s3 + $0x110] sm:$0xff]
      %v5462 = vld [vmem:[%s3 + $0x118] sm:$0xff]
      %v5463 = vld [vmem:[%s3 + $0x120] sm:$0xff]
      %v5464 = vld [vmem:[%s3 + $0x128] sm:$0xff]
      %v5465 = vld [vmem:[%s3 + $0x130] sm:$0xff]
      %v5466 = vld [vmem:[%s3 + $0x138] sm:$0xff]
      %v5467 = vld [vmem:[%s3 + $0x140] sm:$0xff]
      %v5468 = vld [vmem:[%s3 + $0x148] sm:$0xff]
      %v5469 = vld [vmem:[%s3 + $0x150] sm:$0xff]
      %v5470 = vld [vmem:[%s3 + $0x158] sm:$0xff]
      %v5471 = vld [vmem:[%s3 + $0x160] sm:$0xff]
      %v5472 = vld [vmem:[%s3 + $0x168] sm:$0xff]
      %v5473 = vld [vmem:[%s3 + $0x170] sm:$0xff]
      %v5474 = vld [vmem:[%s3 + $0x178] sm:$0xff]
      %v5475 = vld [vmem:[%s3 + $0x180] sm:$0xff]
      %v5476 = vld [vmem:[%s3 + $0x188] sm:$0xff]
      %v5477 = vld [vmem:[%s3 + $0x190] sm:$0xff]
      %v5478 = vld [vmem:[%s3 + $0x198] sm:$0xff]
      %v5479 = vld [vmem:[%s3 + $0x1a0] sm:$0xff]
      %v5480 = vld [vmem:[%s3 + $0x1a8] sm:$0xff]
      %v5481 = vld [vmem:[%s3 + $0x1b0] sm:$0xff]
      %v5482 = vld [vmem:[%s3 + $0x1b8] sm:$0xff]
      %v5483 = vld [vmem:[%s3 + $0x1c0] sm:$0xff]
      %v5484 = vld [vmem:[%s3 + $0x1c8] sm:$0xff]
      %v5485 = vld [vmem:[%s3 + $0x1d0] sm:$0xff]
      %v5486 = vld [vmem:[%s3 + $0x1d8] sm:$0xff]
      %v5487 = vld [vmem:[%s3 + $0x1e0] sm:$0xff]
      %v5488 = vld [vmem:[%s3 + $0x1e8] sm:$0xff]
      %v5489 = vld [vmem:[%s3 + $0x1f0] sm:$0xff]
      %v5490 = vld [vmem:[%s3 + $0x1f8] sm:$0xff]
      %v5491 = vld [vmem:[%s4] sm:$0x1]
      %v5493 = vlaneseq
      %v5494 = vshrl.u32 %v5493, 7
      %v5495 = vsub.s32 0, %v5494
      %v5496 = vrot.slane %v5491, %v5495
      %5498 = vmatprep.subr.mxu0 0.0
      %5499 = vmatpush1.msra.mxu0 %v5427
      %5500 = vmatprep.subr.mxu0 0.0
      %5501 = vmatpush1.msra.mxu0 %v5428
      %5502 = vmatprep.subr.mxu0 0.0
      %5503 = vmatpush1.msra.mxu0 %v5429
      %5504 = vmatprep.subr.mxu0 0.0
      %5505 = vmatpush1.msra.mxu0 %v5430
      %5506 = vmatprep.subr.mxu0 0.0
      %5507 = vmatpush1.msra.mxu0 %v5431
      %5508 = vmatprep.subr.mxu0 0.0
      %5509 = vmatpush1.msra.mxu0 %v5432
      %5510 = vmatprep.subr.mxu0 0.0
      %5511 = vmatpush1.msra.mxu0 %v5433
      %5512 = vmatprep.subr.mxu0 0.0
      %5513 = vmatpush1.msra.mxu0 %v5434
      %5514 = vmatprep.subr.mxu0 0.0
      %5515 = vmatpush1.msra.mxu0 %v5435
      %5516 = vmatprep.subr.mxu0 0.0
      %5517 = vmatpush1.msra.mxu0 %v5436
      %5518 = vmatprep.subr.mxu0 0.0
      %5519 = vmatpush1.msra.mxu0 %v5437
      %5520 = vmatprep.subr.mxu0 0.0
      %5521 = vmatpush1.msra.mxu0 %v5438
      %5522 = vmatprep.subr.mxu0 0.0
      %5523 = vmatpush1.msra.mxu0 %v5439
      %5524 = vmatprep.subr.mxu0 0.0
      %5525 = vmatpush1.msra.mxu0 %v5440
      %5526 = vmatprep.subr.mxu0 0.0
      %5527 = vmatpush1.msra.mxu0 %v5441
      %5528 = vmatprep.subr.mxu0 0.0
      %5529 = vmatpush1.msra.mxu0 %v5442
      %5530 = vmatprep.subr.mxu0 0.0
      %5531 = vmatpush1.msra.mxu0 %v5443
      %5532 = vmatprep.subr.mxu0 0.0
      %5533 = vmatpush1.msra.mxu0 %v5444
      %5534 = vmatprep.subr.mxu0 0.0
      %5535 = vmatpush1.msra.mxu0 %v5445
      %5536 = vmatprep.subr.mxu0 0.0
      %5537 = vmatpush1.msra.mxu0 %v5446
      %5538 = vmatprep.subr.mxu0 0.0
      %5539 = vmatpush1.msra.mxu0 %v5447
      %5540 = vmatprep.subr.mxu0 0.0
      %5541 = vmatpush1.msra.mxu0 %v5448
      %5542 = vmatprep.subr.mxu0 0.0
      %5543 = vmatpush1.msra.mxu0 %v5449
      %5544 = vmatprep.subr.mxu0 0.0
      %5545 = vmatpush1.msra.mxu0 %v5450
      %5546 = vmatprep.subr.mxu0 0.0
      %5547 = vmatpush1.msra.mxu0 %v5451
      %5548 = vmatprep.subr.mxu0 0.0
      %5549 = vmatpush1.msra.mxu0 %v5452
      %5550 = vmatprep.subr.mxu0 0.0
      %5551 = vmatpush1.msra.mxu0 %v5453
      %5552 = vmatprep.subr.mxu0 0.0
      %5553 = vmatpush1.msra.mxu0 %v5454
      %5554 = vmatprep.subr.mxu0 0.0
      %5555 = vmatpush1.msra.mxu0 %v5455
      %5556 = vmatprep.subr.mxu0 0.0
      %5557 = vmatpush1.msra.mxu0 %v5456
      %5558 = vmatprep.subr.mxu0 0.0
      %5559 = vmatpush1.msra.mxu0 %v5457
      %5560 = vmatprep.subr.mxu0 0.0
      %5561 = vmatpush1.msra.mxu0 %v5458
      %5562 = vmatprep.mubr.f32.mxu0 %v5203
      %5563 = vmatmul.mubr.f32.gmra.mrb[0].mxu0 %v5107
      %v5564 = vpop.f32.mrb[0].mxu0
      %v5565 = vadd.f32 %v5496, %v5564
      %v5566 = vpop.f32.mrb[0].mxu0
      %5567 = vmatprep.mubr.f32.mxu0 %v5204
      %5568 = vmatmul.mubr.f32.gmra.mrb[0].mxu0 %v5108
      %v5569 = vpop.f32.mrb[0].mxu0
      %v5570 = vadd.f32 %v5496, %v5569
      %v5571 = vpop.f32.mrb[0].mxu0
      %5572 = vmatprep.mubr.f32.mxu0 %v5205
      %5573 = vmatmul.mubr.f32.gmra.mrb[0].mxu0 %v5109
      %v5574 = vpop.f32.mrb[0].mxu0
      %v5575 = vadd.f32 %v5496, %v5574
      %v5576 = vpop.f32.mrb[0].mxu0
      %5577 = vmatprep.mubr.f32.mxu0 %v5206
      %5578 = vmatmul.mubr.f32.gmra.mrb[0].mxu0 %v5110
      %v5579 = vpop.f32.mrb[0].mxu0
      %v5580 = vadd.f32 %v5496, %v5579
      %v5581 = vpop.f32.mrb[0].mxu0
      %5582 = vmatprep.mubr.f32.mxu0 %v5207
      %5583 = vmatmul.mubr.f32.gmra.mrb[0].mxu0 %v5111
      %v5584 = vpop.f32.mrb[0].mxu0
      %v5585 = vadd.f32 %v5496, %v5584
      %v5586 = vpop.f32.mrb[0].mxu0
      %5587 = vmatprep.mubr.f32.mxu0 %v5208
      %5588 = vmatmul.mubr.f32.gmra.mrb[0].mxu0 %v5112
      %v5589 = vpop.f32.mrb[0].mxu0
      %v5590 = vadd.f32 %v5496, %v5589
      %v5591 = vpop.f32.mrb[0].mxu0
      %5592 = vmatprep.mubr.f32.mxu0 %v5209
      %5593 = vmatmul.mubr.f32.gmra.mrb[0].mxu0 %v5113
      %v5594 = vpop.f32.mrb[0].mxu0
      %v5595 = vadd.f32 %v5496, %v5594
      %v5596 = vpop.f32.mrb[0].mxu0
      %5597 = vmatprep.mubr.f32.mxu0 %v5210
      %5598 = vmatmul.mubr.f32.gmra.mrb[0].mxu0 %v5114
      %v5599 = vpop.f32.mrb[0].mxu0
      %v5600 = vadd.f32 %v5496, %v5599
      %v5601 = vpop.f32.mrb[0].mxu0
      %5602 = vmatprep.mubr.f32.mxu0 %v5211
      %5603 = vmatmul.mubr.f32.gmra.mrb[0].mxu0 %v5115
      %v5604 = vpop.f32.mrb[0].mxu0
      %v5605 = vadd.f32 %v5496, %v5604
      %v5606 = vpop.f32.mrb[0].mxu0
      %5607 = vmatprep.mubr.f32.mxu0 %v5212
      %5608 = vmatmul.mubr.f32.gmra.mrb[0].mxu0 %v5116
      %v5609 = vpop.f32.mrb[0].mxu0
      %v5610 = vadd.f32 %v5496, %v5609
      %v5611 = vpop.f32.mrb[0].mxu0
      %5612 = vmatprep.mubr.f32.mxu0 %v5213
      %5613 = vmatmul.mubr.f32.gmra.mrb[0].mxu0 %v5117
      %v5614 = vpop.f32.mrb[0].mxu0
      %v5615 = vadd.f32 %v5496, %v5614
      %v5616 = vpop.f32.mrb[0].mxu0
      %5617 = vmatprep.mubr.f32.mxu0 %v5214
      %5618 = vmatmul.mubr.f32.gmra.mrb[0].mxu0 %v5118
      %v5619 = vpop.f32.mrb[0].mxu0
      %v5620 = vadd.f32 %v5496, %v5619
      %v5621 = vpop.f32.mrb[0].mxu0
      %5622 = vmatprep.mubr.f32.mxu0 %v5215
      %5623 = vmatmul.mubr.f32.gmra.mrb[0].mxu0 %v5119
      %v5624 = vpop.f32.mrb[0].mxu0
      %v5625 = vadd.f32 %v5496, %v5624
      %v5626 = vpop.f32.mrb[0].mxu0
      %5627 = vmatprep.mubr.f32.mxu0 %v5216
      %5628 = vmatmul.mubr.f32.gmra.mrb[0].mxu0 %v5120
      %v5629 = vpop.f32.mrb[0].mxu0
      %v5630 = vadd.f32 %v5496, %v5629
      %v5631 = vpop.f32.mrb[0].mxu0
      %5632 = vmatprep.mubr.f32.mxu0 %v5217
      %5633 = vmatmul.mubr.f32.gmra.mrb[0].mxu0 %v5121
      %v5634 = vpop.f32.mrb[0].mxu0
      %v5635 = vadd.f32 %v5496, %v5634
      %v5636 = vpop.f32.mrb[0].mxu0
      %5637 = vmatprep.mubr.f32.mxu0 %v5218
      %5638 = vmatmul.mubr.f32.gmra.mrb[0].mxu0 %v5122
      %v5639 = vpop.f32.mrb[0].mxu0
      %v5640 = vadd.f32 %v5496, %v5639
      %v5641 = vpop.f32.mrb[0].mxu0
      %5642 = vmatprep.mubr.f32.mxu0 %v5219
      %5643 = vmatmul.mubr.f32.gmra.mrb[0].mxu0 %v5123
      %v5644 = vpop.f32.mrb[0].mxu0
      %v5645 = vadd.f32 %v5496, %v5644
      %v5646 = vpop.f32.mrb[0].mxu0
      %5647 = vmatprep.mubr.f32.mxu0 %v5220
      %5648 = vmatmul.mubr.f32.gmra.mrb[0].mxu0 %v5124
      %v5649 = vpop.f32.mrb[0].mxu0
      %v5650 = vadd.f32 %v5496, %v5649
      %v5651 = vpop.f32.mrb[0].mxu0
      %5652 = vmatprep.mubr.f32.mxu0 %v5221
      %5653 = vmatmul.mubr.f32.gmra.mrb[0].mxu0 %v5125
      %v5654 = vpop.f32.mrb[0].mxu0
      %v5655 = vadd.f32 %v5496, %v5654
      %v5656 = vpop.f32.mrb[0].mxu0
      %5657 = vmatprep.mubr.f32.mxu0 %v5222
      %5658 = vmatmul.mubr.f32.gmra.mrb[0].mxu0 %v5126
      %v5659 = vpop.f32.mrb[0].mxu0
      %v5660 = vadd.f32 %v5496, %v5659
      %v5661 = vpop.f32.mrb[0].mxu0
      %5662 = vmatprep.mubr.f32.mxu0 %v5223
      %5663 = vmatmul.mubr.f32.gmra.mrb[0].mxu0 %v5127
      %v5664 = vpop.f32.mrb[0].mxu0
      %v5665 = vadd.f32 %v5496, %v5664
      %v5666 = vpop.f32.mrb[0].mxu0
      %5667 = vmatprep.mubr.f32.mxu0 %v5224
      %5668 = vmatmul.mubr.f32.gmra.mrb[0].mxu0 %v5128
      %v5669 = vpop.f32.mrb[0].mxu0
      %v5670 = vadd.f32 %v5496, %v5669
      %v5671 = vpop.f32.mrb[0].mxu0
      %5672 = vmatprep.mubr.f32.mxu0 %v5225
      %5673 = vmatmul.mubr.f32.gmra.mrb[0].mxu0 %v5129
      %v5674 = vpop.f32.mrb[0].mxu0
      %v5675 = vadd.f32 %v5496, %v5674
      %v5676 = vpop.f32.mrb[0].mxu0
      %5677 = vmatprep.mubr.f32.mxu0 %v5226
      %5678 = vmatmul.mubr.f32.gmra.mrb[0].mxu0 %v5130
      %v5679 = vpop.f32.mrb[0].mxu0
      %v5680 = vadd.f32 %v5496, %v5679
      %v5681 = vpop.f32.mrb[0].mxu0
      %5682 = vmatprep.mubr.f32.mxu0 %v5227
      %5683 = vmatmul.mubr.f32.gmra.mrb[0].mxu0 %v5131
      %v5684 = vpop.f32.mrb[0].mxu0
      %v5685 = vadd.f32 %v5496, %v5684
      %v5686 = vpop.f32.mrb[0].mxu0
      %5687 = vmatprep.mubr.f32.mxu0 %v5228
      %5688 = vmatmul.mubr.f32.gmra.mrb[0].mxu0 %v5132
      %v5689 = vpop.f32.mrb[0].mxu0
      %v5690 = vadd.f32 %v5496, %v5689
      %v5691 = vpop.f32.mrb[0].mxu0
      %5692 = vmatprep.mubr.f32.mxu0 %v5229
      %5693 = vmatmul.mubr.f32.gmra.mrb[0].mxu0 %v5133
      %v5694 = vpop.f32.mrb[0].mxu0
      %v5695 = vadd.f32 %v5496, %v5694
      %v5696 = vpop.f32.mrb[0].mxu0
      %5697 = vmatprep.mubr.f32.mxu0 %v5230
      %5698 = vmatmul.mubr.f32.gmra.mrb[0].mxu0 %v5134
      %v5699 = vpop.f32.mrb[0].mxu0
      %v5700 = vadd.f32 %v5496, %v5699
      %v5701 = vpop.f32.mrb[0].mxu0
      %5702 = vmatprep.mubr.f32.mxu0 %v5231
      %5703 = vmatmul.mubr.f32.gmra.mrb[0].mxu0 %v5135
      %v5704 = vpop.f32.mrb[0].mxu0
      %v5705 = vadd.f32 %v5496, %v5704
      %v5706 = vpop.f32.mrb[0].mxu0
      %5707 = vmatprep.mubr.f32.mxu0 %v5232
      %5708 = vmatmul.mubr.f32.gmra.mrb[0].mxu0 %v5136
      %v5709 = vpop.f32.mrb[0].mxu0
      %v5710 = vadd.f32 %v5496, %v5709
      %v5711 = vpop.f32.mrb[0].mxu0
      %5712 = vmatprep.mubr.f32.mxu0 %v5233
      %5713 = vmatmul.mubr.f32.gmra.mrb[0].mxu0 %v5137
      %v5714 = vpop.f32.mrb[0].mxu0
      %v5715 = vadd.f32 %v5496, %v5714
      %v5716 = vpop.f32.mrb[0].mxu0
      %5717 = vmatprep.mubr.f32.mxu0 %v5234
      %5718 = vmatmul.mubr.f32.gmra.mrb[0].mxu0 %v5138
      %v5719 = vpop.f32.mrb[0].mxu0
      %v5720 = vadd.f32 %v5496, %v5719
      %v5721 = vpop.f32.mrb[0].mxu0
      %5722 = vdwg.mxu0
      %5723 = vmatprep.subr.mxu0 0.0
      %5724 = vmatpush1.msra.mxu0 %v5459
      %5725 = vmatprep.subr.mxu0 0.0
      %5726 = vmatpush1.msra.mxu0 %v5460
      %5727 = vmatprep.subr.mxu0 0.0
      %5728 = vmatpush1.msra.mxu0 %v5461
      %5729 = vmatprep.subr.mxu0 0.0
      %5730 = vmatpush1.msra.mxu0 %v5462
      %5731 = vmatprep.subr.mxu0 0.0
      %5732 = vmatpush1.msra.mxu0 %v5463
      %5733 = vmatprep.subr.mxu0 0.0
      %5734 = vmatpush1.msra.mxu0 %v5464
      %5735 = vmatprep.subr.mxu0 0.0
      %5736 = vmatpush1.msra.mxu0 %v5465
      %5737 = vmatprep.subr.mxu0 0.0
      %5738 = vmatpush1.msra.mxu0 %v5466
      %5739 = vmatprep.subr.mxu0 0.0
      %5740 = vmatpush1.msra.mxu0 %v5467
      %5741 = vmatprep.subr.mxu0 0.0
      %5742 = vmatpush1.msra.mxu0 %v5468
      %5743 = vmatprep.subr.mxu0 0.0
      %5744 = vmatpush1.msra.mxu0 %v5469
      %5745 = vmatprep.subr.mxu0 0.0
      %5746 = vmatpush1.msra.mxu0 %v5470
      %5747 = vmatprep.subr.mxu0 0.0
      %5748 = vmatpush1.msra.mxu0 %v5471
      %5749 = vmatprep.subr.mxu0 0.0
      %5750 = vmatpush1.msra.mxu0 %v5472
      %5751 = vmatprep.subr.mxu0 0.0
      %5752 = vmatpush1.msra.mxu0 %v5473
      %5753 = vmatprep.subr.mxu0 0.0
      %5754 = vmatpush1.msra.mxu0 %v5474
      %5755 = vmatprep.subr.mxu0 0.0
      %5756 = vmatpush1.msra.mxu0 %v5475
      %5757 = vmatprep.subr.mxu0 0.0
      %5758 = vmatpush1.msra.mxu0 %v5476
      %5759 = vmatprep.subr.mxu0 0.0
      %5760 = vmatpush1.msra.mxu0 %v5477
      %5761 = vmatprep.subr.mxu0 0.0
      %5762 = vmatpush1.msra.mxu0 %v5478
      %5763 = vmatprep.subr.mxu0 0.0
      %5764 = vmatpush1.msra.mxu0 %v5479
      %5765 = vmatprep.subr.mxu0 0.0
      %5766 = vmatpush1.msra.mxu0 %v5480
      %5767 = vmatprep.subr.mxu0 0.0
      %5768 = vmatpush1.msra.mxu0 %v5481
      %5769 = vmatprep.subr.mxu0 0.0
      %5770 = vmatpush1.msra.mxu0 %v5482
      %5771 = vmatprep.subr.mxu0 0.0
      %5772 = vmatpush1.msra.mxu0 %v5483
      %5773 = vmatprep.subr.mxu0 0.0
      %5774 = vmatpush1.msra.mxu0 %v5484
      %5775 = vmatprep.subr.mxu0 0.0
      %5776 = vmatpush1.msra.mxu0 %v5485
      %5777 = vmatprep.subr.mxu0 0.0
      %5778 = vmatpush1.msra.mxu0 %v5486
      %5779 = vmatprep.subr.mxu0 0.0
      %5780 = vmatpush1.msra.mxu0 %v5487
      %5781 = vmatprep.subr.mxu0 0.0
      %5782 = vmatpush1.msra.mxu0 %v5488
      %5783 = vmatprep.subr.mxu0 0.0
      %5784 = vmatpush1.msra.mxu0 %v5489
      %5785 = vmatprep.subr.mxu0 0.0
      %5786 = vmatpush1.msra.mxu0 %v5490
      %5787 = vmatprep.mubr.f32.mxu0 %v5395
      %5788 = vmatmul.mubr.f32.gmra.mrb[0].mxu0 %v5299
      %v5789 = vpop.f32.mrb[0].mxu0
      %v5790 = vadd.f32 %v5565, %v5789
      %v5791 = vpop.f32.mrb[0].mxu0
      %5792 = vmatprep.mubr.f32.mxu0 %v5396
      %5793 = vmatmul.mubr.f32.gmra.mrb[0].mxu0 %v5300
      %v5794 = vpop.f32.mrb[0].mxu0
      %v5795 = vadd.f32 %v5570, %v5794
      %v5796 = vpop.f32.mrb[0].mxu0
      %5797 = vmatprep.mubr.f32.mxu0 %v5397
      %5798 = vmatmul.mubr.f32.gmra.mrb[0].mxu0 %v5301
      %v5799 = vpop.f32.mrb[0].mxu0
      %v5800 = vadd.f32 %v5575, %v5799
      %v5801 = vpop.f32.mrb[0].mxu0
      %5802 = vmatprep.mubr.f32.mxu0 %v5398
      %5803 = vmatmul.mubr.f32.gmra.mrb[0].mxu0 %v5302
      %v5804 = vpop.f32.mrb[0].mxu0
      %v5805 = vadd.f32 %v5580, %v5804
      %v5806 = vpop.f32.mrb[0].mxu0
      %5807 = vmatprep.mubr.f32.mxu0 %v5399
      %5808 = vmatmul.mubr.f32.gmra.mrb[0].mxu0 %v5303
      %v5809 = vpop.f32.mrb[0].mxu0
      %v5810 = vadd.f32 %v5585, %v5809
      %v5811 = vpop.f32.mrb[0].mxu0
      %5812 = vmatprep.mubr.f32.mxu0 %v5400
      %5813 = vmatmul.mubr.f32.gmra.mrb[0].mxu0 %v5304
      %v5814 = vpop.f32.mrb[0].mxu0
      %v5815 = vadd.f32 %v5590, %v5814
      %v5816 = vpop.f32.mrb[0].mxu0
      %5817 = vmatprep.mubr.f32.mxu0 %v5401
      %5818 = vmatmul.mubr.f32.gmra.mrb[0].mxu0 %v5305
      %v5819 = vpop.f32.mrb[0].mxu0
      %v5820 = vadd.f32 %v5595, %v5819
      %v5821 = vpop.f32.mrb[0].mxu0
      %5822 = vmatprep.mubr.f32.mxu0 %v5402
      %5823 = vmatmul.mubr.f32.gmra.mrb[0].mxu0 %v5306
      %v5824 = vpop.f32.mrb[0].mxu0
      %v5825 = vadd.f32 %v5600, %v5824
      %v5826 = vpop.f32.mrb[0].mxu0
      %5827 = vmatprep.mubr.f32.mxu0 %v5403
      %5828 = vmatmul.mubr.f32.gmra.mrb[0].mxu0 %v5307
      %v5829 = vpop.f32.mrb[0].mxu0
      %v5830 = vadd.f32 %v5605, %v5829
      %v5831 = vpop.f32.mrb[0].mxu0
      %5832 = vmatprep.mubr.f32.mxu0 %v5404
      %5833 = vmatmul.mubr.f32.gmra.mrb[0].mxu0 %v5308
      %v5834 = vpop.f32.mrb[0].mxu0
      %v5835 = vadd.f32 %v5610, %v5834
      %v5836 = vpop.f32.mrb[0].mxu0
      %5837 = vmatprep.mubr.f32.mxu0 %v5405
      %5838 = vmatmul.mubr.f32.gmra.mrb[0].mxu0 %v5309
      %v5839 = vpop.f32.mrb[0].mxu0
      %v5840 = vadd.f32 %v5615, %v5839
      %v5841 = vpop.f32.mrb[0].mxu0
      %5842 = vmatprep.mubr.f32.mxu0 %v5406
      %5843 = vmatmul.mubr.f32.gmra.mrb[0].mxu0 %v5310
      %v5844 = vpop.f32.mrb[0].mxu0
      %v5845 = vadd.f32 %v5620, %v5844
      %v5846 = vpop.f32.mrb[0].mxu0
      %5847 = vmatprep.mubr.f32.mxu0 %v5407
      %5848 = vmatmul.mubr.f32.gmra.mrb[0].mxu0 %v5311
      %v5849 = vpop.f32.mrb[0].mxu0
      %v5850 = vadd.f32 %v5625, %v5849
      %v5851 = vpop.f32.mrb[0].mxu0
      %5852 = vmatprep.mubr.f32.mxu0 %v5408
      %5853 = vmatmul.mubr.f32.gmra.mrb[0].mxu0 %v5312
      %v5854 = vpop.f32.mrb[0].mxu0
      %v5855 = vadd.f32 %v5630, %v5854
      %v5856 = vpop.f32.mrb[0].mxu0
      %5857 = vmatprep.mubr.f32.mxu0 %v5409
      %5858 = vmatmul.mubr.f32.gmra.mrb[0].mxu0 %v5313
      %v5859 = vpop.f32.mrb[0].mxu0
      %v5860 = vadd.f32 %v5635, %v5859
      %v5861 = vpop.f32.mrb[0].mxu0
      %5862 = vmatprep.mubr.f32.mxu0 %v5410
      %5863 = vmatmul.mubr.f32.gmra.mrb[0].mxu0 %v5314
      %v5864 = vpop.f32.mrb[0].mxu0
      %v5865 = vadd.f32 %v5640, %v5864
      %v5866 = vpop.f32.mrb[0].mxu0
      %5867 = vmatprep.mubr.f32.mxu0 %v5411
      %5868 = vmatmul.mubr.f32.gmra.mrb[0].mxu0 %v5315
      %v5869 = vpop.f32.mrb[0].mxu0
      %v5870 = vadd.f32 %v5645, %v5869
      %v5871 = vpop.f32.mrb[0].mxu0
      %5872 = vmatprep.mubr.f32.mxu0 %v5412
      %5873 = vmatmul.mubr.f32.gmra.mrb[0].mxu0 %v5316
      %v5874 = vpop.f32.mrb[0].mxu0
      %v5875 = vadd.f32 %v5650, %v5874
      %v5876 = vpop.f32.mrb[0].mxu0
      %5877 = vmatprep.mubr.f32.mxu0 %v5413
      %5878 = vmatmul.mubr.f32.gmra.mrb[0].mxu0 %v5317
      %v5879 = vpop.f32.mrb[0].mxu0
      %v5880 = vadd.f32 %v5655, %v5879
      %v5881 = vpop.f32.mrb[0].mxu0
      %5882 = vmatprep.mubr.f32.mxu0 %v5414
      %5883 = vmatmul.mubr.f32.gmra.mrb[0].mxu0 %v5318
      %v5884 = vpop.f32.mrb[0].mxu0
      %v5885 = vadd.f32 %v5660, %v5884
      %v5886 = vpop.f32.mrb[0].mxu0
      %5887 = vmatprep.mubr.f32.mxu0 %v5415
      %5888 = vmatmul.mubr.f32.gmra.mrb[0].mxu0 %v5319
      %v5889 = vpop.f32.mrb[0].mxu0
      %v5890 = vadd.f32 %v5665, %v5889
      %v5891 = vpop.f32.mrb[0].mxu0
      %5892 = vmatprep.mubr.f32.mxu0 %v5416
      %5893 = vmatmul.mubr.f32.gmra.mrb[0].mxu0 %v5320
      %v5894 = vpop.f32.mrb[0].mxu0
      %v5895 = vadd.f32 %v5670, %v5894
      %v5896 = vpop.f32.mrb[0].mxu0
      %5897 = vmatprep.mubr.f32.mxu0 %v5417
      %5898 = vmatmul.mubr.f32.gmra.mrb[0].mxu0 %v5321
      %v5899 = vpop.f32.mrb[0].mxu0
      %v5900 = vadd.f32 %v5675, %v5899
      %v5901 = vpop.f32.mrb[0].mxu0
      %5902 = vmatprep.mubr.f32.mxu0 %v5418
      %5903 = vmatmul.mubr.f32.gmra.mrb[0].mxu0 %v5322
      %v5904 = vpop.f32.mrb[0].mxu0
      %v5905 = vadd.f32 %v5680, %v5904
      %v5906 = vpop.f32.mrb[0].mxu0
      %5907 = vmatprep.mubr.f32.mxu0 %v5419
      %5908 = vmatmul.mubr.f32.gmra.mrb[0].mxu0 %v5323
      %v5909 = vpop.f32.mrb[0].mxu0
      %v5910 = vadd.f32 %v5685, %v5909
      %v5911 = vpop.f32.mrb[0].mxu0
      %5912 = vmatprep.mubr.f32.mxu0 %v5420
      %5913 = vmatmul.mubr.f32.gmra.mrb[0].mxu0 %v5324
      %v5914 = vpop.f32.mrb[0].mxu0
      %v5915 = vadd.f32 %v5690, %v5914
      %v5916 = vpop.f32.mrb[0].mxu0
      %5917 = vmatprep.mubr.f32.mxu0 %v5421
      %5918 = vmatmul.mubr.f32.gmra.mrb[0].mxu0 %v5325
      %v5919 = vpop.f32.mrb[0].mxu0
      %v5920 = vadd.f32 %v5695, %v5919
      %v5921 = vpop.f32.mrb[0].mxu0
      %5922 = vmatprep.mubr.f32.mxu0 %v5422
      %5923 = vmatmul.mubr.f32.gmra.mrb[0].mxu0 %v5326
      %v5924 = vpop.f32.mrb[0].mxu0
      %v5925 = vadd.f32 %v5700, %v5924
      %v5926 = vpop.f32.mrb[0].mxu0
      %5927 = vmatprep.mubr.f32.mxu0 %v5423
      %5928 = vmatmul.mubr.f32.gmra.mrb[0].mxu0 %v5327
      %v5929 = vpop.f32.mrb[0].mxu0
      %v5930 = vadd.f32 %v5705, %v5929
      %v5931 = vpop.f32.mrb[0].mxu0
      %5932 = vmatprep.mubr.f32.mxu0 %v5424
      %5933 = vmatmul.mubr.f32.gmra.mrb[0].mxu0 %v5328
      %v5934 = vpop.f32.mrb[0].mxu0
      %v5935 = vadd.f32 %v5710, %v5934
      %v5936 = vpop.f32.mrb[0].mxu0
      %5937 = vmatprep.mubr.f32.mxu0 %v5425
      %5938 = vmatmul.mubr.f32.gmra.mrb[0].mxu0 %v5329
      %v5939 = vpop.f32.mrb[0].mxu0
      %v5940 = vadd.f32 %v5715, %v5939
      %v5941 = vpop.f32.mrb[0].mxu0
      %5942 = vmatprep.mubr.f32.mxu0 %v5426
      %5943 = vmatmul.mubr.f32.gmra.mrb[0].mxu0 %v5330
      %v5944 = vpop.f32.mrb[0].mxu0
      %v5945 = vadd.f32 %v5720, %v5944
      %v5946 = vpop.f32.mrb[0].mxu0
      %5947 = vdwg.mxu0
      %v5948 = vadd.f32 %v5790, %v2961
      %v5949 = vadd.f32 %v5795, %v2962
      %v5950 = vadd.f32 %v5800, %v2963
      %v5951 = vadd.f32 %v5805, %v2964
      %v5952 = vadd.f32 %v5810, %v2965
      %v5953 = vadd.f32 %v5815, %v2966
      %v5954 = vadd.f32 %v5820, %v2967
      %v5955 = vadd.f32 %v5825, %v2968
      %v5956 = vadd.f32 %v5830, %v2969
      %v5957 = vadd.f32 %v5835, %v2970
      %v5958 = vadd.f32 %v5840, %v2971
      %v5959 = vadd.f32 %v5845, %v2972
      %v5960 = vadd.f32 %v5850, %v2973
      %v5961 = vadd.f32 %v5855, %v2974
      %v5962 = vadd.f32 %v5860, %v2975
      %v5963 = vadd.f32 %v5865, %v2976
      %v5964 = vadd.f32 %v5870, %v2977
      %v5965 = vadd.f32 %v5875, %v2978
      %v5966 = vadd.f32 %v5880, %v2979
      %v5967 = vadd.f32 %v5885, %v2980
      %v5968 = vadd.f32 %v5890, %v2981
      %v5969 = vadd.f32 %v5895, %v2982
      %v5970 = vadd.f32 %v5900, %v2983
      %v5971 = vadd.f32 %v5905, %v2984
      %v5972 = vadd.f32 %v5910, %v2985
      %v5973 = vadd.f32 %v5915, %v2986
      %v5974 = vadd.f32 %v5920, %v2987
      %v5975 = vadd.f32 %v5925, %v2988
      %v5976 = vadd.f32 %v5930, %v2989
      %v5977 = vadd.f32 %v5935, %v2990
      %v5978 = vadd.f32 %v5940, %v2991
      %v5979 = vadd.f32 %v5945, %v2992
      %v5980 = vmax.f32 %v5948, 0.0
      %v5981 = vmax.f32 %v5949, 0.0
      %v5982 = vmax.f32 %v5950, 0.0
      %v5983 = vmax.f32 %v5951, 0.0
      %v5984 = vmax.f32 %v5952, 0.0
      %v5985 = vmax.f32 %v5953, 0.0
      %v5986 = vmax.f32 %v5954, 0.0
      %v5987 = vmax.f32 %v5955, 0.0
      %v5988 = vmax.f32 %v5956, 0.0
      %v5989 = vmax.f32 %v5957, 0.0
      %v5990 = vmax.f32 %v5958, 0.0
      %v5991 = vmax.f32 %v5959, 0.0
      %v5992 = vmax.f32 %v5960, 0.0
      %v5993 = vmax.f32 %v5961, 0.0
      %v5994 = vmax.f32 %v5962, 0.0
      %v5995 = vmax.f32 %v5963, 0.0
      %v5996 = vmax.f32 %v5964, 0.0
      %v5997 = vmax.f32 %v5965, 0.0
      %v5998 = vmax.f32 %v5966, 0.0
      %v5999 = vmax.f32 %v5967, 0.0
      %v6000 = vmax.f32 %v5968, 0.0
      %v6001 = vmax.f32 %v5969, 0.0
      %v6002 = vmax.f32 %v5970, 0.0
      %v6003 = vmax.f32 %v5971, 0.0
      %v6004 = vmax.f32 %v5972, 0.0
      %v6005 = vmax.f32 %v5973, 0.0
      %v6006 = vmax.f32 %v5974, 0.0
      %v6007 = vmax.f32 %v5975, 0.0
      %v6008 = vmax.f32 %v5976, 0.0
      %v6009 = vmax.f32 %v5977, 0.0
      %v6010 = vmax.f32 %v5978, 0.0
      %v6011 = vmax.f32 %v5979, 0.0
      %6012 = vst [vmem:[%s224] sm:$0xff] %v5980
      %6013 = vst [vmem:[%s224 + $0x8] sm:$0xff] %v5981
      %6014 = vst [vmem:[%s224 + $0x10] sm:$0xff] %v5982
      %6015 = vst [vmem:[%s224 + $0x18] sm:$0xff] %v5983
      %6016 = vst [vmem:[%s224 + $0x20] sm:$0xff] %v5984
      %6017 = vst [vmem:[%s224 + $0x28] sm:$0xff] %v5985
      %6018 = vst [vmem:[%s224 + $0x30] sm:$0xff] %v5986
      %6019 = vst [vmem:[%s224 + $0x38] sm:$0xff] %v5987
      %6020 = vst [vmem:[%s224 + $0x40] sm:$0xff] %v5988
      %6021 = vst [vmem:[%s224 + $0x48] sm:$0xff] %v5989
      %6022 = vst [vmem:[%s224 + $0x50] sm:$0xff] %v5990
      %6023 = vst [vmem:[%s224 + $0x58] sm:$0xff] %v5991
      %6024 = vst [vmem:[%s224 + $0x60] sm:$0xff] %v5992
      %6025 = vst [vmem:[%s224 + $0x68] sm:$0xff] %v5993
      %6026 = vst [vmem:[%s224 + $0x70] sm:$0xff] %v5994
      %6027 = vst [vmem:[%s224 + $0x78] sm:$0xff] %v5995
      %6028 = vst [vmem:[%s224 + $0x80] sm:$0xff] %v5996
      %6029 = vst [vmem:[%s224 + $0x88] sm:$0xff] %v5997
      %6030 = vst [vmem:[%s224 + $0x90] sm:$0xff] %v5998
      %6031 = vst [vmem:[%s224 + $0x98] sm:$0xff] %v5999
      %6032 = vst [vmem:[%s224 + $0xa0] sm:$0xff] %v6000
      %6033 = vst [vmem:[%s224 + $0xa8] sm:$0xff] %v6001
      %6034 = vst [vmem:[%s224 + $0xb0] sm:$0xff] %v6002
      %6035 = vst [vmem:[%s224 + $0xb8] sm:$0xff] %v6003
      %6036 = vst [vmem:[%s224 + $0xc0] sm:$0xff] %v6004
      %6037 = vst [vmem:[%s224 + $0xc8] sm:$0xff] %v6005
      %6038 = vst [vmem:[%s224 + $0xd0] sm:$0xff] %v6006
      %6039 = vst [vmem:[%s224 + $0xd8] sm:$0xff] %v6007
      %6040 = vst [vmem:[%s224 + $0xe0] sm:$0xff] %v6008
      %6041 = vst [vmem:[%s224 + $0xe8] sm:$0xff] %v6009
      %6042 = vst [vmem:[%s224 + $0xf0] sm:$0xff] %v6010
      %6043 = vst [vmem:[%s224 + $0xf8] sm:$0xff] %v6011
      %p6044 = scmp.lt.s32.totalorder %s16, 1
      %s6045 = scalar_select %p6044, %s16, 1
      %s6046 = smul.addr %s6045, 32
      %s6047 = smul.addr %s6046, 8
      %s6048 = scalar_lea.vmem %s5, %s6047
      // Predicated region
      $region41: #{upproj_forward.1} parent=39 // pred_check
        %p6049 = pneg %p144
      $region42: #{upproj_forward.1} parent=39 // pred_check_branch
        %6051 = sbr.rel (%p6049) target = $region44
      $region43: #{upproj_forward.1} parent=39 // pred_region
        _
      $region44: #{upproj_forward.1} parent=39 // pred_fallthru
        _
    $region40: #{upproj_forward.1} parent=5 // pred_fallthru
      _
    %p6052 = scmp.le.s32.totalorder 2, %s11
    // Predicated region
    $region45: #{upproj_forward.1} parent=5 // pred_check
      %p6053 = pneg %p6052
    $region46: #{upproj_forward.1} parent=5 // pred_check_branch
      %6055 = sbr.rel (%p6053) target = $region48
    $region47: #{upproj_forward.1} parent=5 // pred_region
      %s6056 = ssub.s32 %s11, 2
      // Predicated region
      $region49: #{upproj_forward.1} parent=47 // pred_check
        %p6057 = pneg %p150
      $region50: #{upproj_forward.1} parent=47 // pred_check_branch
        %6059 = sbr.rel (%p6057) target = $region52
      $region51: #{upproj_forward.1} parent=47 // pred_region
        %p6060 = scmp.lt.s32.totalorder %s17, 1
        %s6061 = scalar_select %p6060, %s17, 1
        %s6062 = smul.addr %s6061, 32
        %s6063 = smul.addr %s6062, 8
        %s6064 = scalar_lea.vmem %s5, %s6063
      $region52: #{upproj_forward.1} parent=47 // pred_fallthru
        _
    $region48: #{upproj_forward.1} parent=5 // pred_fallthru
      _
  $region6: #{upproj_forward.1} parent=0 // loop_footer
    %s15 = sadd.s32 1, %s11
  $region7: #{upproj_forward.1} parent=0 // loop_footer_branch
    %10 = sbr.rel target = $region3
  $region8: #{upproj_forward.1} parent=0 // loop_exit
    _

</llo_original>
